<compile_context>
chip_gen: v5e
topology: v5e:2x2
jax: 0.10.0
libtpu: 0.0.40
codegen_flags: <defaults>
</compile_context>

<pallas_src>
import jax
import jax.numpy as jnp
from jax.experimental import pallas as pl
from jax.experimental.pallas import tpu as pltpu


def _layernorm(x, g, b, eps=1e-6):
    # TODO(synk): timm ViT (SiT backbone) uses eps=1e-6; plain torch.nn.LayerNorm default is 1e-5.
    mu = jnp.mean(x, axis=-1, keepdims=True)
    var = jnp.mean((x - mu) ** 2, axis=-1, keepdims=True)
    return (x - mu) * jax.lax.rsqrt(var + eps) * g + b


def _mm(a, w_ref):
    """bf16 MXU operands, f32 accumulation (weights already stored bf16)."""
    if a.dtype != jnp.bfloat16:
        a = a.astype(jnp.bfloat16)
    return jnp.dot(a, w_ref[...], preferred_element_type=jnp.float32)


def fullpipeline_kernel(
    x_ref,
    w_emb_ref, b_emb_ref,
    ln1_g_ref, ln1_b_ref,
    wq_ref, wk_ref, wv_ref, wo_ref,
    ln2_g_ref, ln2_b_ref,
    w_m1_ref, b_m1_ref, w_m2_ref, b_m2_ref,
    rec_w1_ref, rec_b1_ref, rec_w2_ref, rec_b2_ref,
    encoded_ref, recon_ref, sqerr_ref,
):
    TB, S, Cp = x_ref.shape
    D = w_emb_ref.shape[1]

    # ---------------- backbone: embed + 1 transformer block -----------------
    # (TB, S) folded into the MXU M dimension; x block read just for embed.
    h = _mm(x_ref[...].reshape(TB * S, Cp), w_emb_ref) + b_emb_ref[...]

    # pre-LN single-head self-attention, batched over TB (no batch mixing)
    hn = _layernorm(h, ln1_g_ref[...], ln1_b_ref[...])
    hn_b = hn.astype(jnp.bfloat16)                    # cast once, reuse for q/k/v
    q = _mm(hn_b, wq_ref).reshape(TB, S, D)
    k = _mm(hn_b, wk_ref).reshape(TB, S, D)
    v = _mm(hn_b, wv_ref).reshape(TB, S, D)
    scale = 1.0 / float(D) ** 0.5
    qs = (q * scale).astype(jnp.bfloat16)
    # contraction over d of BOTH operands -- no k.T materialization.
    # TODO(synk): for S >= ~512 replace the materialized (TB, S, S) f32 score
    # tile with flash-style online-softmax K/V streaming; at tiny S the extra
    # masked lanes are negligible.
    s = jnp.einsum("bqd,bkd->bqk", qs, k.astype(jnp.bfloat16),
                   preferred_element_type=jnp.float32)      # (TB, S, S) f32
    s = s - jnp.max(s, axis=-1, keepdims=True)
    p = jnp.exp(s)                                          # unnormalized
    denom = jnp.sum(p, axis=-1, keepdims=True)              # (TB, S, 1)
    attn = jnp.einsum("bqk,bkd->bqd", p.astype(jnp.bfloat16),
                      v.astype(jnp.bfloat16),
                      preferred_element_type=jnp.float32)
    # deferred softmax normalization: (S, D) multiply instead of (S, S)
    attn = attn * pl.reciprocal(denom, approx=True)
    h = h + _mm(attn.reshape(TB * S, D), wo_ref)

    # pre-LN MLP
    hn2 = _layernorm(h, ln2_g_ref[...], ln2_b_ref[...])
    m = _mm(hn2, w_m1_ref) + b_m1_ref[...]
    # TODO(synk): PyTorch nn.GELU default is exact erf; tanh approx used here.
    m = jax.nn.gelu(m, approximate=True)
    h = h + _mm(m, w_m2_ref) + b_m2_ref[...]

    h_b = h.astype(jnp.bfloat16)                      # one cast: output + rec head
    encoded_ref[...] = h_b.reshape(TB, S, D).astype(encoded_ref.dtype)

    # ---------------- RECHead: Linear(D,D) -> GELU -> Linear(D,Cp) ----------
    r = _mm(h_b, rec_w1_ref) + rec_b1_ref[...]
    r = jax.nn.gelu(r, approximate=True)
    recon = _mm(r, rec_w2_ref) + rec_b2_ref[...]              # (TB*S, Cp) f32
    recon_ref[...] = recon.reshape(TB, S, Cp).astype(recon_ref.dtype)

    # per-tile sum of squared error in f32 (padded channels are identically 0);
    # x block is re-read here so it is not live across the whole kernel body.
    diff = recon - x_ref[...].reshape(TB * S, Cp)
    sq = jnp.sum(diff * diff, axis=(0, 1), keepdims=True)     # (1, 1)
    sqerr_ref[...] = sq[None]                                 # (1, 1, 1)


def init_params(key, in_chans, embed_dim, mlp_hidden):
    def dense(k, shape, scale=0.02):
        return scale * jax.random.normal(k, shape, dtype=jnp.float32)

    keys = jax.random.split(key, 9)
    C, D, H = in_chans, embed_dim, mlp_hidden
    return {
        "w_emb": dense(keys[0], (C, D)),
        "b_emb": jnp.zeros((1, D), jnp.float32),
        "ln1_g": jnp.ones((1, D), jnp.float32),
        "ln1_b": jnp.zeros((1, D), jnp.float32),
        "wq": dense(keys[1], (D, D)),
        "wk": dense(keys[2], (D, D)),
        "wv": dense(keys[3], (D, D)),
        "wo": dense(keys[4], (D, D)),
        "ln2_g": jnp.ones((1, D), jnp.float32),
        "ln2_b": jnp.zeros((1, D), jnp.float32),
        "w_m1": dense(keys[5], (D, H)),
        "b_m1": jnp.zeros((1, H), jnp.float32),
        "w_m2": dense(keys[6], (H, D)),
        "b_m2": jnp.zeros((1, D), jnp.float32),
        "rec_w1": dense(keys[7], (D, D)),
        "rec_b1": jnp.zeros((1, D), jnp.float32),
        "rec_w2": dense(keys[8], (D, C)),
        "rec_b2": jnp.zeros((1, C), jnp.float32),
        # nn.Parameter(torch.tensor([1.0])) -- uncertainty scalar rec_w
        "rec_w": jnp.array(1.0, jnp.float32),
    }


_WEIGHT_ORDER = (
    "w_emb", "b_emb", "ln1_g", "ln1_b",
    "wq", "wk", "wv", "wo",
    "ln2_g", "ln2_b", "w_m1", "b_m1", "w_m2", "b_m2",
    "rec_w1", "rec_b1", "rec_w2", "rec_b2",
)


def _round_up(n, m):
    return ((n + m - 1) // m) * m


def _chip_info():
    """Returns (tensorcores_per_chip, usable VMEM budget per core, MXU M-row target)."""
    kind = ""
    try:
        kind = jax.devices()[0].device_kind.lower()
    except Exception:
        pass
    is_v7 = "v7" in kind
    # physical VMEM per TensorCore: ~64 MiB on v7x, ~128 MiB on v5e/v6e.
    vmem_phys = (64 << 20) if is_v7 else (128 << 20)
    try:
        info_bytes = int(pltpu.get_tpu_info().vmem_capacity_bytes)
        if info_bytes > 0:
            vmem_phys = min(vmem_phys, info_bytes)
    except Exception:
        pass
    # leave ~1/8 headroom for Mosaic internal scratch / semaphores:
    #   v7x -> ~56 MiB,  v5e/v6e -> ~112 MiB
    vmem_budget = (vmem_phys * 7) // 8
    num_tc = 2 if is_v7 else 1
    # v6e/v7x have 2x256^2 MXUs -> target >=512 M rows; v5e (4x128^2) -> 256.
    m_target = 256 if "v5" in kind else 512
    return num_tc, vmem_budget, m_target


def _per_elem_vmem_bytes(S, Cp, D, H):
    """Per-batch-element VMEM estimate: pipelined IO blocks + intermediates."""
    # IO blocks (x f32 double-buffered; encoded/recon bf16 double-buffered).
    io = 2 * (4 * S * Cp) + 2 * (2 * S * D) + 2 * (2 * S * Cp)
    # f32 intermediates: h/hn/q/k/v/attn/hn2/r (~8 x S*D), scores+probs
    # (2 x S*S), MLP hidden (S*H), recon (S*Cp); x1.5 for bf16 copies / slack.
    inter = 4 * (8 * S * D + 2 * S * S + S * H + S * Cp)
    return io + (3 * inter) // 2


def _pick_tb(B, S, per_elem_bytes, weight_bytes, vmem_budget, num_tc, m_target):
    """Batch elements per grid step: fill the MXU M dim, stay inside VMEM,
    and (only on multi-TensorCore chips) leave >= 2 grid steps to shard."""
    budget = max(vmem_budget - weight_bytes - (4 << 20), per_elem_bytes)
    tb_vmem = max(1, budget // per_elem_bytes)
    tb_mxu = max(1, -(-m_target // max(S, 1)))        # ceil(m_target / S)
    tb = int(min(B, tb_mxu, tb_vmem))
    if num_tc > 1 and B >= 2:
        tb = min(tb, B // 2)                          # >= 2 steps for megacore
    tb = max(1, tb)
    # round down to a divisor of B; on multi-core prefer an even step count
    best = 1
    for cand in range(tb, 0, -1):
        if B % cand:
            continue
        if num_tc > 1 and cand != 1 and (B % 2 == 0) and (B // cand) % 2:
            continue
        best = cand
        break
    return best


@jax.jit
def fullpipeline_sit_forward(x, params):
    """Returns (recloss, recon, x, encoded) exactly like the PyTorch forward."""
    B, S, C = x.shape
    D = params["w_emb"].shape[1]
    H = params["w_m1"].shape[1]

    # -------- lane-dense channel padding (zero weights => MSE unchanged) ----
    Cp = _round_up(C, 128)
    pad_c = Cp - C
    x_p = jnp.pad(x, ((0, 0), (0, 0), (0, pad_c))) if pad_c else x

    bf16 = jnp.bfloat16
    w = dict(params)
    # NOTE: padded rows/cols must stay zero so the MSE over padded channels is 0
    # (holds by construction: jnp.pad zero-fills before the bf16 cast).
    w["w_emb"] = jnp.pad(params["w_emb"], ((0, pad_c), (0, 0))).astype(bf16)
    w["rec_w2"] = jnp.pad(params["rec_w2"], ((0, 0), (0, pad_c))).astype(bf16)
    w["rec_b2"] = jnp.pad(params["rec_b2"], ((0, 0), (0, pad_c)))
    for name in ("wq", "wk", "wv", "wo", "w_m1", "w_m2", "rec_w1"):
        w[name] = params[name].astype(bf16)
    w_args = [w[kname] for kname in _WEIGHT_ORDER]

    def _nbytes(a):
        return a.size * a.dtype.itemsize

    num_tc, vmem_budget, m_target = _chip_info()
    weight_bytes = sum(_nbytes(a) for a in w_args)     # single-buffered weights
    per_elem = _per_elem_vmem_bytes(S, Cp, D, H)
    TB = _pick_tb(B, S, per_elem, weight_bytes, vmem_budget, num_tc, m_target)
    nb = B // TB

    def w_spec(arr):
        # whole weight resident in VMEM with a constant block index across the
        # grid: single-buffer it (double-buffering a constant block is waste).
        idx = lambda b, _nd=arr.ndim: (0,) * _nd
        try:
            return pl.BlockSpec(arr.shape, idx, pipeline_mode=pl.Buffered(1))
        except TypeError:   # older jax without pipeline_mode on BlockSpec
            return pl.BlockSpec(arr.shape, idx)

    in_specs = [pl.BlockSpec((TB, S, Cp), lambda b: (b, 0, 0))] + [
        w_spec(a) for a in w_args
    ]
    out_specs = (
        pl.BlockSpec((TB, S, D), lambda b: (b, 0, 0)),    # encoded (bf16)
        pl.BlockSpec((TB, S, Cp), lambda b: (b, 0, 0)),   # recon (bf16, padded C)
        pl.BlockSpec((1, 1, 1), lambda b: (b, 0, 0)),     # per-tile sq-err sum
    )
    out_shape = (
        jax.ShapeDtypeStruct((B, S, D), bf16),
        jax.ShapeDtypeStruct((B, S, Cp), bf16),
        jax.ShapeDtypeStruct((nb, 1, 1), jnp.float32),
    )

    # -------- advisory cost estimate for the XLA scheduler -------------------
    tok = B * S
    flops = 2 * tok * (Cp * D + 3 * D * D + 2 * S * D + D * D
                       + 2 * D * H + D * D + D * Cp)
    transcendentals = tok * (S + H + D)
    bytes_accessed = (_nbytes(x_p) + weight_bytes
                      + tok * D * 2 + tok * Cp * 2 + nb * 4)

    # -------- VMEM limit: IO blocks + intermediates + weights, gen-capped ----
    est = TB * per_elem + weight_bytes + (8 << 20)
    vmem_limit = int(min(vmem_budget, max(32 << 20, est)))

    encoded, recon_p, sqerr = pl.pallas_call(
        fullpipeline_kernel,
        grid=(nb,),
        in_specs=in_specs,
        out_specs=out_specs,
        out_shape=out_shape,
        compiler_params=pltpu.CompilerParams(
            dimension_semantics=("parallel",),   # batch steps are independent
            vmem_limit_bytes=vmem_limit),
        cost_estimate=pl.CostEstimate(
            flops=int(flops),
            transcendentals=int(transcendentals),
            bytes_accessed=int(bytes_accessed)),
    )(x_p, *w_args)

    recon = recon_p[:, :, :C] if pad_c else recon_p

    # F.mse_loss(recon, x) == mean over all (unpadded) elements, f32 accum.
    recloss = jnp.sum(sqerr) / float(B * S * C)

    # uncertaintyLoss (use_uncert == 1); the reference computes it but the
    # returned tuple carries plain recloss, matching the PyTorch forward.
    rec_w = params["rec_w"]
    _loss_rec_w = 0.5 / rec_w ** 2 * recloss + jnp.log(1.0 + rec_w ** 2)

    return recloss, recon, x, encoded


if __name__ == "__main__":
    B, S, C = 16, 8, 4           # batch, sequence tokens, in_chans
    D, H = 128, 256              # embed_dim, MLP hidden (lane-aligned)

    key = jax.random.PRNGKey(0)
    k_x, k_p = jax.random.split(key)
    x = jax.random.normal(k_x, (B, S, C), dtype=jnp.float32)
    params = init_params(k_p, C, D, H)

    recloss, recon, x_out, encoded = fullpipeline_sit_forward(x, params)
    jax.block_until_ready((recloss, recon, x_out, encoded))

    assert recon.shape == (B, S, C)
    assert encoded.shape == (B, S, D)
    assert x_out.shape == (B, S, C)
    assert recloss.shape == ()
    assert bool(jnp.isfinite(recloss))
    print("KERNEL_OK")
</pallas_src>

<mosaic_0001>
module attributes {stable_mosaic.version = 11 : i64} {
  func.func @fullpipeline_kernel(%arg0: i32, %arg1: memref<16x8x128xf32, #tpu.memory_space<vmem>>, %arg2: memref<128x128xbf16, #tpu.memory_space<vmem>>, %arg3: memref<1x128xf32, #tpu.memory_space<vmem>>, %arg4: memref<1x128xf32, #tpu.memory_space<vmem>>, %arg5: memref<1x128xf32, #tpu.memory_space<vmem>>, %arg6: memref<128x128xbf16, #tpu.memory_space<vmem>>, %arg7: memref<128x128xbf16, #tpu.memory_space<vmem>>, %arg8: memref<128x128xbf16, #tpu.memory_space<vmem>>, %arg9: memref<128x128xbf16, #tpu.memory_space<vmem>>, %arg10: memref<1x128xf32, #tpu.memory_space<vmem>>, %arg11: memref<1x128xf32, #tpu.memory_space<vmem>>, %arg12: memref<128x256xbf16, #tpu.memory_space<vmem>>, %arg13: memref<1x256xf32, #tpu.memory_space<vmem>>, %arg14: memref<256x128xbf16, #tpu.memory_space<vmem>>, %arg15: memref<1x128xf32, #tpu.memory_space<vmem>>, %arg16: memref<128x128xbf16, #tpu.memory_space<vmem>>, %arg17: memref<1x128xf32, #tpu.memory_space<vmem>>, %arg18: memref<128x128xbf16, #tpu.memory_space<vmem>>, %arg19: memref<1x128xf32, #tpu.memory_space<vmem>>, %arg20: memref<16x8x128xbf16, #tpu.memory_space<vmem>>, %arg21: memref<16x8x128xbf16, #tpu.memory_space<vmem>>, %arg22: memref<1x1x1xf32, #tpu.memory_space<vmem>>) attributes {dimension_semantics = [#tpu.dimension_semantics<parallel>], iteration_bounds = array<i64: 1>, scalar_prefetch = 0 : i64, scratch_operands = 0 : i64, tpu.core_type = #tpu.core_type<tc>, window_params = [{transform_indices = @transform_0, window_bounds = array<i64: 16, 8, 128>}, {pipeline_mode = #tpu.pipeline_mode<synchronous>, transform_indices = @transform_1, window_bounds = array<i64: 128, 128>}, {pipeline_mode = #tpu.pipeline_mode<synchronous>, transform_indices = @transform_2, window_bounds = array<i64: 1, 128>}, {pipeline_mode = #tpu.pipeline_mode<synchronous>, transform_indices = @transform_3, window_bounds = array<i64: 1, 128>}, {pipeline_mode = #tpu.pipeline_mode<synchronous>, transform_indices = @transform_4, window_bounds = array<i64: 1, 128>}, {pipeline_mode = #tpu.pipeline_mode<synchronous>, transform_indices = @transform_5, window_bounds = array<i64: 128, 128>}, {pipeline_mode = #tpu.pipeline_mode<synchronous>, transform_indices = @transform_6, window_bounds = array<i64: 128, 128>}, {pipeline_mode = #tpu.pipeline_mode<synchronous>, transform_indices = @transform_7, window_bounds = array<i64: 128, 128>}, {pipeline_mode = #tpu.pipeline_mode<synchronous>, transform_indices = @transform_8, window_bounds = array<i64: 128, 128>}, {pipeline_mode = #tpu.pipeline_mode<synchronous>, transform_indices = @transform_9, window_bounds = array<i64: 1, 128>}, {pipeline_mode = #tpu.pipeline_mode<synchronous>, transform_indices = @transform_10, window_bounds = array<i64: 1, 128>}, {pipeline_mode = #tpu.pipeline_mode<synchronous>, transform_indices = @transform_11, window_bounds = array<i64: 128, 256>}, {pipeline_mode = #tpu.pipeline_mode<synchronous>, transform_indices = @transform_12, window_bounds = array<i64: 1, 256>}, {pipeline_mode = #tpu.pipeline_mode<synchronous>, transform_indices = @transform_13, window_bounds = array<i64: 256, 128>}, {pipeline_mode = #tpu.pipeline_mode<synchronous>, transform_indices = @transform_14, window_bounds = array<i64: 1, 128>}, {pipeline_mode = #tpu.pipeline_mode<synchronous>, transform_indices = @transform_15, window_bounds = array<i64: 128, 128>}, {pipeline_mode = #tpu.pipeline_mode<synchronous>, transform_indices = @transform_16, window_bounds = array<i64: 1, 128>}, {pipeline_mode = #tpu.pipeline_mode<synchronous>, transform_indices = @transform_17, window_bounds = array<i64: 128, 128>}, {pipeline_mode = #tpu.pipeline_mode<synchronous>, transform_indices = @transform_18, window_bounds = array<i64: 1, 128>}, {transform_indices = @transform_19, window_bounds = array<i64: 16, 8, 128>}, {transform_indices = @transform_20, window_bounds = array<i64: 16, 8, 128>}, {transform_indices = @transform_21, window_bounds = array<i64: 1, 1, 1>}]} {
    %c0 = arith.constant 0 : index
    %c0_0 = arith.constant 0 : index
    %c0_1 = arith.constant 0 : index
    %0 = vector.load %arg1[%c0, %c0_0, %c0_1] : memref<16x8x128xf32, #tpu.memory_space<vmem>>, vector<16x8x128xf32>
    %1 = vector.shape_cast %0 : vector<16x8x128xf32> to vector<128x128xf32>
    %2 = arith.truncf %1 : vector<128x128xf32> to vector<128x128xbf16>
    %c0_2 = arith.constant 0 : index
    %c0_3 = arith.constant 0 : index
    %3 = vector.load %arg2[%c0_2, %c0_3] : memref<128x128xbf16, #tpu.memory_space<vmem>>, vector<128x128xbf16>
    %cst = arith.constant dense<0.000000e+00> : vector<128x128xf32>
    %4 = tpu.matmul %2, %3, %cst {dimension_numbers = #tpu.dot_dimension_numbers<[1], [0], [0], [1], [0, 0, 1, 1], [], []>} : vector<128x128xbf16>, vector<128x128xbf16>, vector<128x128xf32> -> vector<128x128xf32>
    %c0_4 = arith.constant 0 : index
    %c0_5 = arith.constant 0 : index
    %5 = vector.load %arg3[%c0_4, %c0_5] : memref<1x128xf32, #tpu.memory_space<vmem>>, vector<1x128xf32>
    %6 = vector.broadcast %5 : vector<1x128xf32> to vector<128x128xf32>
    %7 = arith.addf %4, %6 : vector<128x128xf32>
    %c0_6 = arith.constant 0 : index
    %c0_7 = arith.constant 0 : index
    %8 = vector.load %arg4[%c0_6, %c0_7] : memref<1x128xf32, #tpu.memory_space<vmem>>, vector<1x128xf32>
    %c0_8 = arith.constant 0 : index
    %c0_9 = arith.constant 0 : index
    %9 = vector.load %arg5[%c0_8, %c0_9] : memref<1x128xf32, #tpu.memory_space<vmem>>, vector<1x128xf32>
    %cst_10 = arith.constant dense<0.000000e+00> : vector<128xf32>
    %10 = vector.multi_reduction <add>, %7, %cst_10 [1] : vector<128x128xf32> to vector<128xf32>
    %11 = vector.shape_cast %10 : vector<128xf32> to vector<128x1xf32>
    %cst_11 = arith.constant 1.280000e+02 : f32
    %12 = vector.broadcast %cst_11 : f32 to vector<128x1xf32>
    %13 = arith.divf %11, %12 : vector<128x1xf32>
    %14 = vector.broadcast %13 : vector<128x1xf32> to vector<128x128xf32>
    %15 = arith.subf %7, %14 : vector<128x128xf32>
    %16 = arith.mulf %15, %15 : vector<128x128xf32>
    %cst_12 = arith.constant dense<0.000000e+00> : vector<128xf32>
    %17 = vector.multi_reduction <add>, %16, %cst_12 [1] : vector<128x128xf32> to vector<128xf32>
    %18 = vector.shape_cast %17 : vector<128xf32> to vector<128x1xf32>
    %cst_13 = arith.constant 1.280000e+02 : f32
    %19 = vector.broadcast %cst_13 : f32 to vector<128x1xf32>
    %20 = arith.divf %18, %19 : vector<128x1xf32>
    %21 = vector.broadcast %13 : vector<128x1xf32> to vector<128x128xf32>
    %22 = arith.subf %7, %21 : vector<128x128xf32>
    %cst_14 = arith.constant 9.99999997E-7 : f32
    %23 = vector.broadcast %cst_14 : f32 to vector<128x1xf32>
    %24 = arith.addf %20, %23 : vector<128x1xf32>
    %25 = math.rsqrt %24 : vector<128x1xf32>
    %26 = vector.broadcast %25 : vector<128x1xf32> to vector<128x128xf32>
    %27 = arith.mulf %22, %26 : vector<128x128xf32>
    %28 = vector.broadcast %8 : vector<1x128xf32> to vector<128x128xf32>
    %29 = arith.mulf %27, %28 : vector<128x128xf32>
    %30 = vector.broadcast %9 : vector<1x128xf32> to vector<128x128xf32>
    %31 = arith.addf %29, %30 : vector<128x128xf32>
    %32 = arith.truncf %31 : vector<128x128xf32> to vector<128x128xbf16>
    %c0_15 = arith.constant 0 : index
    %c0_16 = arith.constant 0 : index
    %33 = vector.load %arg6[%c0_15, %c0_16] : memref<128x128xbf16, #tpu.memory_space<vmem>>, vector<128x128xbf16>
    %cst_17 = arith.constant dense<0.000000e+00> : vector<128x128xf32>
    %34 = tpu.matmul %32, %33, %cst_17 {dimension_numbers = #tpu.dot_dimension_numbers<[1], [0], [0], [1], [0, 0, 1, 1], [], []>} : vector<128x128xbf16>, vector<128x128xbf16>, vector<128x128xf32> -> vector<128x128xf32>
    %35 = vector.shape_cast %34 : vector<128x128xf32> to vector<16x8x128xf32>
    %c0_18 = arith.constant 0 : index
    %c0_19 = arith.constant 0 : index
    %36 = vector.load %arg7[%c0_18, %c0_19] : memref<128x128xbf16, #tpu.memory_space<vmem>>, vector<128x128xbf16>
    %cst_20 = arith.constant dense<0.000000e+00> : vector<128x128xf32>
    %37 = tpu.matmul %32, %36, %cst_20 {dimension_numbers = #tpu.dot_dimension_numbers<[1], [0], [0], [1], [0, 0, 1, 1], [], []>} : vector<128x128xbf16>, vector<128x128xbf16>, vector<128x128xf32> -> vector<128x128xf32>
    %38 = vector.shape_cast %37 : vector<128x128xf32> to vector<16x8x128xf32>
    %c0_21 = arith.constant 0 : index
    %c0_22 = arith.constant 0 : index
    %39 = vector.load %arg8[%c0_21, %c0_22] : memref<128x128xbf16, #tpu.memory_space<vmem>>, vector<128x128xbf16>
    %cst_23 = arith.constant dense<0.000000e+00> : vector<128x128xf32>
    %40 = tpu.matmul %32, %39, %cst_23 {dimension_numbers = #tpu.dot_dimension_numbers<[1], [0], [0], [1], [0, 0, 1, 1], [], []>} : vector<128x128xbf16>, vector<128x128xbf16>, vector<128x128xf32> -> vector<128x128xf32>
    %41 = vector.shape_cast %40 : vector<128x128xf32> to vector<16x8x128xf32>
    %cst_24 = arith.constant 0.0883883461 : f32
    %42 = vector.broadcast %cst_24 : f32 to vector<16x8x128xf32>
    %43 = arith.mulf %35, %42 : vector<16x8x128xf32>
    %44 = arith.truncf %43 : vector<16x8x128xf32> to vector<16x8x128xbf16>
    %45 = arith.truncf %38 : vector<16x8x128xf32> to vector<16x8x128xbf16>
    "tpu.trace_start"() <{level = 10 : i32, message = "bqd,bkd->bqk"}> : () -> ()
    %cst_25 = arith.constant dense<0.000000e+00> : vector<16x8x8xf32>
    %46 = tpu.matmul %44, %45, %cst_25 {dimension_numbers = #tpu.dot_dimension_numbers<[2], [2], [1], [1], [0, 0, 0, 1, 1, 1], [0], [0]>} : vector<16x8x128xbf16>, vector<16x8x128xbf16>, vector<16x8x8xf32> -> vector<16x8x8xf32>
    "tpu.trace_stop"() : () -> ()
    %cst_26 = arith.constant dense<0xFF800000> : vector<16x8xf32>
    %47 = vector.multi_reduction <maximumf>, %46, %cst_26 [2] : vector<16x8x8xf32> to vector<16x8xf32>
    %48 = vector.shape_cast %47 : vector<16x8xf32> to vector<16x8x1xf32>
    %49 = vector.broadcast %48 : vector<16x8x1xf32> to vector<16x8x8xf32>
    %50 = arith.subf %46, %49 : vector<16x8x8xf32>
    %51 = math.exp %50 : vector<16x8x8xf32>
    %cst_27 = arith.constant dense<0.000000e+00> : vector<16x8xf32>
    %52 = vector.multi_reduction <add>, %51, %cst_27 [2] : vector<16x8x8xf32> to vector<16x8xf32>
    %53 = vector.shape_cast %52 : vector<16x8xf32> to vector<16x8x1xf32>
    %54 = arith.truncf %51 : vector<16x8x8xf32> to vector<16x8x8xbf16>
    %55 = arith.truncf %41 : vector<16x8x128xf32> to vector<16x8x128xbf16>
    "tpu.trace_start"() <{level = 10 : i32, message = "bqk,bkd->bqd"}> : () -> ()
    %cst_28 = arith.constant dense<0.000000e+00> : vector<16x8x128xf32>
    %56 = tpu.matmul %54, %55, %cst_28 {dimension_numbers = #tpu.dot_dimension_numbers<[2], [1], [1], [2], [0, 0, 0, 1, 1, 2], [0], [0]>} : vector<16x8x8xbf16>, vector<16x8x128xbf16>, vector<16x8x128xf32> -> vector<16x8x128xf32>
    "tpu.trace_stop"() : () -> ()
    %57 = tpu.reciprocal %53 {approx = true} : vector<16x8x1xf32> -> vector<16x8x1xf32>
    %58 = vector.broadcast %57 : vector<16x8x1xf32> to vector<16x8x128xf32>
    %59 = arith.mulf %56, %58 : vector<16x8x128xf32>
    %60 = vector.shape_cast %59 : vector<16x8x128xf32> to vector<128x128xf32>
    %61 = arith.truncf %60 : vector<128x128xf32> to vector<128x128xbf16>
    %c0_29 = arith.constant 0 : index
    %c0_30 = arith.constant 0 : index
    %62 = vector.load %arg9[%c0_29, %c0_30] : memref<128x128xbf16, #tpu.memory_space<vmem>>, vector<128x128xbf16>
    %cst_31 = arith.constant dense<0.000000e+00> : vector<128x128xf32>
    %63 = tpu.matmul %61, %62, %cst_31 {dimension_numbers = #tpu.dot_dimension_numbers<[1], [0], [0], [1], [0, 0, 1, 1], [], []>} : vector<128x128xbf16>, vector<128x128xbf16>, vector<128x128xf32> -> vector<128x128xf32>
    %64 = arith.addf %7, %63 : vector<128x128xf32>
    %c0_32 = arith.constant 0 : index
    %c0_33 = arith.constant 0 : index
    %65 = vector.load %arg10[%c0_32, %c0_33] : memref<1x128xf32, #tpu.memory_space<vmem>>, vector<1x128xf32>
    %c0_34 = arith.constant 0 : index
    %c0_35 = arith.constant 0 : index
    %66 = vector.load %arg11[%c0_34, %c0_35] : memref<1x128xf32, #tpu.memory_space<vmem>>, vector<1x128xf32>
    %cst_36 = arith.constant dense<0.000000e+00> : vector<128xf32>
    %67 = vector.multi_reduction <add>, %64, %cst_36 [1] : vector<128x128xf32> to vector<128xf32>
    %68 = vector.shape_cast %67 : vector<128xf32> to vector<128x1xf32>
    %cst_37 = arith.constant 1.280000e+02 : f32
    %69 = vector.broadcast %cst_37 : f32 to vector<128x1xf32>
    %70 = arith.divf %68, %69 : vector<128x1xf32>
    %71 = vector.broadcast %70 : vector<128x1xf32> to vector<128x128xf32>
    %72 = arith.subf %64, %71 : vector<128x128xf32>
    %73 = arith.mulf %72, %72 : vector<128x128xf32>
    %cst_38 = arith.constant dense<0.000000e+00> : vector<128xf32>
    %74 = vector.multi_reduction <add>, %73, %cst_38 [1] : vector<128x128xf32> to vector<128xf32>
    %75 = vector.shape_cast %74 : vector<128xf32> to vector<128x1xf32>
    %cst_39 = arith.constant 1.280000e+02 : f32
    %76 = vector.broadcast %cst_39 : f32 to vector<128x1xf32>
    %77 = arith.divf %75, %76 : vector<128x1xf32>
    %78 = vector.broadcast %70 : vector<128x1xf32> to vector<128x128xf32>
    %79 = arith.subf %64, %78 : vector<128x128xf32>
    %cst_40 = arith.constant 9.99999997E-7 : f32
    %80 = vector.broadcast %cst_40 : f32 to vector<128x1xf32>
    %81 = arith.addf %77, %80 : vector<128x1xf32>
    %82 = math.rsqrt %81 : vector<128x1xf32>
    %83 = vector.broadcast %82 : vector<128x1xf32> to vector<128x128xf32>
    %84 = arith.mulf %79, %83 : vector<128x128xf32>
    %85 = vector.broadcast %65 : vector<1x128xf32> to vector<128x128xf32>
    %86 = arith.mulf %84, %85 : vector<128x128xf32>
    %87 = vector.broadcast %66 : vector<1x128xf32> to vector<128x128xf32>
    %88 = arith.addf %86, %87 : vector<128x128xf32>
    %89 = arith.truncf %88 : vector<128x128xf32> to vector<128x128xbf16>
    %c0_41 = arith.constant 0 : index
    %c0_42 = arith.constant 0 : index
    %90 = vector.load %arg12[%c0_41, %c0_42] : memref<128x256xbf16, #tpu.memory_space<vmem>>, vector<128x256xbf16>
    %cst_43 = arith.constant dense<0.000000e+00> : vector<128x256xf32>
    %91 = tpu.matmul %89, %90, %cst_43 {dimension_numbers = #tpu.dot_dimension_numbers<[1], [0], [0], [1], [0, 0, 1, 1], [], []>} : vector<128x128xbf16>, vector<128x256xbf16>, vector<128x256xf32> -> vector<128x256xf32>
    %c0_44 = arith.constant 0 : index
    %c0_45 = arith.constant 0 : index
    %92 = vector.load %arg13[%c0_44, %c0_45] : memref<1x256xf32, #tpu.memory_space<vmem>>, vector<1x256xf32>
    %93 = vector.broadcast %92 : vector<1x256xf32> to vector<128x256xf32>
    %94 = arith.addf %91, %93 : vector<128x256xf32>
    %95 = arith.mulf %94, %94 : vector<128x256xf32>
    %96 = arith.mulf %94, %95 : vector<128x256xf32>
    %cst_46 = arith.constant 4.471500e-02 : f32
    %97 = vector.broadcast %cst_46 : f32 to vector<128x256xf32>
    %98 = arith.mulf %97, %96 : vector<128x256xf32>
    %99 = arith.addf %94, %98 : vector<128x256xf32>
    %cst_47 = arith.constant 0.797884583 : f32
    %100 = vector.broadcast %cst_47 : f32 to vector<128x256xf32>
    %101 = arith.mulf %100, %99 : vector<128x256xf32>
    %102 = math.tanh %101 : vector<128x256xf32>
    %cst_48 = arith.constant 1.000000e+00 : f32
    %103 = vector.broadcast %cst_48 : f32 to vector<128x256xf32>
    %104 = arith.addf %103, %102 : vector<128x256xf32>
    %cst_49 = arith.constant 5.000000e-01 : f32
    %105 = vector.broadcast %cst_49 : f32 to vector<128x256xf32>
    %106 = arith.mulf %105, %104 : vector<128x256xf32>
    %107 = arith.mulf %94, %106 : vector<128x256xf32>
    %108 = arith.truncf %107 : vector<128x256xf32> to vector<128x256xbf16>
    %c0_50 = arith.constant 0 : index
    %c0_51 = arith.constant 0 : index
    %109 = vector.load %arg14[%c0_50, %c0_51] : memref<256x128xbf16, #tpu.memory_space<vmem>>, vector<256x128xbf16>
    %cst_52 = arith.constant dense<0.000000e+00> : vector<128x128xf32>
    %110 = tpu.matmul %108, %109, %cst_52 {dimension_numbers = #tpu.dot_dimension_numbers<[1], [0], [0], [1], [0, 0, 1, 1], [], []>} : vector<128x256xbf16>, vector<256x128xbf16>, vector<128x128xf32> -> vector<128x128xf32>
    %111 = arith.addf %64, %110 : vector<128x128xf32>
    %c0_53 = arith.constant 0 : index
    %c0_54 = arith.constant 0 : index
    %112 = vector.load %arg15[%c0_53, %c0_54] : memref<1x128xf32, #tpu.memory_space<vmem>>, vector<1x128xf32>
    %113 = vector.broadcast %112 : vector<1x128xf32> to vector<128x128xf32>
    %114 = arith.addf %111, %113 : vector<128x128xf32>
    %115 = arith.truncf %114 : vector<128x128xf32> to vector<128x128xbf16>
    %116 = vector.shape_cast %115 : vector<128x128xbf16> to vector<16x8x128xbf16>
    %c0_55 = arith.constant 0 : index
    %c0_56 = arith.constant 0 : index
    %c0_57 = arith.constant 0 : index
    %117 = vector.load %arg20[%c0_55, %c0_56, %c0_57] : memref<16x8x128xbf16, #tpu.memory_space<vmem>>, vector<16x8x128xbf16>
    tpu.vector_store %arg20[%c0_55, %c0_56, %c0_57], %116 {strides = array<i32>} : memref<16x8x128xbf16, #tpu.memory_space<vmem>>, vector<16x8x128xbf16>,
    %c0_58 = arith.constant 0 : index
    %c0_59 = arith.constant 0 : index
    %118 = vector.load %arg16[%c0_58, %c0_59] : memref<128x128xbf16, #tpu.memory_space<vmem>>, vector<128x128xbf16>
    %cst_60 = arith.constant dense<0.000000e+00> : vector<128x128xf32>
    %119 = tpu.matmul %115, %118, %cst_60 {dimension_numbers = #tpu.dot_dimension_numbers<[1], [0], [0], [1], [0, 0, 1, 1], [], []>} : vector<128x128xbf16>, vector<128x128xbf16>, vector<128x128xf32> -> vector<128x128xf32>
    %c0_61 = arith.constant 0 : index
    %c0_62 = arith.constant 0 : index
    %120 = vector.load %arg17[%c0_61, %c0_62] : memref<1x128xf32, #tpu.memory_space<vmem>>, vector<1x128xf32>
    %121 = vector.broadcast %120 : vector<1x128xf32> to vector<128x128xf32>
    %122 = arith.addf %119, %121 : vector<128x128xf32>
    %123 = arith.mulf %122, %122 : vector<128x128xf32>
    %124 = arith.mulf %122, %123 : vector<128x128xf32>
    %cst_63 = arith.constant 4.471500e-02 : f32
    %125 = vector.broadcast %cst_63 : f32 to vector<128x128xf32>
    %126 = arith.mulf %125, %124 : vector<128x128xf32>
    %127 = arith.addf %122, %126 : vector<128x128xf32>
    %cst_64 = arith.constant 0.797884583 : f32
    %128 = vector.broadcast %cst_64 : f32 to vector<128x128xf32>
    %129 = arith.mulf %128, %127 : vector<128x128xf32>
    %130 = math.tanh %129 : vector<128x128xf32>
    %cst_65 = arith.constant 1.000000e+00 : f32
    %131 = vector.broadcast %cst_65 : f32 to vector<128x128xf32>
    %132 = arith.addf %131, %130 : vector<128x128xf32>
    %cst_66 = arith.constant 5.000000e-01 : f32
    %133 = vector.broadcast %cst_66 : f32 to vector<128x128xf32>
    %134 = arith.mulf %133, %132 : vector<128x128xf32>
    %135 = arith.mulf %122, %134 : vector<128x128xf32>
    %136 = arith.truncf %135 : vector<128x128xf32> to vector<128x128xbf16>
    %c0_67 = arith.constant 0 : index
    %c0_68 = arith.constant 0 : index
    %137 = vector.load %arg18[%c0_67, %c0_68] : memref<128x128xbf16, #tpu.memory_space<vmem>>, vector<128x128xbf16>
    %cst_69 = arith.constant dense<0.000000e+00> : vector<128x128xf32>
    %138 = tpu.matmul %136, %137, %cst_69 {dimension_numbers = #tpu.dot_dimension_numbers<[1], [0], [0], [1], [0, 0, 1, 1], [], []>} : vector<128x128xbf16>, vector<128x128xbf16>, vector<128x128xf32> -> vector<128x128xf32>
    %c0_70 = arith.constant 0 : index
    %c0_71 = arith.constant 0 : index
    %139 = vector.load %arg19[%c0_70, %c0_71] : memref<1x128xf32, #tpu.memory_space<vmem>>, vector<1x128xf32>
    %140 = vector.broadcast %139 : vector<1x128xf32> to vector<128x128xf32>
    %141 = arith.addf %138, %140 : vector<128x128xf32>
    %142 = vector.shape_cast %141 : vector<128x128xf32> to vector<16x8x128xf32>
    %143 = arith.truncf %142 : vector<16x8x128xf32> to vector<16x8x128xbf16>
    %c0_72 = arith.constant 0 : index
    %c0_73 = arith.constant 0 : index
    %c0_74 = arith.constant 0 : index
    %144 = vector.load %arg21[%c0_72, %c0_73, %c0_74] : memref<16x8x128xbf16, #tpu.memory_space<vmem>>, vector<16x8x128xbf16>
    tpu.vector_store %arg21[%c0_72, %c0_73, %c0_74], %143 {strides = array<i32>} : memref<16x8x128xbf16, #tpu.memory_space<vmem>>, vector<16x8x128xbf16>,
    %c0_75 = arith.constant 0 : index
    %c0_76 = arith.constant 0 : index
    %c0_77 = arith.constant 0 : index
    %145 = vector.load %arg1[%c0_75, %c0_76, %c0_77] : memref<16x8x128xf32, #tpu.memory_space<vmem>>, vector<16x8x128xf32>
    %146 = vector.shape_cast %145 : vector<16x8x128xf32> to vector<128x128xf32>
    %147 = arith.subf %141, %146 : vector<128x128xf32>
    %148 = arith.mulf %147, %147 : vector<128x128xf32>
    %149 = vector.shape_cast %148 : vector<128x128xf32> to vector<1x128x128xf32>
    %cst_78 = arith.constant dense<0.000000e+00> : vector<1xf32>
    %150 = vector.multi_reduction <add>, %149, %cst_78 [1, 2] : vector<1x128x128xf32> to vector<1xf32>
    %151 = vector.shape_cast %150 : vector<1xf32> to vector<1x1x1xf32>
    %152 = vector.extract %151[0, 0, 0] : f32 from vector<1x1x1xf32>
    %153 = vector.broadcast %152 : f32 to vector<1x1xf32>
    %154 = vector.shape_cast %153 : vector<1x1xf32> to vector<1x1x1xf32>
    %c0_79 = arith.constant 0 : index
    %c0_80 = arith.constant 0 : index
    %c0_81 = arith.constant 0 : index
    %155 = vector.load %arg22[%c0_79, %c0_80, %c0_81] : memref<1x1x1xf32, #tpu.memory_space<vmem>>, vector<1x1x1xf32>
    tpu.vector_store %arg22[%c0_79, %c0_80, %c0_81], %154 {strides = array<i32>} : memref<1x1x1xf32, #tpu.memory_space<vmem>>, vector<1x1x1xf32>,
    return
  }
  func.func @transform_0(%arg0: i32) -> (i32, i32, i32) {
    %c0_i32 = arith.constant 0 : i32
    %c0_i32_0 = arith.constant 0 : i32
    %c0_i32_1 = arith.constant 0 : i32
    return %arg0, %c0_i32, %c0_i32_0 : i32, i32, i32
  }
  func.func @transform_1(%arg0: i32) -> (i32, i32) {
    %c0_i32 = arith.constant 0 : i32
    %c0_i32_0 = arith.constant 0 : i32
    %c0_i32_1 = arith.constant 0 : i32
    return %c0_i32, %c0_i32_0 : i32, i32
  }
  func.func @transform_2(%arg0: i32) -> (i32, i32) {
    %c0_i32 = arith.constant 0 : i32
    %c0_i32_0 = arith.constant 0 : i32
    %c0_i32_1 = arith.constant 0 : i32
    return %c0_i32, %c0_i32_0 : i32, i32
  }
  func.func @transform_3(%arg0: i32) -> (i32, i32) {
    %c0_i32 = arith.constant 0 : i32
    %c0_i32_0 = arith.constant 0 : i32
    %c0_i32_1 = arith.constant 0 : i32
    return %c0_i32, %c0_i32_0 : i32, i32
  }
  func.func @transform_4(%arg0: i32) -> (i32, i32) {
    %c0_i32 = arith.constant 0 : i32
    %c0_i32_0 = arith.constant 0 : i32
    %c0_i32_1 = arith.constant 0 : i32
    return %c0_i32, %c0_i32_0 : i32, i32
  }
  func.func @transform_5(%arg0: i32) -> (i32, i32) {
    %c0_i32 = arith.constant 0 : i32
    %c0_i32_0 = arith.constant 0 : i32
    %c0_i32_1 = arith.constant 0 : i32
    return %c0_i32, %c0_i32_0 : i32, i32
  }
  func.func @transform_6(%arg0: i32) -> (i32, i32) {
    %c0_i32 = arith.constant 0 : i32
    %c0_i32_0 = arith.constant 0 : i32
    %c0_i32_1 = arith.constant 0 : i32
    return %c0_i32, %c0_i32_0 : i32, i32
  }
  func.func @transform_7(%arg0: i32) -> (i32, i32) {
    %c0_i32 = arith.constant 0 : i32
    %c0_i32_0 = arith.constant 0 : i32
    %c0_i32_1 = arith.constant 0 : i32
    return %c0_i32, %c0_i32_0 : i32, i32
  }
  func.func @transform_8(%arg0: i32) -> (i32, i32) {
    %c0_i32 = arith.constant 0 : i32
    %c0_i32_0 = arith.constant 0 : i32
    %c0_i32_1 = arith.constant 0 : i32
    return %c0_i32, %c0_i32_0 : i32, i32
  }
  func.func @transform_9(%arg0: i32) -> (i32, i32) {
    %c0_i32 = arith.constant 0 : i32
    %c0_i32_0 = arith.constant 0 : i32
    %c0_i32_1 = arith.constant 0 : i32
    return %c0_i32, %c0_i32_0 : i32, i32
  }
  func.func @transform_10(%arg0: i32) -> (i32, i32) {
    %c0_i32 = arith.constant 0 : i32
    %c0_i32_0 = arith.constant 0 : i32
    %c0_i32_1 = arith.constant 0 : i32
    return %c0_i32, %c0_i32_0 : i32, i32
  }
  func.func @transform_11(%arg0: i32) -> (i32, i32) {
    %c0_i32 = arith.constant 0 : i32
    %c0_i32_0 = arith.constant 0 : i32
    %c0_i32_1 = arith.constant 0 : i32
    return %c0_i32, %c0_i32_0 : i32, i32
  }
  func.func @transform_12(%arg0: i32) -> (i32, i32) {
    %c0_i32 = arith.constant 0 : i32
    %c0_i32_0 = arith.constant 0 : i32
    %c0_i32_1 = arith.constant 0 : i32
    return %c0_i32, %c0_i32_0 : i32, i32
  }
  func.func @transform_13(%arg0: i32) -> (i32, i32) {
    %c0_i32 = arith.constant 0 : i32
    %c0_i32_0 = arith.constant 0 : i32
    %c0_i32_1 = arith.constant 0 : i32
    return %c0_i32, %c0_i32_0 : i32, i32
  }
  func.func @transform_14(%arg0: i32) -> (i32, i32) {
    %c0_i32 = arith.constant 0 : i32
    %c0_i32_0 = arith.constant 0 : i32
    %c0_i32_1 = arith.constant 0 : i32
    return %c0_i32, %c0_i32_0 : i32, i32
  }
  func.func @transform_15(%arg0: i32) -> (i32, i32) {
    %c0_i32 = arith.constant 0 : i32
    %c0_i32_0 = arith.constant 0 : i32
    %c0_i32_1 = arith.constant 0 : i32
    return %c0_i32, %c0_i32_0 : i32, i32
  }
  func.func @transform_16(%arg0: i32) -> (i32, i32) {
    %c0_i32 = arith.constant 0 : i32
    %c0_i32_0 = arith.constant 0 : i32
    %c0_i32_1 = arith.constant 0 : i32
    return %c0_i32, %c0_i32_0 : i32, i32
  }
  func.func @transform_17(%arg0: i32) -> (i32, i32) {
    %c0_i32 = arith.constant 0 : i32
    %c0_i32_0 = arith.constant 0 : i32
    %c0_i32_1 = arith.constant 0 : i32
    return %c0_i32, %c0_i32_0 : i32, i32
  }
  func.func @transform_18(%arg0: i32) -> (i32, i32) {
    %c0_i32 = arith.constant 0 : i32
    %c0_i32_0 = arith.constant 0 : i32
    %c0_i32_1 = arith.constant 0 : i32
    return %c0_i32, %c0_i32_0 : i32, i32
  }
  func.func @transform_19(%arg0: i32) -> (i32, i32, i32) {
    %c0_i32 = arith.constant 0 : i32
    %c0_i32_0 = arith.constant 0 : i32
    %c0_i32_1 = arith.constant 0 : i32
    return %arg0, %c0_i32, %c0_i32_0 : i32, i32, i32
  }
  func.func @transform_20(%arg0: i32) -> (i32, i32, i32) {
    %c0_i32 = arith.constant 0 : i32
    %c0_i32_0 = arith.constant 0 : i32
    %c0_i32_1 = arith.constant 0 : i32
    return %arg0, %c0_i32, %c0_i32_0 : i32, i32, i32
  }
  func.func @transform_21(%arg0: i32) -> (i32, i32, i32) {
    %c0_i32 = arith.constant 0 : i32
    %c0_i32_0 = arith.constant 0 : i32
    %c0_i32_1 = arith.constant 0 : i32
    return %arg0, %c0_i32, %c0_i32_0 : i32, i32, i32
  }
}

</mosaic_0001>

<llo_original>
// kernel: fullpipeline_sit_forward.1
$region0: #{fullpipeline_sit_forward.1}
  #allocation0 [shape = 'u32[]', space=smem, size = 0x4, offset = 0x4, fixed_abs, tag = 'smem constant byte address 0x4 - core index']
  #allocation1 [shape = 'u32[72,128]{1,0:T(1,128)}', space=vmem, size = 0x9000, scoped, tag = 'internal scratch']
  %s0 = inlined_call_operand.vmem [shape: f32[16,8,128], index: 0, kind: input, shape index: {}]
  %s1 = inlined_call_operand.vmem [shape: bf16[128,128], index: 1, kind: input, shape index: {}]
  %s2 = inlined_call_operand.vmem [shape: f32[1,128], index: 2, kind: input, shape index: {}]
  %s3 = inlined_call_operand.vmem [shape: f32[1,128], index: 3, kind: input, shape index: {}]
  %s4 = inlined_call_operand.vmem [shape: f32[1,128], index: 4, kind: input, shape index: {}]
  %s5 = inlined_call_operand.vmem [shape: bf16[128,128], index: 5, kind: input, shape index: {}]
  %s6 = inlined_call_operand.vmem [shape: bf16[128,128], index: 6, kind: input, shape index: {}]
  %s7 = inlined_call_operand.vmem [shape: bf16[128,128], index: 7, kind: input, shape index: {}]
  %s8 = inlined_call_operand.vmem [shape: bf16[128,128], index: 8, kind: input, shape index: {}]
  %s9 = inlined_call_operand.vmem [shape: f32[1,128], index: 9, kind: input, shape index: {}]
  %s10 = inlined_call_operand.vmem [shape: f32[1,128], index: 10, kind: input, shape index: {}]
  %s11 = inlined_call_operand.vmem [shape: bf16[128,256], index: 11, kind: input, shape index: {}]
  %s12 = inlined_call_operand.vmem [shape: f32[1,256], index: 12, kind: input, shape index: {}]
  %s13 = inlined_call_operand.vmem [shape: bf16[256,128], index: 13, kind: input, shape index: {}]
  %s14 = inlined_call_operand.vmem [shape: f32[1,128], index: 14, kind: input, shape index: {}]
  %s15 = inlined_call_operand.vmem [shape: bf16[128,128], index: 15, kind: input, shape index: {}]
  %s16 = inlined_call_operand.vmem [shape: f32[1,128], index: 16, kind: input, shape index: {}]
  %s17 = inlined_call_operand.vmem [shape: bf16[128,128], index: 17, kind: input, shape index: {}]
  %s18 = inlined_call_operand.vmem [shape: f32[1,128], index: 18, kind: input, shape index: {}]
  %s19 = inlined_call_operand.hbm [shape: bf16[16,8,128], index: 19, kind: output, shape index: {0}]
  %s20 = inlined_call_operand.vmem [shape: bf16[16,8,128], index: 20, kind: output, shape index: {1}]
  %s21 = inlined_call_operand.hbm [shape: f32[1,1,1], index: 21, kind: output, shape index: {2}]
  %22 = xla_tuple %s19, %s20, %s21
  %s23 = sld [smem:[#allocation0]]
  $region102: #{fullpipeline_sit_forward.1} parent=0
    _
  %s25 = ssub.s32 1, %s23
  %s26 = scalar_select 0, %s25, %s23
  $region1: #{fullpipeline_sit_forward.1} parent=0
    #allocation2 [shape = 'u8[32768]{0}', space=vmem, size = 0x8000, scoped, tag = 'output window, operand 0, single buffered']
    #allocation3 [shape = 's32[1]{0}', space=sflag, size = 0x4, scoped, tag = 'scoped memory for fullpipeline_sit_forward.1']
    #allocation4 [shape = 'u8[512]{0}', space=vmem, size = 0x400, scoped, tag = 'output window, operand 2, single buffered']
    #allocation5 [shape = 's32[1]{0}', space=sflag, size = 0x4, scoped, tag = 'scoped memory for fullpipeline_sit_forward.1']
    %27 = vsyncpa [#allocation3], 0
    %28 = vsyncpa [#allocation5], 0
    // Predicated region
    $region2: #{fullpipeline_sit_forward.1} parent=1 // pred_check
      _
    $region3: #{fullpipeline_sit_forward.1} parent=1 // pred_check_branch
      %30 = sbr.rel (0) target = $region5
    $region4: #{fullpipeline_sit_forward.1} parent=1 // pred_region
      _
    $region5: #{fullpipeline_sit_forward.1} parent=1 // pred_fallthru
      _
    // Predicated region
    $region6: #{fullpipeline_sit_forward.1} parent=1 // pred_check
      _
    $region7: #{fullpipeline_sit_forward.1} parent=1 // pred_check_branch
      %32 = sbr.rel (0) target = $region9
    $region8: #{fullpipeline_sit_forward.1} parent=1 // pred_region
      _
    $region9: #{fullpipeline_sit_forward.1} parent=1 // pred_fallthru
      _
    // Predicated region
    $region10: #{fullpipeline_sit_forward.1} parent=1 // pred_check
      _
    $region11: #{fullpipeline_sit_forward.1} parent=1 // pred_check_branch
      %34 = sbr.rel (0) target = $region13
    $region12: #{fullpipeline_sit_forward.1} parent=1 // pred_region
      _
    $region13: #{fullpipeline_sit_forward.1} parent=1 // pred_fallthru
      _
    // Predicated region
    $region14: #{fullpipeline_sit_forward.1} parent=1 // pred_check
      _
    $region15: #{fullpipeline_sit_forward.1} parent=1 // pred_check_branch
      %36 = sbr.rel (0) target = $region17
    $region16: #{fullpipeline_sit_forward.1} parent=1 // pred_region
      _
    $region17: #{fullpipeline_sit_forward.1} parent=1 // pred_fallthru
      _
    // Predicated region
    $region18: #{fullpipeline_sit_forward.1} parent=1 // pred_check
      _
    $region19: #{fullpipeline_sit_forward.1} parent=1 // pred_check_branch
      %38 = sbr.rel (0) target = $region21
    $region20: #{fullpipeline_sit_forward.1} parent=1 // pred_region
      _
    $region21: #{fullpipeline_sit_forward.1} parent=1 // pred_fallthru
      _
    // Predicated region
    $region22: #{fullpipeline_sit_forward.1} parent=1 // pred_check
      _
    $region23: #{fullpipeline_sit_forward.1} parent=1 // pred_check_branch
      %40 = sbr.rel (0) target = $region25
    $region24: #{fullpipeline_sit_forward.1} parent=1 // pred_region
      _
    $region25: #{fullpipeline_sit_forward.1} parent=1 // pred_fallthru
      _
    // Predicated region
    $region26: #{fullpipeline_sit_forward.1} parent=1 // pred_check
      _
    $region27: #{fullpipeline_sit_forward.1} parent=1 // pred_check_branch
      %42 = sbr.rel (0) target = $region29
    $region28: #{fullpipeline_sit_forward.1} parent=1 // pred_region
      _
    $region29: #{fullpipeline_sit_forward.1} parent=1 // pred_fallthru
      _
    // Predicated region
    $region30: #{fullpipeline_sit_forward.1} parent=1 // pred_check
      _
    $region31: #{fullpipeline_sit_forward.1} parent=1 // pred_check_branch
      %44 = sbr.rel (0) target = $region33
    $region32: #{fullpipeline_sit_forward.1} parent=1 // pred_region
      _
    $region33: #{fullpipeline_sit_forward.1} parent=1 // pred_fallthru
      _
    // Predicated region
    $region34: #{fullpipeline_sit_forward.1} parent=1 // pred_check
      _
    $region35: #{fullpipeline_sit_forward.1} parent=1 // pred_check_branch
      %46 = sbr.rel (0) target = $region37
    $region36: #{fullpipeline_sit_forward.1} parent=1 // pred_region
      _
    $region37: #{fullpipeline_sit_forward.1} parent=1 // pred_fallthru
      _
    // Predicated region
    $region38: #{fullpipeline_sit_forward.1} parent=1 // pred_check
      _
    $region39: #{fullpipeline_sit_forward.1} parent=1 // pred_check_branch
      %48 = sbr.rel (0) target = $region41
    $region40: #{fullpipeline_sit_forward.1} parent=1 // pred_region
      _
    $region41: #{fullpipeline_sit_forward.1} parent=1 // pred_fallthru
      _
    // Predicated region
    $region42: #{fullpipeline_sit_forward.1} parent=1 // pred_check
      _
    $region43: #{fullpipeline_sit_forward.1} parent=1 // pred_check_branch
      %50 = sbr.rel (0) target = $region45
    $region44: #{fullpipeline_sit_forward.1} parent=1 // pred_region
      _
    $region45: #{fullpipeline_sit_forward.1} parent=1 // pred_fallthru
      _
    // Predicated region
    $region46: #{fullpipeline_sit_forward.1} parent=1 // pred_check
      _
    $region47: #{fullpipeline_sit_forward.1} parent=1 // pred_check_branch
      %52 = sbr.rel (0) target = $region49
    $region48: #{fullpipeline_sit_forward.1} parent=1 // pred_region
      _
    $region49: #{fullpipeline_sit_forward.1} parent=1 // pred_fallthru
      _
    // Predicated region
    $region50: #{fullpipeline_sit_forward.1} parent=1 // pred_check
      _
    $region51: #{fullpipeline_sit_forward.1} parent=1 // pred_check_branch
      %54 = sbr.rel (0) target = $region53
    $region52: #{fullpipeline_sit_forward.1} parent=1 // pred_region
      _
    $region53: #{fullpipeline_sit_forward.1} parent=1 // pred_fallthru
      _
    // Predicated region
    $region54: #{fullpipeline_sit_forward.1} parent=1 // pred_check
      _
    $region55: #{fullpipeline_sit_forward.1} parent=1 // pred_check_branch
      %56 = sbr.rel (0) target = $region57
    $region56: #{fullpipeline_sit_forward.1} parent=1 // pred_region
      _
    $region57: #{fullpipeline_sit_forward.1} parent=1 // pred_fallthru
      _
    // Predicated region
    $region58: #{fullpipeline_sit_forward.1} parent=1 // pred_check
      _
    $region59: #{fullpipeline_sit_forward.1} parent=1 // pred_check_branch
      %58 = sbr.rel (0) target = $region61
    $region60: #{fullpipeline_sit_forward.1} parent=1 // pred_region
      _
    $region61: #{fullpipeline_sit_forward.1} parent=1 // pred_fallthru
      _
    // Predicated region
    $region62: #{fullpipeline_sit_forward.1} parent=1 // pred_check
      _
    $region63: #{fullpipeline_sit_forward.1} parent=1 // pred_check_branch
      %60 = sbr.rel (0) target = $region65
    $region64: #{fullpipeline_sit_forward.1} parent=1 // pred_region
      _
    $region65: #{fullpipeline_sit_forward.1} parent=1 // pred_fallthru
      _
    // Predicated region
    $region66: #{fullpipeline_sit_forward.1} parent=1 // pred_check
      _
    $region67: #{fullpipeline_sit_forward.1} parent=1 // pred_check_branch
      %62 = sbr.rel (0) target = $region69
    $region68: #{fullpipeline_sit_forward.1} parent=1 // pred_region
      _
    $region69: #{fullpipeline_sit_forward.1} parent=1 // pred_fallthru
      _
    // Predicated region
    $region70: #{fullpipeline_sit_forward.1} parent=1 // pred_check
      _
    $region71: #{fullpipeline_sit_forward.1} parent=1 // pred_check_branch
      %64 = sbr.rel (0) target = $region73
    $region72: #{fullpipeline_sit_forward.1} parent=1 // pred_region
      _
    $region73: #{fullpipeline_sit_forward.1} parent=1 // pred_fallthru
      _
    // Predicated region
    $region74: #{fullpipeline_sit_forward.1} parent=1 // pred_check
      _
    $region75: #{fullpipeline_sit_forward.1} parent=1 // pred_check_branch
      %66 = sbr.rel (0) target = $region77
    $region76: #{fullpipeline_sit_forward.1} parent=1 // pred_region
      _
    $region77: #{fullpipeline_sit_forward.1} parent=1 // pred_fallthru
      _
    %v68 = vld [vmem:[%s0] sm:$0xff]
    %v69 = vld [vmem:[%s0 + $0x8] sm:$0xff]
    %v70 = vld [vmem:[%s0 + $0x10] sm:$0xff]
    %v71 = vld [vmem:[%s0 + $0x18] sm:$0xff]
    %v72 = vld [vmem:[%s0 + $0x20] sm:$0xff]
    %v73 = vld [vmem:[%s0 + $0x28] sm:$0xff]
    %v74 = vld [vmem:[%s0 + $0x30] sm:$0xff]
    %v75 = vld [vmem:[%s0 + $0x38] sm:$0xff]
    %v76 = vld [vmem:[%s0 + $0x40] sm:$0xff]
    %v77 = vld [vmem:[%s0 + $0x48] sm:$0xff]
    %v78 = vld [vmem:[%s0 + $0x50] sm:$0xff]
    %v79 = vld [vmem:[%s0 + $0x58] sm:$0xff]
    %v80 = vld [vmem:[%s0 + $0x60] sm:$0xff]
    %v81 = vld [vmem:[%s0 + $0x68] sm:$0xff]
    %v82 = vld [vmem:[%s0 + $0x70] sm:$0xff]
    %v83 = vld [vmem:[%s0 + $0x78] sm:$0xff]
    %v84 = vpack.c.bf16 %v69, %v68
    %v85 = vpack.c.bf16 %v71, %v70
    %v86 = vpack.c.bf16 %v73, %v72
    %v87 = vpack.c.bf16 %v75, %v74
    %v88 = vpack.c.bf16 %v77, %v76
    %v89 = vpack.c.bf16 %v79, %v78
    %v90 = vpack.c.bf16 %v81, %v80
    %v91 = vpack.c.bf16 %v83, %v82
    %v92 = vld [vmem:[%s1] sm:$0xf]
    %v93 = vld [vmem:[%s1 + $0x4] sm:$0xf]
    %v94 = vld [vmem:[%s1 + $0x8] sm:$0xf]
    %v95 = vld [vmem:[%s1 + $0xc] sm:$0xf]
    %v96 = vld [vmem:[%s1 + $0x10] sm:$0xf]
    %v97 = vld [vmem:[%s1 + $0x14] sm:$0xf]
    %v98 = vld [vmem:[%s1 + $0x18] sm:$0xf]
    %v99 = vld [vmem:[%s1 + $0x1c] sm:$0xf]
    %v100 = vld [vmem:[%s1 + $0x20] sm:$0xf]
    %v101 = vld [vmem:[%s1 + $0x24] sm:$0xf]
    %v102 = vld [vmem:[%s1 + $0x28] sm:$0xf]
    %v103 = vld [vmem:[%s1 + $0x2c] sm:$0xf]
    %v104 = vld [vmem:[%s1 + $0x30] sm:$0xf]
    %v105 = vld [vmem:[%s1 + $0x34] sm:$0xf]
    %v106 = vld [vmem:[%s1 + $0x38] sm:$0xf]
    %v107 = vld [vmem:[%s1 + $0x3c] sm:$0xf]
    %v108 = vld [vmem:[%s2] sm:$0x1]
    %v110 = vperm.slane %v108, 0
    %v128 = vunpack.c.l.b16 %v92
    %v129 = vunpack.c.l.b16 %v93
    %v130 = vunpack.c.l.b16 %v94
    %v131 = vunpack.c.l.b16 %v95
    %v132 = vunpack.c.l.b16 %v96
    %v133 = vunpack.c.l.b16 %v97
    %v134 = vunpack.c.l.b16 %v98
    %v135 = vunpack.c.l.b16 %v99
    %v136 = vunpack.c.l.b16 %v100
    %v137 = vunpack.c.l.b16 %v101
    %v138 = vunpack.c.l.b16 %v102
    %v139 = vunpack.c.l.b16 %v103
    %v140 = vunpack.c.l.b16 %v104
    %v141 = vunpack.c.l.b16 %v105
    %v142 = vunpack.c.l.b16 %v106
    %v143 = vunpack.c.l.b16 %v107
    %v144 = vpack.c.b16 %v129, %v128
    %v145 = vpack.c.b16 %v131, %v130
    %v146 = vpack.c.b16 %v133, %v132
    %v147 = vpack.c.b16 %v135, %v134
    %v148 = vpack.c.b16 %v137, %v136
    %v149 = vpack.c.b16 %v139, %v138
    %v150 = vpack.c.b16 %v141, %v140
    %v151 = vpack.c.b16 %v143, %v142
    %160 = vmatpush.bf16.msra.mxu0 %v151
    %161 = vmatpush.bf16.msra.mxu0 %v150
    %162 = vmatpush.bf16.msra.mxu0 %v149
    %163 = vmatpush.bf16.msra.mxu0 %v148
    %164 = vmatpush.bf16.msra.mxu0 %v147
    %165 = vmatpush.bf16.msra.mxu0 %v146
    %166 = vmatpush.bf16.msra.mxu0 %v145
    %167 = vmatpush.bf16.msra.mxu0 %v144
    %168 = vmatmul.bf16.gmra.mxu0 %v84
    %v169 = vpop.f32.mrf.mxu0
    %v170 = vadd.f32 %v110, %v169
    %v171 = vpop.f32.mrf.mxu0
    %v172 = vadd.f32 %v110, %v171
    %173 = vmatmul.bf16.gmra.mxu0 %v85
    %v174 = vpop.f32.mrf.mxu0
    %v175 = vadd.f32 %v110, %v174
    %v176 = vpop.f32.mrf.mxu0
    %v177 = vadd.f32 %v110, %v176
    %178 = vmatmul.bf16.gmra.mxu0 %v86
    %v179 = vpop.f32.mrf.mxu0
    %v180 = vadd.f32 %v110, %v179
    %v181 = vpop.f32.mrf.mxu0
    %v182 = vadd.f32 %v110, %v181
    %183 = vmatmul.bf16.gmra.mxu0 %v87
    %v184 = vpop.f32.mrf.mxu0
    %v185 = vadd.f32 %v110, %v184
    %v186 = vpop.f32.mrf.mxu0
    %v187 = vadd.f32 %v110, %v186
    %188 = vmatmul.bf16.gmra.mxu0 %v88
    %v189 = vpop.f32.mrf.mxu0
    %v190 = vadd.f32 %v110, %v189
    %v191 = vpop.f32.mrf.mxu0
    %v192 = vadd.f32 %v110, %v191
    %193 = vmatmul.bf16.gmra.mxu0 %v89
    %v194 = vpop.f32.mrf.mxu0
    %v195 = vadd.f32 %v110, %v194
    %v196 = vpop.f32.mrf.mxu0
    %v197 = vadd.f32 %v110, %v196
    %198 = vmatmul.bf16.gmra.mxu0 %v90
    %v199 = vpop.f32.mrf.mxu0
    %v200 = vadd.f32 %v110, %v199
    %v201 = vpop.f32.mrf.mxu0
    %v202 = vadd.f32 %v110, %v201
    %203 = vmatmul.bf16.gmra.mxu0 %v91
    %v204 = vpop.f32.mrf.mxu0
    %v205 = vadd.f32 %v110, %v204
    %v206 = vpop.f32.mrf.mxu0
    %v207 = vadd.f32 %v110, %v206
    %208 = vdwg.mxu0
    %v209 = vld [vmem:[%s3] sm:$0x1]
    %v210 = vld [vmem:[%s4] sm:$0x1]
    %211 = vadd.xlane.f32.xlu0 %v170
    %v212 = vpop.xlane.xlu0 %211
    %213 = vadd.xlane.f32.xlu0 %v172
    %v214 = vpop.xlane.xlu0 %213
    %215 = vadd.xlane.f32.xlu0 %v175
    %v216 = vpop.xlane.xlu0 %215
    %217 = vadd.xlane.f32.xlu0 %v177
    %v218 = vpop.xlane.xlu0 %217
    %219 = vadd.xlane.f32.xlu0 %v180
    %v220 = vpop.xlane.xlu0 %219
    %221 = vadd.xlane.f32.xlu0 %v182
    %v222 = vpop.xlane.xlu0 %221
    %223 = vadd.xlane.f32.xlu0 %v185
    %v224 = vpop.xlane.xlu0 %223
    %225 = vadd.xlane.f32.xlu0 %v187
    %v226 = vpop.xlane.xlu0 %225
    %227 = vadd.xlane.f32.xlu0 %v190
    %v228 = vpop.xlane.xlu0 %227
    %229 = vadd.xlane.f32.xlu0 %v192
    %v230 = vpop.xlane.xlu0 %229
    %231 = vadd.xlane.f32.xlu0 %v195
    %v232 = vpop.xlane.xlu0 %231
    %233 = vadd.xlane.f32.xlu0 %v197
    %v234 = vpop.xlane.xlu0 %233
    %235 = vadd.xlane.f32.xlu0 %v200
    %v236 = vpop.xlane.xlu0 %235
    %237 = vadd.xlane.f32.xlu0 %v202
    %v238 = vpop.xlane.xlu0 %237
    %239 = vadd.xlane.f32.xlu0 %v205
    %v240 = vpop.xlane.xlu0 %239
    %241 = vadd.xlane.f32.xlu0 %v207
    %v242 = vpop.xlane.xlu0 %241
    %v243 = vrcp.pop 128.0
    %v244 = vmul.f32 128.0, %v243
    %v245 = vsub.f32 1.0, %v244
    %v246 = vmul.f32 %v243, %v245
    %v247 = vadd.f32 %v243, %v246
    %vm248 = vweird.f32 %v243
    %v249 = vsel %vm248, %v243, %v247
    %v250 = vmul.f32 %v212, %v249
    %v251 = vmul.f32 %v214, %v249
    %v252 = vmul.f32 %v216, %v249
    %v253 = vmul.f32 %v218, %v249
    %v254 = vmul.f32 %v220, %v249
    %v255 = vmul.f32 %v222, %v249
    %v256 = vmul.f32 %v224, %v249
    %v257 = vmul.f32 %v226, %v249
    %v258 = vmul.f32 %v228, %v249
    %v259 = vmul.f32 %v230, %v249
    %v260 = vmul.f32 %v232, %v249
    %v261 = vmul.f32 %v234, %v249
    %v262 = vmul.f32 %v236, %v249
    %v263 = vmul.f32 %v238, %v249
    %v264 = vmul.f32 %v240, %v249
    %v265 = vmul.f32 %v242, %v249
    %v266 = vsub.f32 %v170, %v250
    %v267 = vsub.f32 %v172, %v251
    %v268 = vsub.f32 %v175, %v252
    %v269 = vsub.f32 %v177, %v253
    %v270 = vsub.f32 %v180, %v254
    %v271 = vsub.f32 %v182, %v255
    %v272 = vsub.f32 %v185, %v256
    %v273 = vsub.f32 %v187, %v257
    %v274 = vsub.f32 %v190, %v258
    %v275 = vsub.f32 %v192, %v259
    %v276 = vsub.f32 %v195, %v260
    %v277 = vsub.f32 %v197, %v261
    %v278 = vsub.f32 %v200, %v262
    %v279 = vsub.f32 %v202, %v263
    %v280 = vsub.f32 %v205, %v264
    %v281 = vsub.f32 %v207, %v265
    %v282 = vmul.f32 %v266, %v266
    %v283 = vmul.f32 %v267, %v267
    %v284 = vmul.f32 %v268, %v268
    %v285 = vmul.f32 %v269, %v269
    %v286 = vmul.f32 %v270, %v270
    %v287 = vmul.f32 %v271, %v271
    %v288 = vmul.f32 %v272, %v272
    %v289 = vmul.f32 %v273, %v273
    %v290 = vmul.f32 %v274, %v274
    %v291 = vmul.f32 %v275, %v275
    %v292 = vmul.f32 %v276, %v276
    %v293 = vmul.f32 %v277, %v277
    %v294 = vmul.f32 %v278, %v278
    %v295 = vmul.f32 %v279, %v279
    %v296 = vmul.f32 %v280, %v280
    %v297 = vmul.f32 %v281, %v281
    %298 = vadd.xlane.f32.xlu0 %v282
    %v299 = vpop.xlane.xlu0 %298
    %300 = vadd.xlane.f32.xlu0 %v283
    %v301 = vpop.xlane.xlu0 %300
    %302 = vadd.xlane.f32.xlu0 %v284
    %v303 = vpop.xlane.xlu0 %302
    %304 = vadd.xlane.f32.xlu0 %v285
    %v305 = vpop.xlane.xlu0 %304
    %306 = vadd.xlane.f32.xlu0 %v286
    %v307 = vpop.xlane.xlu0 %306
    %308 = vadd.xlane.f32.xlu0 %v287
    %v309 = vpop.xlane.xlu0 %308
    %310 = vadd.xlane.f32.xlu0 %v288
    %v311 = vpop.xlane.xlu0 %310
    %312 = vadd.xlane.f32.xlu0 %v289
    %v313 = vpop.xlane.xlu0 %312
    %314 = vadd.xlane.f32.xlu0 %v290
    %v315 = vpop.xlane.xlu0 %314
    %316 = vadd.xlane.f32.xlu0 %v291
    %v317 = vpop.xlane.xlu0 %316
    %318 = vadd.xlane.f32.xlu0 %v292
    %v319 = vpop.xlane.xlu0 %318
    %320 = vadd.xlane.f32.xlu0 %v293
    %v321 = vpop.xlane.xlu0 %320
    %322 = vadd.xlane.f32.xlu0 %v294
    %v323 = vpop.xlane.xlu0 %322
    %324 = vadd.xlane.f32.xlu0 %v295
    %v325 = vpop.xlane.xlu0 %324
    %326 = vadd.xlane.f32.xlu0 %v296
    %v327 = vpop.xlane.xlu0 %326
    %328 = vadd.xlane.f32.xlu0 %v297
    %v329 = vpop.xlane.xlu0 %328
    %v330 = vmul.f32 %v299, %v249
    %v331 = vmul.f32 %v301, %v249
    %v332 = vmul.f32 %v303, %v249
    %v333 = vmul.f32 %v305, %v249
    %v334 = vmul.f32 %v307, %v249
    %v335 = vmul.f32 %v309, %v249
    %v336 = vmul.f32 %v311, %v249
    %v337 = vmul.f32 %v313, %v249
    %v338 = vmul.f32 %v315, %v249
    %v339 = vmul.f32 %v317, %v249
    %v340 = vmul.f32 %v319, %v249
    %v341 = vmul.f32 %v321, %v249
    %v342 = vmul.f32 %v323, %v249
    %v343 = vmul.f32 %v325, %v249
    %v344 = vmul.f32 %v327, %v249
    %v345 = vmul.f32 %v329, %v249
    %v346 = vadd.f32 %v330, 1e-06
    %v347 = vadd.f32 %v331, 1e-06
    %v348 = vadd.f32 %v332, 1e-06
    %v349 = vadd.f32 %v333, 1e-06
    %v350 = vadd.f32 %v334, 1e-06
    %v351 = vadd.f32 %v335, 1e-06
    %v352 = vadd.f32 %v336, 1e-06
    %v353 = vadd.f32 %v337, 1e-06
    %v354 = vadd.f32 %v338, 1e-06
    %v355 = vadd.f32 %v339, 1e-06
    %v356 = vadd.f32 %v340, 1e-06
    %v357 = vadd.f32 %v341, 1e-06
    %v358 = vadd.f32 %v342, 1e-06
    %v359 = vadd.f32 %v343, 1e-06
    %v360 = vadd.f32 %v344, 1e-06
    %v361 = vadd.f32 %v345, 1e-06
    %v362 = vrsqrt.pop %v346
    %v363 = vmul.f32 %v362, %v346
    %v364 = vmul.f32 %v363, %v362
    %v365 = vmul.f32 0.5, %v364
    %v366 = vsub.f32 1.5, %v365
    %v367 = vmul.f32 %v362, %v366
    %vm368 = vweird.f32 %v346
    %vm369 = vweird.f32 %v362
    %vm370 = vmor %vm368, %vm369
    %v371 = vsel %vm370, %v362, %v367
    %v372 = vrsqrt.pop %v347
    %v373 = vmul.f32 %v372, %v347
    %v374 = vmul.f32 %v373, %v372
    %v375 = vmul.f32 0.5, %v374
    %v376 = vsub.f32 1.5, %v375
    %v377 = vmul.f32 %v372, %v376
    %vm378 = vweird.f32 %v347
    %vm379 = vweird.f32 %v372
    %vm380 = vmor %vm378, %vm379
    %v381 = vsel %vm380, %v372, %v377
    %v382 = vrsqrt.pop %v348
    %v383 = vmul.f32 %v382, %v348
    %v384 = vmul.f32 %v383, %v382
    %v385 = vmul.f32 0.5, %v384
    %v386 = vsub.f32 1.5, %v385
    %v387 = vmul.f32 %v382, %v386
    %vm388 = vweird.f32 %v348
    %vm389 = vweird.f32 %v382
    %vm390 = vmor %vm388, %vm389
    %v391 = vsel %vm390, %v382, %v387
    %v392 = vrsqrt.pop %v349
    %v393 = vmul.f32 %v392, %v349
    %v394 = vmul.f32 %v393, %v392
    %v395 = vmul.f32 0.5, %v394
    %v396 = vsub.f32 1.5, %v395
    %v397 = vmul.f32 %v392, %v396
    %vm398 = vweird.f32 %v349
    %vm399 = vweird.f32 %v392
    %vm400 = vmor %vm398, %vm399
    %v401 = vsel %vm400, %v392, %v397
    %v402 = vrsqrt.pop %v350
    %v403 = vmul.f32 %v402, %v350
    %v404 = vmul.f32 %v403, %v402
    %v405 = vmul.f32 0.5, %v404
    %v406 = vsub.f32 1.5, %v405
    %v407 = vmul.f32 %v402, %v406
    %vm408 = vweird.f32 %v350
    %vm409 = vweird.f32 %v402
    %vm410 = vmor %vm408, %vm409
    %v411 = vsel %vm410, %v402, %v407
    %v412 = vrsqrt.pop %v351
    %v413 = vmul.f32 %v412, %v351
    %v414 = vmul.f32 %v413, %v412
    %v415 = vmul.f32 0.5, %v414
    %v416 = vsub.f32 1.5, %v415
    %v417 = vmul.f32 %v412, %v416
    %vm418 = vweird.f32 %v351
    %vm419 = vweird.f32 %v412
    %vm420 = vmor %vm418, %vm419
    %v421 = vsel %vm420, %v412, %v417
    %v422 = vrsqrt.pop %v352
    %v423 = vmul.f32 %v422, %v352
    %v424 = vmul.f32 %v423, %v422
    %v425 = vmul.f32 0.5, %v424
    %v426 = vsub.f32 1.5, %v425
    %v427 = vmul.f32 %v422, %v426
    %vm428 = vweird.f32 %v352
    %vm429 = vweird.f32 %v422
    %vm430 = vmor %vm428, %vm429
    %v431 = vsel %vm430, %v422, %v427
    %v432 = vrsqrt.pop %v353
    %v433 = vmul.f32 %v432, %v353
    %v434 = vmul.f32 %v433, %v432
    %v435 = vmul.f32 0.5, %v434
    %v436 = vsub.f32 1.5, %v435
    %v437 = vmul.f32 %v432, %v436
    %vm438 = vweird.f32 %v353
    %vm439 = vweird.f32 %v432
    %vm440 = vmor %vm438, %vm439
    %v441 = vsel %vm440, %v432, %v437
    %v442 = vrsqrt.pop %v354
    %v443 = vmul.f32 %v442, %v354
    %v444 = vmul.f32 %v443, %v442
    %v445 = vmul.f32 0.5, %v444
    %v446 = vsub.f32 1.5, %v445
    %v447 = vmul.f32 %v442, %v446
    %vm448 = vweird.f32 %v354
    %vm449 = vweird.f32 %v442
    %vm450 = vmor %vm448, %vm449
    %v451 = vsel %vm450, %v442, %v447
    %v452 = vrsqrt.pop %v355
    %v453 = vmul.f32 %v452, %v355
    %v454 = vmul.f32 %v453, %v452
    %v455 = vmul.f32 0.5, %v454
    %v456 = vsub.f32 1.5, %v455
    %v457 = vmul.f32 %v452, %v456
    %vm458 = vweird.f32 %v355
    %vm459 = vweird.f32 %v452
    %vm460 = vmor %vm458, %vm459
    %v461 = vsel %vm460, %v452, %v457
    %v462 = vrsqrt.pop %v356
    %v463 = vmul.f32 %v462, %v356
    %v464 = vmul.f32 %v463, %v462
    %v465 = vmul.f32 0.5, %v464
    %v466 = vsub.f32 1.5, %v465
    %v467 = vmul.f32 %v462, %v466
    %vm468 = vweird.f32 %v356
    %vm469 = vweird.f32 %v462
    %vm470 = vmor %vm468, %vm469
    %v471 = vsel %vm470, %v462, %v467
    %v472 = vrsqrt.pop %v357
    %v473 = vmul.f32 %v472, %v357
    %v474 = vmul.f32 %v473, %v472
    %v475 = vmul.f32 0.5, %v474
    %v476 = vsub.f32 1.5, %v475
    %v477 = vmul.f32 %v472, %v476
    %vm478 = vweird.f32 %v357
    %vm479 = vweird.f32 %v472
    %vm480 = vmor %vm478, %vm479
    %v481 = vsel %vm480, %v472, %v477
    %v482 = vrsqrt.pop %v358
    %v483 = vmul.f32 %v482, %v358
    %v484 = vmul.f32 %v483, %v482
    %v485 = vmul.f32 0.5, %v484
    %v486 = vsub.f32 1.5, %v485
    %v487 = vmul.f32 %v482, %v486
    %vm488 = vweird.f32 %v358
    %vm489 = vweird.f32 %v482
    %vm490 = vmor %vm488, %vm489
    %v491 = vsel %vm490, %v482, %v487
    %v492 = vrsqrt.pop %v359
    %v493 = vmul.f32 %v492, %v359
    %v494 = vmul.f32 %v493, %v492
    %v495 = vmul.f32 0.5, %v494
    %v496 = vsub.f32 1.5, %v495
    %v497 = vmul.f32 %v492, %v496
    %vm498 = vweird.f32 %v359
    %vm499 = vweird.f32 %v492
    %vm500 = vmor %vm498, %vm499
    %v501 = vsel %vm500, %v492, %v497
    %v502 = vrsqrt.pop %v360
    %v503 = vmul.f32 %v502, %v360
    %v504 = vmul.f32 %v503, %v502
    %v505 = vmul.f32 0.5, %v504
    %v506 = vsub.f32 1.5, %v505
    %v507 = vmul.f32 %v502, %v506
    %vm508 = vweird.f32 %v360
    %vm509 = vweird.f32 %v502
    %vm510 = vmor %vm508, %vm509
    %v511 = vsel %vm510, %v502, %v507
    %v512 = vrsqrt.pop %v361
    %v513 = vmul.f32 %v512, %v361
    %v514 = vmul.f32 %v513, %v512
    %v515 = vmul.f32 0.5, %v514
    %v516 = vsub.f32 1.5, %v515
    %v517 = vmul.f32 %v512, %v516
    %vm518 = vweird.f32 %v361
    %vm519 = vweird.f32 %v512
    %vm520 = vmor %vm518, %vm519
    %v521 = vsel %vm520, %v512, %v517
    %v522 = vmul.f32 %v266, %v371
    %v523 = vmul.f32 %v267, %v381
    %v524 = vmul.f32 %v268, %v391
    %v525 = vmul.f32 %v269, %v401
    %v526 = vmul.f32 %v270, %v411
    %v527 = vmul.f32 %v271, %v421
    %v528 = vmul.f32 %v272, %v431
    %v529 = vmul.f32 %v273, %v441
    %v530 = vmul.f32 %v274, %v451
    %v531 = vmul.f32 %v275, %v461
    %v532 = vmul.f32 %v276, %v471
    %v533 = vmul.f32 %v277, %v481
    %v534 = vmul.f32 %v278, %v491
    %v535 = vmul.f32 %v279, %v501
    %v536 = vmul.f32 %v280, %v511
    %v537 = vmul.f32 %v281, %v521
    %v539 = vperm.slane %v209, 0
    %v541 = vmul.f32 %v522, %v539
    %v542 = vmul.f32 %v523, %v539
    %v543 = vmul.f32 %v524, %v539
    %v544 = vmul.f32 %v525, %v539
    %v545 = vmul.f32 %v526, %v539
    %v546 = vmul.f32 %v527, %v539
    %v547 = vmul.f32 %v528, %v539
    %v548 = vmul.f32 %v529, %v539
    %v549 = vmul.f32 %v530, %v539
    %v550 = vmul.f32 %v531, %v539
    %v551 = vmul.f32 %v532, %v539
    %v552 = vmul.f32 %v533, %v539
    %v553 = vmul.f32 %v534, %v539
    %v554 = vmul.f32 %v535, %v539
    %v555 = vmul.f32 %v536, %v539
    %v556 = vmul.f32 %v537, %v539
    %v558 = vperm.slane %v210, 0
    %v560 = vadd.f32 %v541, %v558
    %v561 = vadd.f32 %v542, %v558
    %v562 = vadd.f32 %v543, %v558
    %v563 = vadd.f32 %v544, %v558
    %v564 = vadd.f32 %v545, %v558
    %v565 = vadd.f32 %v546, %v558
    %v566 = vadd.f32 %v547, %v558
    %v567 = vadd.f32 %v548, %v558
    %v568 = vadd.f32 %v549, %v558
    %v569 = vadd.f32 %v550, %v558
    %v570 = vadd.f32 %v551, %v558
    %v571 = vadd.f32 %v552, %v558
    %v572 = vadd.f32 %v553, %v558
    %v573 = vadd.f32 %v554, %v558
    %v574 = vadd.f32 %v555, %v558
    %v575 = vadd.f32 %v556, %v558
    %v576 = vpack.c.bf16 %v561, %v560
    %v577 = vpack.c.bf16 %v563, %v562
    %v578 = vpack.c.bf16 %v565, %v564
    %v579 = vpack.c.bf16 %v567, %v566
    %v580 = vpack.c.bf16 %v569, %v568
    %v581 = vpack.c.bf16 %v571, %v570
    %v582 = vpack.c.bf16 %v573, %v572
    %v583 = vpack.c.bf16 %v575, %v574
    %v584 = vld [vmem:[%s5] sm:$0xf]
    %v585 = vld [vmem:[%s5 + $0x4] sm:$0xf]
    %v586 = vld [vmem:[%s5 + $0x8] sm:$0xf]
    %v587 = vld [vmem:[%s5 + $0xc] sm:$0xf]
    %v588 = vld [vmem:[%s5 + $0x10] sm:$0xf]
    %v589 = vld [vmem:[%s5 + $0x14] sm:$0xf]
    %v590 = vld [vmem:[%s5 + $0x18] sm:$0xf]
    %v591 = vld [vmem:[%s5 + $0x1c] sm:$0xf]
    %v592 = vld [vmem:[%s5 + $0x20] sm:$0xf]
    %v593 = vld [vmem:[%s5 + $0x24] sm:$0xf]
    %v594 = vld [vmem:[%s5 + $0x28] sm:$0xf]
    %v595 = vld [vmem:[%s5 + $0x2c] sm:$0xf]
    %v596 = vld [vmem:[%s5 + $0x30] sm:$0xf]
    %v597 = vld [vmem:[%s5 + $0x34] sm:$0xf]
    %v598 = vld [vmem:[%s5 + $0x38] sm:$0xf]
    %v599 = vld [vmem:[%s5 + $0x3c] sm:$0xf]
    %v616 = vunpack.c.l.b16 %v584
    %v617 = vunpack.c.l.b16 %v585
    %v618 = vunpack.c.l.b16 %v586
    %v619 = vunpack.c.l.b16 %v587
    %v620 = vunpack.c.l.b16 %v588
    %v621 = vunpack.c.l.b16 %v589
    %v622 = vunpack.c.l.b16 %v590
    %v623 = vunpack.c.l.b16 %v591
    %v624 = vunpack.c.l.b16 %v592
    %v625 = vunpack.c.l.b16 %v593
    %v626 = vunpack.c.l.b16 %v594
    %v627 = vunpack.c.l.b16 %v595
    %v628 = vunpack.c.l.b16 %v596
    %v629 = vunpack.c.l.b16 %v597
    %v630 = vunpack.c.l.b16 %v598
    %v631 = vunpack.c.l.b16 %v599
    %v632 = vpack.c.b16 %v617, %v616
    %v633 = vpack.c.b16 %v619, %v618
    %v634 = vpack.c.b16 %v621, %v620
    %v635 = vpack.c.b16 %v623, %v622
    %v636 = vpack.c.b16 %v625, %v624
    %v637 = vpack.c.b16 %v627, %v626
    %v638 = vpack.c.b16 %v629, %v628
    %v639 = vpack.c.b16 %v631, %v630
    %648 = vmatpush.bf16.msra.mxu0 %v639
    %649 = vmatpush.bf16.msra.mxu0 %v638
    %650 = vmatpush.bf16.msra.mxu0 %v637
    %651 = vmatpush.bf16.msra.mxu0 %v636
    %652 = vmatpush.bf16.msra.mxu0 %v635
    %653 = vmatpush.bf16.msra.mxu0 %v634
    %654 = vmatpush.bf16.msra.mxu0 %v633
    %655 = vmatpush.bf16.msra.mxu0 %v632
    %656 = vmatmul.bf16.gmra.mxu0 %v576
    %v657 = vpop.f32.mrf.mxu0
    %v658 = vadd.f32 0.0, %v657
    %v659 = vpop.f32.mrf.mxu0
    %v660 = vadd.f32 0.0, %v659
    %661 = vmatmul.bf16.gmra.mxu0 %v577
    %v662 = vpop.f32.mrf.mxu0
    %v663 = vadd.f32 0.0, %v662
    %v664 = vpop.f32.mrf.mxu0
    %v665 = vadd.f32 0.0, %v664
    %666 = vmatmul.bf16.gmra.mxu0 %v578
    %v667 = vpop.f32.mrf.mxu0
    %v668 = vadd.f32 0.0, %v667
    %v669 = vpop.f32.mrf.mxu0
    %v670 = vadd.f32 0.0, %v669
    %671 = vmatmul.bf16.gmra.mxu0 %v579
    %v672 = vpop.f32.mrf.mxu0
    %v673 = vadd.f32 0.0, %v672
    %v674 = vpop.f32.mrf.mxu0
    %v675 = vadd.f32 0.0, %v674
    %676 = vmatmul.bf16.gmra.mxu0 %v580
    %v677 = vpop.f32.mrf.mxu0
    %v678 = vadd.f32 0.0, %v677
    %v679 = vpop.f32.mrf.mxu0
    %v680 = vadd.f32 0.0, %v679
    %681 = vmatmul.bf16.gmra.mxu0 %v581
    %v682 = vpop.f32.mrf.mxu0
    %v683 = vadd.f32 0.0, %v682
    %v684 = vpop.f32.mrf.mxu0
    %v685 = vadd.f32 0.0, %v684
    %686 = vmatmul.bf16.gmra.mxu0 %v582
    %v687 = vpop.f32.mrf.mxu0
    %v688 = vadd.f32 0.0, %v687
    %v689 = vpop.f32.mrf.mxu0
    %v690 = vadd.f32 0.0, %v689
    %691 = vmatmul.bf16.gmra.mxu0 %v583
    %v692 = vpop.f32.mrf.mxu0
    %v693 = vadd.f32 0.0, %v692
    %v694 = vpop.f32.mrf.mxu0
    %v695 = vadd.f32 0.0, %v694
    %696 = vdwg.mxu0
    %v697 = vld [vmem:[%s6] sm:$0xf]
    %v698 = vld [vmem:[%s6 + $0x4] sm:$0xf]
    %v699 = vld [vmem:[%s6 + $0x8] sm:$0xf]
    %v700 = vld [vmem:[%s6 + $0xc] sm:$0xf]
    %v701 = vld [vmem:[%s6 + $0x10] sm:$0xf]
    %v702 = vld [vmem:[%s6 + $0x14] sm:$0xf]
    %v703 = vld [vmem:[%s6 + $0x18] sm:$0xf]
    %v704 = vld [vmem:[%s6 + $0x1c] sm:$0xf]
    %v705 = vld [vmem:[%s6 + $0x20] sm:$0xf]
    %v706 = vld [vmem:[%s6 + $0x24] sm:$0xf]
    %v707 = vld [vmem:[%s6 + $0x28] sm:$0xf]
    %v708 = vld [vmem:[%s6 + $0x2c] sm:$0xf]
    %v709 = vld [vmem:[%s6 + $0x30] sm:$0xf]
    %v710 = vld [vmem:[%s6 + $0x34] sm:$0xf]
    %v711 = vld [vmem:[%s6 + $0x38] sm:$0xf]
    %v712 = vld [vmem:[%s6 + $0x3c] sm:$0xf]
    %v729 = vunpack.c.l.b16 %v697
    %v730 = vunpack.c.l.b16 %v698
    %v731 = vunpack.c.l.b16 %v699
    %v732 = vunpack.c.l.b16 %v700
    %v733 = vunpack.c.l.b16 %v701
    %v734 = vunpack.c.l.b16 %v702
    %v735 = vunpack.c.l.b16 %v703
    %v736 = vunpack.c.l.b16 %v704
    %v737 = vunpack.c.l.b16 %v705
    %v738 = vunpack.c.l.b16 %v706
    %v739 = vunpack.c.l.b16 %v707
    %v740 = vunpack.c.l.b16 %v708
    %v741 = vunpack.c.l.b16 %v709
    %v742 = vunpack.c.l.b16 %v710
    %v743 = vunpack.c.l.b16 %v711
    %v744 = vunpack.c.l.b16 %v712
    %v745 = vpack.c.b16 %v730, %v729
    %v746 = vpack.c.b16 %v732, %v731
    %v747 = vpack.c.b16 %v734, %v733
    %v748 = vpack.c.b16 %v736, %v735
    %v749 = vpack.c.b16 %v738, %v737
    %v750 = vpack.c.b16 %v740, %v739
    %v751 = vpack.c.b16 %v742, %v741
    %v752 = vpack.c.b16 %v744, %v743
    %761 = vmatpush.bf16.msra.mxu0 %v752
    %762 = vmatpush.bf16.msra.mxu0 %v751
    %763 = vmatpush.bf16.msra.mxu0 %v750
    %764 = vmatpush.bf16.msra.mxu0 %v749
    %765 = vmatpush.bf16.msra.mxu0 %v748
    %766 = vmatpush.bf16.msra.mxu0 %v747
    %767 = vmatpush.bf16.msra.mxu0 %v746
    %768 = vmatpush.bf16.msra.mxu0 %v745
    %769 = vmatmul.bf16.gmra.mxu0 %v576
    %v770 = vpop.f32.mrf.mxu0
    %v771 = vadd.f32 0.0, %v770
    %v772 = vpop.f32.mrf.mxu0
    %v773 = vadd.f32 0.0, %v772
    %774 = vmatmul.bf16.gmra.mxu0 %v577
    %v775 = vpop.f32.mrf.mxu0
    %v776 = vadd.f32 0.0, %v775
    %v777 = vpop.f32.mrf.mxu0
    %v778 = vadd.f32 0.0, %v777
    %779 = vmatmul.bf16.gmra.mxu0 %v578
    %v780 = vpop.f32.mrf.mxu0
    %v781 = vadd.f32 0.0, %v780
    %v782 = vpop.f32.mrf.mxu0
    %v783 = vadd.f32 0.0, %v782
    %784 = vmatmul.bf16.gmra.mxu0 %v579
    %v785 = vpop.f32.mrf.mxu0
    %v786 = vadd.f32 0.0, %v785
    %v787 = vpop.f32.mrf.mxu0
    %v788 = vadd.f32 0.0, %v787
    %789 = vmatmul.bf16.gmra.mxu0 %v580
    %v790 = vpop.f32.mrf.mxu0
    %v791 = vadd.f32 0.0, %v790
    %v792 = vpop.f32.mrf.mxu0
    %v793 = vadd.f32 0.0, %v792
    %794 = vmatmul.bf16.gmra.mxu0 %v581
    %v795 = vpop.f32.mrf.mxu0
    %v796 = vadd.f32 0.0, %v795
    %v797 = vpop.f32.mrf.mxu0
    %v798 = vadd.f32 0.0, %v797
    %799 = vmatmul.bf16.gmra.mxu0 %v582
    %v800 = vpop.f32.mrf.mxu0
    %v801 = vadd.f32 0.0, %v800
    %v802 = vpop.f32.mrf.mxu0
    %v803 = vadd.f32 0.0, %v802
    %804 = vmatmul.bf16.gmra.mxu0 %v583
    %v805 = vpop.f32.mrf.mxu0
    %v806 = vadd.f32 0.0, %v805
    %v807 = vpop.f32.mrf.mxu0
    %v808 = vadd.f32 0.0, %v807
    %809 = vdwg.mxu0
    %v810 = vld [vmem:[%s7] sm:$0xf]
    %v811 = vld [vmem:[%s7 + $0x4] sm:$0xf]
    %v812 = vld [vmem:[%s7 + $0x8] sm:$0xf]
    %v813 = vld [vmem:[%s7 + $0xc] sm:$0xf]
    %v814 = vld [vmem:[%s7 + $0x10] sm:$0xf]
    %v815 = vld [vmem:[%s7 + $0x14] sm:$0xf]
    %v816 = vld [vmem:[%s7 + $0x18] sm:$0xf]
    %v817 = vld [vmem:[%s7 + $0x1c] sm:$0xf]
    %v818 = vld [vmem:[%s7 + $0x20] sm:$0xf]
    %v819 = vld [vmem:[%s7 + $0x24] sm:$0xf]
    %v820 = vld [vmem:[%s7 + $0x28] sm:$0xf]
    %v821 = vld [vmem:[%s7 + $0x2c] sm:$0xf]
    %v822 = vld [vmem:[%s7 + $0x30] sm:$0xf]
    %v823 = vld [vmem:[%s7 + $0x34] sm:$0xf]
    %v824 = vld [vmem:[%s7 + $0x38] sm:$0xf]
    %v825 = vld [vmem:[%s7 + $0x3c] sm:$0xf]
    %v842 = vunpack.c.l.b16 %v810
    %v843 = vunpack.c.l.b16 %v811
    %v844 = vunpack.c.l.b16 %v812
    %v845 = vunpack.c.l.b16 %v813
    %v846 = vunpack.c.l.b16 %v814
    %v847 = vunpack.c.l.b16 %v815
    %v848 = vunpack.c.l.b16 %v816
    %v849 = vunpack.c.l.b16 %v817
    %v850 = vunpack.c.l.b16 %v818
    %v851 = vunpack.c.l.b16 %v819
    %v852 = vunpack.c.l.b16 %v820
    %v853 = vunpack.c.l.b16 %v821
    %v854 = vunpack.c.l.b16 %v822
    %v855 = vunpack.c.l.b16 %v823
    %v856 = vunpack.c.l.b16 %v824
    %v857 = vunpack.c.l.b16 %v825
    %v858 = vpack.c.b16 %v843, %v842
    %v859 = vpack.c.b16 %v845, %v844
    %v860 = vpack.c.b16 %v847, %v846
    %v861 = vpack.c.b16 %v849, %v848
    %v862 = vpack.c.b16 %v851, %v850
    %v863 = vpack.c.b16 %v853, %v852
    %v864 = vpack.c.b16 %v855, %v854
    %v865 = vpack.c.b16 %v857, %v856
    %874 = vmatpush.bf16.msra.mxu0 %v865
    %875 = vmatpush.bf16.msra.mxu0 %v864
    %876 = vmatpush.bf16.msra.mxu0 %v863
    %877 = vmatpush.bf16.msra.mxu0 %v862
    %878 = vmatpush.bf16.msra.mxu0 %v861
    %879 = vmatpush.bf16.msra.mxu0 %v860
    %880 = vmatpush.bf16.msra.mxu0 %v859
    %881 = vmatpush.bf16.msra.mxu0 %v858
    %882 = vmatmul.bf16.gmra.mxu0 %v576
    %v883 = vpop.f32.mrf.mxu0
    %v884 = vadd.f32 0.0, %v883
    %v885 = vpop.f32.mrf.mxu0
    %v886 = vadd.f32 0.0, %v885
    %887 = vmatmul.bf16.gmra.mxu0 %v577
    %v888 = vpop.f32.mrf.mxu0
    %v889 = vadd.f32 0.0, %v888
    %v890 = vpop.f32.mrf.mxu0
    %v891 = vadd.f32 0.0, %v890
    %892 = vmatmul.bf16.gmra.mxu0 %v578
    %v893 = vpop.f32.mrf.mxu0
    %v894 = vadd.f32 0.0, %v893
    %v895 = vpop.f32.mrf.mxu0
    %v896 = vadd.f32 0.0, %v895
    %897 = vmatmul.bf16.gmra.mxu0 %v579
    %v898 = vpop.f32.mrf.mxu0
    %v899 = vadd.f32 0.0, %v898
    %v900 = vpop.f32.mrf.mxu0
    %v901 = vadd.f32 0.0, %v900
    %902 = vmatmul.bf16.gmra.mxu0 %v580
    %v903 = vpop.f32.mrf.mxu0
    %v904 = vadd.f32 0.0, %v903
    %v905 = vpop.f32.mrf.mxu0
    %v906 = vadd.f32 0.0, %v905
    %907 = vmatmul.bf16.gmra.mxu0 %v581
    %v908 = vpop.f32.mrf.mxu0
    %v909 = vadd.f32 0.0, %v908
    %v910 = vpop.f32.mrf.mxu0
    %v911 = vadd.f32 0.0, %v910
    %912 = vmatmul.bf16.gmra.mxu0 %v582
    %v913 = vpop.f32.mrf.mxu0
    %v914 = vadd.f32 0.0, %v913
    %v915 = vpop.f32.mrf.mxu0
    %v916 = vadd.f32 0.0, %v915
    %917 = vmatmul.bf16.gmra.mxu0 %v583
    %v918 = vpop.f32.mrf.mxu0
    %v919 = vadd.f32 0.0, %v918
    %v920 = vpop.f32.mrf.mxu0
    %v921 = vadd.f32 0.0, %v920
    %922 = vdwg.mxu0
    %v923 = vmul.f32 %v658, 0.088388346
    %v924 = vmul.f32 %v660, 0.088388346
    %v925 = vmul.f32 %v663, 0.088388346
    %v926 = vmul.f32 %v665, 0.088388346
    %v927 = vmul.f32 %v668, 0.088388346
    %v928 = vmul.f32 %v670, 0.088388346
    %v929 = vmul.f32 %v673, 0.088388346
    %v930 = vmul.f32 %v675, 0.088388346
    %v931 = vmul.f32 %v678, 0.088388346
    %v932 = vmul.f32 %v680, 0.088388346
    %v933 = vmul.f32 %v683, 0.088388346
    %v934 = vmul.f32 %v685, 0.088388346
    %v935 = vmul.f32 %v688, 0.088388346
    %v936 = vmul.f32 %v690, 0.088388346
    %v937 = vmul.f32 %v693, 0.088388346
    %v938 = vmul.f32 %v695, 0.088388346
    %v939 = vpack.c.bf16 %v923, %v923
    %v940 = vpack.c.bf16 %v924, %v924
    %v941 = vpack.c.bf16 %v925, %v925
    %v942 = vpack.c.bf16 %v926, %v926
    %v943 = vpack.c.bf16 %v927, %v927
    %v944 = vpack.c.bf16 %v928, %v928
    %v945 = vpack.c.bf16 %v929, %v929
    %v946 = vpack.c.bf16 %v930, %v930
    %v947 = vpack.c.bf16 %v931, %v931
    %v948 = vpack.c.bf16 %v932, %v932
    %v949 = vpack.c.bf16 %v933, %v933
    %v950 = vpack.c.bf16 %v934, %v934
    %v951 = vpack.c.bf16 %v935, %v935
    %v952 = vpack.c.bf16 %v936, %v936
    %v953 = vpack.c.bf16 %v937, %v937
    %v954 = vpack.c.bf16 %v938, %v938
    %v955 = vpack.c.bf16 %v771, %v771
    %v956 = vpack.c.bf16 %v773, %v773
    %v957 = vpack.c.bf16 %v776, %v776
    %v958 = vpack.c.bf16 %v778, %v778
    %v959 = vpack.c.bf16 %v781, %v781
    %v960 = vpack.c.bf16 %v783, %v783
    %v961 = vpack.c.bf16 %v786, %v786
    %v962 = vpack.c.bf16 %v788, %v788
    %v963 = vpack.c.bf16 %v791, %v791
    %v964 = vpack.c.bf16 %v793, %v793
    %v965 = vpack.c.bf16 %v796, %v796
    %v966 = vpack.c.bf16 %v798, %v798
    %v967 = vpack.c.bf16 %v801, %v801
    %v968 = vpack.c.bf16 %v803, %v803
    %v969 = vpack.c.bf16 %v806, %v806
    %v970 = vpack.c.bf16 %v808, %v808
    %971 = vmatpush.bf16.xpose.msra.mxu0 0
    %972 = vmatpush.bf16.xpose.msra.mxu0 0
    %973 = vmatpush.bf16.xpose.msra.mxu0 0
    %974 = vmatpush.bf16.xpose.msra.mxu0 0
    %975 = vmatpush.bf16.xpose.msra.mxu0 0
    %976 = vmatpush.bf16.xpose.msra.mxu0 0
    %977 = vmatpush.bf16.xpose.msra.mxu0 0
    %978 = vmatpush.bf16.xpose.msra.mxu0 %v955
    %979 = vmatmul.bf16.gmra.mxu0 %v939
    %v980 = vpop.f32.mrf.mxu0
    %v981 = vadd.f32 0.0, %v980
    %v982 = vpop.f32.mrf.mxu0
    %983 = vdwg.mxu0
    %984 = vmatpush.bf16.xpose.msra.mxu0 0
    %985 = vmatpush.bf16.xpose.msra.mxu0 0
    %986 = vmatpush.bf16.xpose.msra.mxu0 0
    %987 = vmatpush.bf16.xpose.msra.mxu0 0
    %988 = vmatpush.bf16.xpose.msra.mxu0 0
    %989 = vmatpush.bf16.xpose.msra.mxu0 0
    %990 = vmatpush.bf16.xpose.msra.mxu0 0
    %991 = vmatpush.bf16.xpose.msra.mxu0 %v956
    %992 = vmatmul.bf16.gmra.mxu0 %v940
    %v993 = vpop.f32.mrf.mxu0
    %v994 = vadd.f32 0.0, %v993
    %v995 = vpop.f32.mrf.mxu0
    %996 = vdwg.mxu0
    %997 = vmatpush.bf16.xpose.msra.mxu0 0
    %998 = vmatpush.bf16.xpose.msra.mxu0 0
    %999 = vmatpush.bf16.xpose.msra.mxu0 0
    %1000 = vmatpush.bf16.xpose.msra.mxu0 0
    %1001 = vmatpush.bf16.xpose.msra.mxu0 0
    %1002 = vmatpush.bf16.xpose.msra.mxu0 0
    %1003 = vmatpush.bf16.xpose.msra.mxu0 0
    %1004 = vmatpush.bf16.xpose.msra.mxu0 %v957
    %1005 = vmatmul.bf16.gmra.mxu0 %v941
    %v1006 = vpop.f32.mrf.mxu0
    %v1007 = vadd.f32 0.0, %v1006
    %v1008 = vpop.f32.mrf.mxu0
    %1009 = vdwg.mxu0
    %1010 = vmatpush.bf16.xpose.msra.mxu0 0
    %1011 = vmatpush.bf16.xpose.msra.mxu0 0
    %1012 = vmatpush.bf16.xpose.msra.mxu0 0
    %1013 = vmatpush.bf16.xpose.msra.mxu0 0
    %1014 = vmatpush.bf16.xpose.msra.mxu0 0
    %1015 = vmatpush.bf16.xpose.msra.mxu0 0
    %1016 = vmatpush.bf16.xpose.msra.mxu0 0
    %1017 = vmatpush.bf16.xpose.msra.mxu0 %v958
    %1018 = vmatmul.bf16.gmra.mxu0 %v942
    %v1019 = vpop.f32.mrf.mxu0
    %v1020 = vadd.f32 0.0, %v1019
    %v1021 = vpop.f32.mrf.mxu0
    %1022 = vdwg.mxu0
    %1023 = vmatpush.bf16.xpose.msra.mxu0 0
    %1024 = vmatpush.bf16.xpose.msra.mxu0 0
    %1025 = vmatpush.bf16.xpose.msra.mxu0 0
    %1026 = vmatpush.bf16.xpose.msra.mxu0 0
    %1027 = vmatpush.bf16.xpose.msra.mxu0 0
    %1028 = vmatpush.bf16.xpose.msra.mxu0 0
    %1029 = vmatpush.bf16.xpose.msra.mxu0 0
    %1030 = vmatpush.bf16.xpose.msra.mxu0 %v959
    %1031 = vmatmul.bf16.gmra.mxu0 %v943
    %v1032 = vpop.f32.mrf.mxu0
    %v1033 = vadd.f32 0.0, %v1032
    %v1034 = vpop.f32.mrf.mxu0
    %1035 = vdwg.mxu0
    %1036 = vmatpush.bf16.xpose.msra.mxu0 0
    %1037 = vmatpush.bf16.xpose.msra.mxu0 0
    %1038 = vmatpush.bf16.xpose.msra.mxu0 0
    %1039 = vmatpush.bf16.xpose.msra.mxu0 0
    %1040 = vmatpush.bf16.xpose.msra.mxu0 0
    %1041 = vmatpush.bf16.xpose.msra.mxu0 0
    %1042 = vmatpush.bf16.xpose.msra.mxu0 0
    %1043 = vmatpush.bf16.xpose.msra.mxu0 %v960
    %1044 = vmatmul.bf16.gmra.mxu0 %v944
    %v1045 = vpop.f32.mrf.mxu0
    %v1046 = vadd.f32 0.0, %v1045
    %v1047 = vpop.f32.mrf.mxu0
    %1048 = vdwg.mxu0
    %1049 = vmatpush.bf16.xpose.msra.mxu0 0
    %1050 = vmatpush.bf16.xpose.msra.mxu0 0
    %1051 = vmatpush.bf16.xpose.msra.mxu0 0
    %1052 = vmatpush.bf16.xpose.msra.mxu0 0
    %1053 = vmatpush.bf16.xpose.msra.mxu0 0
    %1054 = vmatpush.bf16.xpose.msra.mxu0 0
    %1055 = vmatpush.bf16.xpose.msra.mxu0 0
    %1056 = vmatpush.bf16.xpose.msra.mxu0 %v961
    %1057 = vmatmul.bf16.gmra.mxu0 %v945
    %v1058 = vpop.f32.mrf.mxu0
    %v1059 = vadd.f32 0.0, %v1058
    %v1060 = vpop.f32.mrf.mxu0
    %1061 = vdwg.mxu0
    %1062 = vmatpush.bf16.xpose.msra.mxu0 0
    %1063 = vmatpush.bf16.xpose.msra.mxu0 0
    %1064 = vmatpush.bf16.xpose.msra.mxu0 0
    %1065 = vmatpush.bf16.xpose.msra.mxu0 0
    %1066 = vmatpush.bf16.xpose.msra.mxu0 0
    %1067 = vmatpush.bf16.xpose.msra.mxu0 0
    %1068 = vmatpush.bf16.xpose.msra.mxu0 0
    %1069 = vmatpush.bf16.xpose.msra.mxu0 %v962
    %1070 = vmatmul.bf16.gmra.mxu0 %v946
    %v1071 = vpop.f32.mrf.mxu0
    %v1072 = vadd.f32 0.0, %v1071
    %v1073 = vpop.f32.mrf.mxu0
    %1074 = vdwg.mxu0
    %1075 = vmatpush.bf16.xpose.msra.mxu0 0
    %1076 = vmatpush.bf16.xpose.msra.mxu0 0
    %1077 = vmatpush.bf16.xpose.msra.mxu0 0
    %1078 = vmatpush.bf16.xpose.msra.mxu0 0
    %1079 = vmatpush.bf16.xpose.msra.mxu0 0
    %1080 = vmatpush.bf16.xpose.msra.mxu0 0
    %1081 = vmatpush.bf16.xpose.msra.mxu0 0
    %1082 = vmatpush.bf16.xpose.msra.mxu0 %v963
    %1083 = vmatmul.bf16.gmra.mxu0 %v947
    %v1084 = vpop.f32.mrf.mxu0
    %v1085 = vadd.f32 0.0, %v1084
    %v1086 = vpop.f32.mrf.mxu0
    %1087 = vdwg.mxu0
    %1088 = vmatpush.bf16.xpose.msra.mxu0 0
    %1089 = vmatpush.bf16.xpose.msra.mxu0 0
    %1090 = vmatpush.bf16.xpose.msra.mxu0 0
    %1091 = vmatpush.bf16.xpose.msra.mxu0 0
    %1092 = vmatpush.bf16.xpose.msra.mxu0 0
    %1093 = vmatpush.bf16.xpose.msra.mxu0 0
    %1094 = vmatpush.bf16.xpose.msra.mxu0 0
    %1095 = vmatpush.bf16.xpose.msra.mxu0 %v964
    %1096 = vmatmul.bf16.gmra.mxu0 %v948
    %v1097 = vpop.f32.mrf.mxu0
    %v1098 = vadd.f32 0.0, %v1097
    %v1099 = vpop.f32.mrf.mxu0
    %1100 = vdwg.mxu0
    %1101 = vmatpush.bf16.xpose.msra.mxu0 0
    %1102 = vmatpush.bf16.xpose.msra.mxu0 0
    %1103 = vmatpush.bf16.xpose.msra.mxu0 0
    %1104 = vmatpush.bf16.xpose.msra.mxu0 0
    %1105 = vmatpush.bf16.xpose.msra.mxu0 0
    %1106 = vmatpush.bf16.xpose.msra.mxu0 0
    %1107 = vmatpush.bf16.xpose.msra.mxu0 0
    %1108 = vmatpush.bf16.xpose.msra.mxu0 %v965
    %1109 = vmatmul.bf16.gmra.mxu0 %v949
    %v1110 = vpop.f32.mrf.mxu0
    %v1111 = vadd.f32 0.0, %v1110
    %v1112 = vpop.f32.mrf.mxu0
    %1113 = vdwg.mxu0
    %1114 = vmatpush.bf16.xpose.msra.mxu0 0
    %1115 = vmatpush.bf16.xpose.msra.mxu0 0
    %1116 = vmatpush.bf16.xpose.msra.mxu0 0
    %1117 = vmatpush.bf16.xpose.msra.mxu0 0
    %1118 = vmatpush.bf16.xpose.msra.mxu0 0
    %1119 = vmatpush.bf16.xpose.msra.mxu0 0
    %1120 = vmatpush.bf16.xpose.msra.mxu0 0
    %1121 = vmatpush.bf16.xpose.msra.mxu0 %v966
    %1122 = vmatmul.bf16.gmra.mxu0 %v950
    %v1123 = vpop.f32.mrf.mxu0
    %v1124 = vadd.f32 0.0, %v1123
    %v1125 = vpop.f32.mrf.mxu0
    %1126 = vdwg.mxu0
    %1127 = vmatpush.bf16.xpose.msra.mxu0 0
    %1128 = vmatpush.bf16.xpose.msra.mxu0 0
    %1129 = vmatpush.bf16.xpose.msra.mxu0 0
    %1130 = vmatpush.bf16.xpose.msra.mxu0 0
    %1131 = vmatpush.bf16.xpose.msra.mxu0 0
    %1132 = vmatpush.bf16.xpose.msra.mxu0 0
    %1133 = vmatpush.bf16.xpose.msra.mxu0 0
    %1134 = vmatpush.bf16.xpose.msra.mxu0 %v967
    %1135 = vmatmul.bf16.gmra.mxu0 %v951
    %v1136 = vpop.f32.mrf.mxu0
    %v1137 = vadd.f32 0.0, %v1136
    %v1138 = vpop.f32.mrf.mxu0
    %1139 = vdwg.mxu0
    %1140 = vmatpush.bf16.xpose.msra.mxu0 0
    %1141 = vmatpush.bf16.xpose.msra.mxu0 0
    %1142 = vmatpush.bf16.xpose.msra.mxu0 0
    %1143 = vmatpush.bf16.xpose.msra.mxu0 0
    %1144 = vmatpush.bf16.xpose.msra.mxu0 0
    %1145 = vmatpush.bf16.xpose.msra.mxu0 0
    %1146 = vmatpush.bf16.xpose.msra.mxu0 0
    %1147 = vmatpush.bf16.xpose.msra.mxu0 %v968
    %1148 = vmatmul.bf16.gmra.mxu0 %v952
    %v1149 = vpop.f32.mrf.mxu0
    %v1150 = vadd.f32 0.0, %v1149
    %v1151 = vpop.f32.mrf.mxu0
    %1152 = vdwg.mxu0
    %1153 = vmatpush.bf16.xpose.msra.mxu0 0
    %1154 = vmatpush.bf16.xpose.msra.mxu0 0
    %1155 = vmatpush.bf16.xpose.msra.mxu0 0
    %1156 = vmatpush.bf16.xpose.msra.mxu0 0
    %1157 = vmatpush.bf16.xpose.msra.mxu0 0
    %1158 = vmatpush.bf16.xpose.msra.mxu0 0
    %1159 = vmatpush.bf16.xpose.msra.mxu0 0
    %1160 = vmatpush.bf16.xpose.msra.mxu0 %v969
    %1161 = vmatmul.bf16.gmra.mxu0 %v953
    %v1162 = vpop.f32.mrf.mxu0
    %v1163 = vadd.f32 0.0, %v1162
    %v1164 = vpop.f32.mrf.mxu0
    %1165 = vdwg.mxu0
    %1166 = vmatpush.bf16.xpose.msra.mxu0 0
    %1167 = vmatpush.bf16.xpose.msra.mxu0 0
    %1168 = vmatpush.bf16.xpose.msra.mxu0 0
    %1169 = vmatpush.bf16.xpose.msra.mxu0 0
    %1170 = vmatpush.bf16.xpose.msra.mxu0 0
    %1171 = vmatpush.bf16.xpose.msra.mxu0 0
    %1172 = vmatpush.bf16.xpose.msra.mxu0 0
    %1173 = vmatpush.bf16.xpose.msra.mxu0 %v970
    %1174 = vmatmul.bf16.gmra.mxu0 %v954
    %v1175 = vpop.f32.mrf.mxu0
    %v1176 = vadd.f32 0.0, %v1175
    %v1177 = vpop.f32.mrf.mxu0
    %1178 = vdwg.mxu0
    %vm1179 = vcmask 64512
    %v1180 = vsel %vm1179, %v981, -inf
    %1181 = vmax.xlane.f32.xlu0 %v1180
    %v1182 = vpop.xlane.xlu0 %1181
    %v1183 = vsel %vm1179, %v994, -inf
    %1184 = vmax.xlane.f32.xlu0 %v1183
    %v1185 = vpop.xlane.xlu0 %1184
    %v1186 = vsel %vm1179, %v1007, -inf
    %1187 = vmax.xlane.f32.xlu0 %v1186
    %v1188 = vpop.xlane.xlu0 %1187
    %v1189 = vsel %vm1179, %v1020, -inf
    %1190 = vmax.xlane.f32.xlu0 %v1189
    %v1191 = vpop.xlane.xlu0 %1190
    %v1192 = vsel %vm1179, %v1033, -inf
    %1193 = vmax.xlane.f32.xlu0 %v1192
    %v1194 = vpop.xlane.xlu0 %1193
    %v1195 = vsel %vm1179, %v1046, -inf
    %1196 = vmax.xlane.f32.xlu0 %v1195
    %v1197 = vpop.xlane.xlu0 %1196
    %v1198 = vsel %vm1179, %v1059, -inf
    %1199 = vmax.xlane.f32.xlu0 %v1198
    %v1200 = vpop.xlane.xlu0 %1199
    %v1201 = vsel %vm1179, %v1072, -inf
    %1202 = vmax.xlane.f32.xlu0 %v1201
    %v1203 = vpop.xlane.xlu0 %1202
    %v1204 = vsel %vm1179, %v1085, -inf
    %1205 = vmax.xlane.f32.xlu0 %v1204
    %v1206 = vpop.xlane.xlu0 %1205
    %v1207 = vsel %vm1179, %v1098, -inf
    %1208 = vmax.xlane.f32.xlu0 %v1207
    %v1209 = vpop.xlane.xlu0 %1208
    %v1210 = vsel %vm1179, %v1111, -inf
    %1211 = vmax.xlane.f32.xlu0 %v1210
    %v1212 = vpop.xlane.xlu0 %1211
    %v1213 = vsel %vm1179, %v1124, -inf
    %1214 = vmax.xlane.f32.xlu0 %v1213
    %v1215 = vpop.xlane.xlu0 %1214
    %v1216 = vsel %vm1179, %v1137, -inf
    %1217 = vmax.xlane.f32.xlu0 %v1216
    %v1218 = vpop.xlane.xlu0 %1217
    %v1219 = vsel %vm1179, %v1150, -inf
    %1220 = vmax.xlane.f32.xlu0 %v1219
    %v1221 = vpop.xlane.xlu0 %1220
    %v1222 = vsel %vm1179, %v1163, -inf
    %1223 = vmax.xlane.f32.xlu0 %v1222
    %v1224 = vpop.xlane.xlu0 %1223
    %v1225 = vsel %vm1179, %v1176, -inf
    %1226 = vmax.xlane.f32.xlu0 %v1225
    %v1227 = vpop.xlane.xlu0 %1226
    %v1228 = vsub.f32 %v981, %v1182
    %v1229 = vsub.f32 %v994, %v1185
    %v1230 = vsub.f32 %v1007, %v1188
    %v1231 = vsub.f32 %v1020, %v1191
    %v1232 = vsub.f32 %v1033, %v1194
    %v1233 = vsub.f32 %v1046, %v1197
    %v1234 = vsub.f32 %v1059, %v1200
    %v1235 = vsub.f32 %v1072, %v1203
    %v1236 = vsub.f32 %v1085, %v1206
    %v1237 = vsub.f32 %v1098, %v1209
    %v1238 = vsub.f32 %v1111, %v1212
    %v1239 = vsub.f32 %v1124, %v1215
    %v1240 = vsub.f32 %v1137, %v1218
    %v1241 = vsub.f32 %v1150, %v1221
    %v1242 = vsub.f32 %v1163, %v1224
    %v1243 = vsub.f32 %v1176, %v1227
    %v1244 = vmul.f32 %v1228, 1.442695
    %v1245 = vpow.pop %v1244
    %v1246 = vmul.f32 %v1229, 1.442695
    %v1247 = vpow.pop %v1246
    %v1248 = vmul.f32 %v1230, 1.442695
    %v1249 = vpow.pop %v1248
    %v1250 = vmul.f32 %v1231, 1.442695
    %v1251 = vpow.pop %v1250
    %v1252 = vmul.f32 %v1232, 1.442695
    %v1253 = vpow.pop %v1252
    %v1254 = vmul.f32 %v1233, 1.442695
    %v1255 = vpow.pop %v1254
    %v1256 = vmul.f32 %v1234, 1.442695
    %v1257 = vpow.pop %v1256
    %v1258 = vmul.f32 %v1235, 1.442695
    %v1259 = vpow.pop %v1258
    %v1260 = vmul.f32 %v1236, 1.442695
    %v1261 = vpow.pop %v1260
    %v1262 = vmul.f32 %v1237, 1.442695
    %v1263 = vpow.pop %v1262
    %v1264 = vmul.f32 %v1238, 1.442695
    %v1265 = vpow.pop %v1264
    %v1266 = vmul.f32 %v1239, 1.442695
    %v1267 = vpow.pop %v1266
    %v1268 = vmul.f32 %v1240, 1.442695
    %v1269 = vpow.pop %v1268
    %v1270 = vmul.f32 %v1241, 1.442695
    %v1271 = vpow.pop %v1270
    %v1272 = vmul.f32 %v1242, 1.442695
    %v1273 = vpow.pop %v1272
    %v1274 = vmul.f32 %v1243, 1.442695
    %v1275 = vpow.pop %v1274
    %v1276 = vsel %vm1179, %v1245, 0.0
    %1277 = vadd.xlane.f32.xlu0 %v1276
    %v1278 = vpop.xlane.xlu0 %1277
    %v1279 = vsel %vm1179, %v1247, 0.0
    %1280 = vadd.xlane.f32.xlu0 %v1279
    %v1281 = vpop.xlane.xlu0 %1280
    %v1282 = vsel %vm1179, %v1249, 0.0
    %1283 = vadd.xlane.f32.xlu0 %v1282
    %v1284 = vpop.xlane.xlu0 %1283
    %v1285 = vsel %vm1179, %v1251, 0.0
    %1286 = vadd.xlane.f32.xlu0 %v1285
    %v1287 = vpop.xlane.xlu0 %1286
    %v1288 = vsel %vm1179, %v1253, 0.0
    %1289 = vadd.xlane.f32.xlu0 %v1288
    %v1290 = vpop.xlane.xlu0 %1289
    %v1291 = vsel %vm1179, %v1255, 0.0
    %1292 = vadd.xlane.f32.xlu0 %v1291
    %v1293 = vpop.xlane.xlu0 %1292
    %v1294 = vsel %vm1179, %v1257, 0.0
    %1295 = vadd.xlane.f32.xlu0 %v1294
    %v1296 = vpop.xlane.xlu0 %1295
    %v1297 = vsel %vm1179, %v1259, 0.0
    %1298 = vadd.xlane.f32.xlu0 %v1297
    %v1299 = vpop.xlane.xlu0 %1298
    %v1300 = vsel %vm1179, %v1261, 0.0
    %1301 = vadd.xlane.f32.xlu0 %v1300
    %v1302 = vpop.xlane.xlu0 %1301
    %v1303 = vsel %vm1179, %v1263, 0.0
    %1304 = vadd.xlane.f32.xlu0 %v1303
    %v1305 = vpop.xlane.xlu0 %1304
    %v1306 = vsel %vm1179, %v1265, 0.0
    %1307 = vadd.xlane.f32.xlu0 %v1306
    %v1308 = vpop.xlane.xlu0 %1307
    %v1309 = vsel %vm1179, %v1267, 0.0
    %1310 = vadd.xlane.f32.xlu0 %v1309
    %v1311 = vpop.xlane.xlu0 %1310
    %v1312 = vsel %vm1179, %v1269, 0.0
    %1313 = vadd.xlane.f32.xlu0 %v1312
    %v1314 = vpop.xlane.xlu0 %1313
    %v1315 = vsel %vm1179, %v1271, 0.0
    %1316 = vadd.xlane.f32.xlu0 %v1315
    %v1317 = vpop.xlane.xlu0 %1316
    %v1318 = vsel %vm1179, %v1273, 0.0
    %1319 = vadd.xlane.f32.xlu0 %v1318
    %v1320 = vpop.xlane.xlu0 %1319
    %v1321 = vsel %vm1179, %v1275, 0.0
    %1322 = vadd.xlane.f32.xlu0 %v1321
    %v1323 = vpop.xlane.xlu0 %1322
    %v1324 = vpack.c.bf16 %v1245, %v1245
    %v1325 = vpack.c.bf16 %v1247, %v1247
    %v1326 = vpack.c.bf16 %v1249, %v1249
    %v1327 = vpack.c.bf16 %v1251, %v1251
    %v1328 = vpack.c.bf16 %v1253, %v1253
    %v1329 = vpack.c.bf16 %v1255, %v1255
    %v1330 = vpack.c.bf16 %v1257, %v1257
    %v1331 = vpack.c.bf16 %v1259, %v1259
    %v1332 = vpack.c.bf16 %v1261, %v1261
    %v1333 = vpack.c.bf16 %v1263, %v1263
    %v1334 = vpack.c.bf16 %v1265, %v1265
    %v1335 = vpack.c.bf16 %v1267, %v1267
    %v1336 = vpack.c.bf16 %v1269, %v1269
    %v1337 = vpack.c.bf16 %v1271, %v1271
    %v1338 = vpack.c.bf16 %v1273, %v1273
    %v1339 = vpack.c.bf16 %v1275, %v1275
    %v1340 = vpack.c.bf16 %v884, %v884
    %v1341 = vpack.c.bf16 %v886, %v886
    %v1342 = vpack.c.bf16 %v889, %v889
    %v1343 = vpack.c.bf16 %v891, %v891
    %v1344 = vpack.c.bf16 %v894, %v894
    %v1345 = vpack.c.bf16 %v896, %v896
    %v1346 = vpack.c.bf16 %v899, %v899
    %v1347 = vpack.c.bf16 %v901, %v901
    %v1348 = vpack.c.bf16 %v904, %v904
    %v1349 = vpack.c.bf16 %v906, %v906
    %v1350 = vpack.c.bf16 %v909, %v909
    %v1351 = vpack.c.bf16 %v911, %v911
    %v1352 = vpack.c.bf16 %v914, %v914
    %v1353 = vpack.c.bf16 %v916, %v916
    %v1354 = vpack.c.bf16 %v919, %v919
    %v1355 = vpack.c.bf16 %v921, %v921
    %v1357 = vsel %vm1179, %v1324, 0
    %vm1359 = vcmask 1043456
    %v1361 = vsel %vm1359, %v1340, 0
    %1363 = vmatpush.bf16.msra.mxu0 0
    %1364 = vmatpush.bf16.msra.mxu0 0
    %1365 = vmatpush.bf16.msra.mxu0 0
    %1366 = vmatpush.bf16.msra.mxu0 0
    %1367 = vmatpush.bf16.msra.mxu0 0
    %1368 = vmatpush.bf16.msra.mxu0 0
    %1369 = vmatpush.bf16.msra.mxu0 0
    %1370 = vmatpush.bf16.msra.mxu0 %v1361
    %1371 = vmatmul.bf16.gmra.mxu0 %v1357
    %v1372 = vpop.f32.mrf.mxu0
    %v1373 = vadd.f32 0.0, %v1372
    %v1374 = vpop.f32.mrf.mxu0
    %1375 = vdwg.mxu0
    %v1377 = vsel %vm1179, %v1325, 0
    %v1380 = vsel %vm1359, %v1341, 0
    %1382 = vmatpush.bf16.msra.mxu0 0
    %1383 = vmatpush.bf16.msra.mxu0 0
    %1384 = vmatpush.bf16.msra.mxu0 0
    %1385 = vmatpush.bf16.msra.mxu0 0
    %1386 = vmatpush.bf16.msra.mxu0 0
    %1387 = vmatpush.bf16.msra.mxu0 0
    %1388 = vmatpush.bf16.msra.mxu0 0
    %1389 = vmatpush.bf16.msra.mxu0 %v1380
    %1390 = vmatmul.bf16.gmra.mxu0 %v1377
    %v1391 = vpop.f32.mrf.mxu0
    %v1392 = vadd.f32 0.0, %v1391
    %v1393 = vpop.f32.mrf.mxu0
    %1394 = vdwg.mxu0
    %v1396 = vsel %vm1179, %v1326, 0
    %v1399 = vsel %vm1359, %v1342, 0
    %1401 = vmatpush.bf16.msra.mxu0 0
    %1402 = vmatpush.bf16.msra.mxu0 0
    %1403 = vmatpush.bf16.msra.mxu0 0
    %1404 = vmatpush.bf16.msra.mxu0 0
    %1405 = vmatpush.bf16.msra.mxu0 0
    %1406 = vmatpush.bf16.msra.mxu0 0
    %1407 = vmatpush.bf16.msra.mxu0 0
    %1408 = vmatpush.bf16.msra.mxu0 %v1399
    %1409 = vmatmul.bf16.gmra.mxu0 %v1396
    %v1410 = vpop.f32.mrf.mxu0
    %v1411 = vadd.f32 0.0, %v1410
    %v1412 = vpop.f32.mrf.mxu0
    %1413 = vdwg.mxu0
    %v1415 = vsel %vm1179, %v1327, 0
    %v1418 = vsel %vm1359, %v1343, 0
    %1420 = vmatpush.bf16.msra.mxu0 0
    %1421 = vmatpush.bf16.msra.mxu0 0
    %1422 = vmatpush.bf16.msra.mxu0 0
    %1423 = vmatpush.bf16.msra.mxu0 0
    %1424 = vmatpush.bf16.msra.mxu0 0
    %1425 = vmatpush.bf16.msra.mxu0 0
    %1426 = vmatpush.bf16.msra.mxu0 0
    %1427 = vmatpush.bf16.msra.mxu0 %v1418
    %1428 = vmatmul.bf16.gmra.mxu0 %v1415
    %v1429 = vpop.f32.mrf.mxu0
    %v1430 = vadd.f32 0.0, %v1429
    %v1431 = vpop.f32.mrf.mxu0
    %1432 = vdwg.mxu0
    %v1434 = vsel %vm1179, %v1328, 0
    %v1437 = vsel %vm1359, %v1344, 0
    %1439 = vmatpush.bf16.msra.mxu0 0
    %1440 = vmatpush.bf16.msra.mxu0 0
    %1441 = vmatpush.bf16.msra.mxu0 0
    %1442 = vmatpush.bf16.msra.mxu0 0
    %1443 = vmatpush.bf16.msra.mxu0 0
    %1444 = vmatpush.bf16.msra.mxu0 0
    %1445 = vmatpush.bf16.msra.mxu0 0
    %1446 = vmatpush.bf16.msra.mxu0 %v1437
    %1447 = vmatmul.bf16.gmra.mxu0 %v1434
    %v1448 = vpop.f32.mrf.mxu0
    %v1449 = vadd.f32 0.0, %v1448
    %v1450 = vpop.f32.mrf.mxu0
    %1451 = vdwg.mxu0
    %v1453 = vsel %vm1179, %v1329, 0
    %v1456 = vsel %vm1359, %v1345, 0
    %1458 = vmatpush.bf16.msra.mxu0 0
    %1459 = vmatpush.bf16.msra.mxu0 0
    %1460 = vmatpush.bf16.msra.mxu0 0
    %1461 = vmatpush.bf16.msra.mxu0 0
    %1462 = vmatpush.bf16.msra.mxu0 0
    %1463 = vmatpush.bf16.msra.mxu0 0
    %1464 = vmatpush.bf16.msra.mxu0 0
    %1465 = vmatpush.bf16.msra.mxu0 %v1456
    %1466 = vmatmul.bf16.gmra.mxu0 %v1453
    %v1467 = vpop.f32.mrf.mxu0
    %v1468 = vadd.f32 0.0, %v1467
    %v1469 = vpop.f32.mrf.mxu0
    %1470 = vdwg.mxu0
    %v1472 = vsel %vm1179, %v1330, 0
    %v1475 = vsel %vm1359, %v1346, 0
    %1477 = vmatpush.bf16.msra.mxu0 0
    %1478 = vmatpush.bf16.msra.mxu0 0
    %1479 = vmatpush.bf16.msra.mxu0 0
    %1480 = vmatpush.bf16.msra.mxu0 0
    %1481 = vmatpush.bf16.msra.mxu0 0
    %1482 = vmatpush.bf16.msra.mxu0 0
    %1483 = vmatpush.bf16.msra.mxu0 0
    %1484 = vmatpush.bf16.msra.mxu0 %v1475
    %1485 = vmatmul.bf16.gmra.mxu0 %v1472
    %v1486 = vpop.f32.mrf.mxu0
    %v1487 = vadd.f32 0.0, %v1486
    %v1488 = vpop.f32.mrf.mxu0
    %1489 = vdwg.mxu0
    %v1491 = vsel %vm1179, %v1331, 0
    %v1494 = vsel %vm1359, %v1347, 0
    %1496 = vmatpush.bf16.msra.mxu0 0
    %1497 = vmatpush.bf16.msra.mxu0 0
    %1498 = vmatpush.bf16.msra.mxu0 0
    %1499 = vmatpush.bf16.msra.mxu0 0
    %1500 = vmatpush.bf16.msra.mxu0 0
    %1501 = vmatpush.bf16.msra.mxu0 0
    %1502 = vmatpush.bf16.msra.mxu0 0
    %1503 = vmatpush.bf16.msra.mxu0 %v1494
    %1504 = vmatmul.bf16.gmra.mxu0 %v1491
    %v1505 = vpop.f32.mrf.mxu0
    %v1506 = vadd.f32 0.0, %v1505
    %v1507 = vpop.f32.mrf.mxu0
    %1508 = vdwg.mxu0
    %v1510 = vsel %vm1179, %v1332, 0
    %v1513 = vsel %vm1359, %v1348, 0
    %1515 = vmatpush.bf16.msra.mxu0 0
    %1516 = vmatpush.bf16.msra.mxu0 0
    %1517 = vmatpush.bf16.msra.mxu0 0
    %1518 = vmatpush.bf16.msra.mxu0 0
    %1519 = vmatpush.bf16.msra.mxu0 0
    %1520 = vmatpush.bf16.msra.mxu0 0
    %1521 = vmatpush.bf16.msra.mxu0 0
    %1522 = vmatpush.bf16.msra.mxu0 %v1513
    %1523 = vmatmul.bf16.gmra.mxu0 %v1510
    %v1524 = vpop.f32.mrf.mxu0
    %v1525 = vadd.f32 0.0, %v1524
    %v1526 = vpop.f32.mrf.mxu0
    %1527 = vdwg.mxu0
    %v1529 = vsel %vm1179, %v1333, 0
    %v1532 = vsel %vm1359, %v1349, 0
    %1534 = vmatpush.bf16.msra.mxu0 0
    %1535 = vmatpush.bf16.msra.mxu0 0
    %1536 = vmatpush.bf16.msra.mxu0 0
    %1537 = vmatpush.bf16.msra.mxu0 0
    %1538 = vmatpush.bf16.msra.mxu0 0
    %1539 = vmatpush.bf16.msra.mxu0 0
    %1540 = vmatpush.bf16.msra.mxu0 0
    %1541 = vmatpush.bf16.msra.mxu0 %v1532
    %1542 = vmatmul.bf16.gmra.mxu0 %v1529
    %v1543 = vpop.f32.mrf.mxu0
    %v1544 = vadd.f32 0.0, %v1543
    %v1545 = vpop.f32.mrf.mxu0
    %1546 = vdwg.mxu0
    %v1548 = vsel %vm1179, %v1334, 0
    %v1551 = vsel %vm1359, %v1350, 0
    %1553 = vmatpush.bf16.msra.mxu0 0
    %1554 = vmatpush.bf16.msra.mxu0 0
    %1555 = vmatpush.bf16.msra.mxu0 0
    %1556 = vmatpush.bf16.msra.mxu0 0
    %1557 = vmatpush.bf16.msra.mxu0 0
    %1558 = vmatpush.bf16.msra.mxu0 0
    %1559 = vmatpush.bf16.msra.mxu0 0
    %1560 = vmatpush.bf16.msra.mxu0 %v1551
    %1561 = vmatmul.bf16.gmra.mxu0 %v1548
    %v1562 = vpop.f32.mrf.mxu0
    %v1563 = vadd.f32 0.0, %v1562
    %v1564 = vpop.f32.mrf.mxu0
    %1565 = vdwg.mxu0
    %v1567 = vsel %vm1179, %v1335, 0
    %v1570 = vsel %vm1359, %v1351, 0
    %1572 = vmatpush.bf16.msra.mxu0 0
    %1573 = vmatpush.bf16.msra.mxu0 0
    %1574 = vmatpush.bf16.msra.mxu0 0
    %1575 = vmatpush.bf16.msra.mxu0 0
    %1576 = vmatpush.bf16.msra.mxu0 0
    %1577 = vmatpush.bf16.msra.mxu0 0
    %1578 = vmatpush.bf16.msra.mxu0 0
    %1579 = vmatpush.bf16.msra.mxu0 %v1570
    %1580 = vmatmul.bf16.gmra.mxu0 %v1567
    %v1581 = vpop.f32.mrf.mxu0
    %v1582 = vadd.f32 0.0, %v1581
    %v1583 = vpop.f32.mrf.mxu0
    %1584 = vdwg.mxu0
    %v1586 = vsel %vm1179, %v1336, 0
    %v1589 = vsel %vm1359, %v1352, 0
    %1591 = vmatpush.bf16.msra.mxu0 0
    %1592 = vmatpush.bf16.msra.mxu0 0
    %1593 = vmatpush.bf16.msra.mxu0 0
    %1594 = vmatpush.bf16.msra.mxu0 0
    %1595 = vmatpush.bf16.msra.mxu0 0
    %1596 = vmatpush.bf16.msra.mxu0 0
    %1597 = vmatpush.bf16.msra.mxu0 0
    %1598 = vmatpush.bf16.msra.mxu0 %v1589
    %1599 = vmatmul.bf16.gmra.mxu0 %v1586
    %v1600 = vpop.f32.mrf.mxu0
    %v1601 = vadd.f32 0.0, %v1600
    %v1602 = vpop.f32.mrf.mxu0
    %1603 = vdwg.mxu0
    %v1605 = vsel %vm1179, %v1337, 0
    %v1608 = vsel %vm1359, %v1353, 0
    %1610 = vmatpush.bf16.msra.mxu0 0
    %1611 = vmatpush.bf16.msra.mxu0 0
    %1612 = vmatpush.bf16.msra.mxu0 0
    %1613 = vmatpush.bf16.msra.mxu0 0
    %1614 = vmatpush.bf16.msra.mxu0 0
    %1615 = vmatpush.bf16.msra.mxu0 0
    %1616 = vmatpush.bf16.msra.mxu0 0
    %1617 = vmatpush.bf16.msra.mxu0 %v1608
    %1618 = vmatmul.bf16.gmra.mxu0 %v1605
    %v1619 = vpop.f32.mrf.mxu0
    %v1620 = vadd.f32 0.0, %v1619
    %v1621 = vpop.f32.mrf.mxu0
    %1622 = vdwg.mxu0
    %v1624 = vsel %vm1179, %v1338, 0
    %v1627 = vsel %vm1359, %v1354, 0
    %1629 = vmatpush.bf16.msra.mxu0 0
    %1630 = vmatpush.bf16.msra.mxu0 0
    %1631 = vmatpush.bf16.msra.mxu0 0
    %1632 = vmatpush.bf16.msra.mxu0 0
    %1633 = vmatpush.bf16.msra.mxu0 0
    %1634 = vmatpush.bf16.msra.mxu0 0
    %1635 = vmatpush.bf16.msra.mxu0 0
    %1636 = vmatpush.bf16.msra.mxu0 %v1627
    %1637 = vmatmul.bf16.gmra.mxu0 %v1624
    %v1638 = vpop.f32.mrf.mxu0
    %v1639 = vadd.f32 0.0, %v1638
    %v1640 = vpop.f32.mrf.mxu0
    %1641 = vdwg.mxu0
    %v1643 = vsel %vm1179, %v1339, 0
    %v1646 = vsel %vm1359, %v1355, 0
    %1648 = vmatpush.bf16.msra.mxu0 0
    %1649 = vmatpush.bf16.msra.mxu0 0
    %1650 = vmatpush.bf16.msra.mxu0 0
    %1651 = vmatpush.bf16.msra.mxu0 0
    %1652 = vmatpush.bf16.msra.mxu0 0
    %1653 = vmatpush.bf16.msra.mxu0 0
    %1654 = vmatpush.bf16.msra.mxu0 0
    %1655 = vmatpush.bf16.msra.mxu0 %v1646
    %1656 = vmatmul.bf16.gmra.mxu0 %v1643
    %v1657 = vpop.f32.mrf.mxu0
    %v1658 = vadd.f32 0.0, %v1657
    %v1659 = vpop.f32.mrf.mxu0
    %1660 = vdwg.mxu0
    %v1661 = vrcp.pop %v1278
    %v1662 = vrcp.pop %v1281
    %v1663 = vrcp.pop %v1284
    %v1664 = vrcp.pop %v1287
    %v1665 = vrcp.pop %v1290
    %v1666 = vrcp.pop %v1293
    %v1667 = vrcp.pop %v1296
    %v1668 = vrcp.pop %v1299
    %v1669 = vrcp.pop %v1302
    %v1670 = vrcp.pop %v1305
    %v1671 = vrcp.pop %v1308
    %v1672 = vrcp.pop %v1311
    %v1673 = vrcp.pop %v1314
    %v1674 = vrcp.pop %v1317
    %v1675 = vrcp.pop %v1320
    %v1676 = vrcp.pop %v1323
    %v1677 = vmul.f32 %v1373, %v1661
    %v1678 = vmul.f32 %v1392, %v1662
    %v1679 = vmul.f32 %v1411, %v1663
    %v1680 = vmul.f32 %v1430, %v1664
    %v1681 = vmul.f32 %v1449, %v1665
    %v1682 = vmul.f32 %v1468, %v1666
    %v1683 = vmul.f32 %v1487, %v1667
    %v1684 = vmul.f32 %v1506, %v1668
    %v1685 = vmul.f32 %v1525, %v1669
    %v1686 = vmul.f32 %v1544, %v1670
    %v1687 = vmul.f32 %v1563, %v1671
    %v1688 = vmul.f32 %v1582, %v1672
    %v1689 = vmul.f32 %v1601, %v1673
    %v1690 = vmul.f32 %v1620, %v1674
    %v1691 = vmul.f32 %v1639, %v1675
    %v1692 = vmul.f32 %v1658, %v1676
    %v1693 = vpack.c.bf16 %v1678, %v1677
    %v1694 = vpack.c.bf16 %v1680, %v1679
    %v1695 = vpack.c.bf16 %v1682, %v1681
    %v1696 = vpack.c.bf16 %v1684, %v1683
    %v1697 = vpack.c.bf16 %v1686, %v1685
    %v1698 = vpack.c.bf16 %v1688, %v1687
    %v1699 = vpack.c.bf16 %v1690, %v1689
    %v1700 = vpack.c.bf16 %v1692, %v1691
    %v1701 = vld [vmem:[%s8] sm:$0xf]
    %v1702 = vld [vmem:[%s8 + $0x4] sm:$0xf]
    %v1703 = vld [vmem:[%s8 + $0x8] sm:$0xf]
    %v1704 = vld [vmem:[%s8 + $0xc] sm:$0xf]
    %v1705 = vld [vmem:[%s8 + $0x10] sm:$0xf]
    %v1706 = vld [vmem:[%s8 + $0x14] sm:$0xf]
    %v1707 = vld [vmem:[%s8 + $0x18] sm:$0xf]
    %v1708 = vld [vmem:[%s8 + $0x1c] sm:$0xf]
    %v1709 = vld [vmem:[%s8 + $0x20] sm:$0xf]
    %v1710 = vld [vmem:[%s8 + $0x24] sm:$0xf]
    %v1711 = vld [vmem:[%s8 + $0x28] sm:$0xf]
    %v1712 = vld [vmem:[%s8 + $0x2c] sm:$0xf]
    %v1713 = vld [vmem:[%s8 + $0x30] sm:$0xf]
    %v1714 = vld [vmem:[%s8 + $0x34] sm:$0xf]
    %v1715 = vld [vmem:[%s8 + $0x38] sm:$0xf]
    %v1716 = vld [vmem:[%s8 + $0x3c] sm:$0xf]
    %v1733 = vunpack.c.l.b16 %v1701
    %v1734 = vunpack.c.l.b16 %v1702
    %v1735 = vunpack.c.l.b16 %v1703
    %v1736 = vunpack.c.l.b16 %v1704
    %v1737 = vunpack.c.l.b16 %v1705
    %v1738 = vunpack.c.l.b16 %v1706
    %v1739 = vunpack.c.l.b16 %v1707
    %v1740 = vunpack.c.l.b16 %v1708
    %v1741 = vunpack.c.l.b16 %v1709
    %v1742 = vunpack.c.l.b16 %v1710
    %v1743 = vunpack.c.l.b16 %v1711
    %v1744 = vunpack.c.l.b16 %v1712
    %v1745 = vunpack.c.l.b16 %v1713
    %v1746 = vunpack.c.l.b16 %v1714
    %v1747 = vunpack.c.l.b16 %v1715
    %v1748 = vunpack.c.l.b16 %v1716
    %v1749 = vpack.c.b16 %v1734, %v1733
    %v1750 = vpack.c.b16 %v1736, %v1735
    %v1751 = vpack.c.b16 %v1738, %v1737
    %v1752 = vpack.c.b16 %v1740, %v1739
    %v1753 = vpack.c.b16 %v1742, %v1741
    %v1754 = vpack.c.b16 %v1744, %v1743
    %v1755 = vpack.c.b16 %v1746, %v1745
    %v1756 = vpack.c.b16 %v1748, %v1747
    %1765 = vmatpush.bf16.msra.mxu0 %v1756
    %1766 = vmatpush.bf16.msra.mxu0 %v1755
    %1767 = vmatpush.bf16.msra.mxu0 %v1754
    %1768 = vmatpush.bf16.msra.mxu0 %v1753
    %1769 = vmatpush.bf16.msra.mxu0 %v1752
    %1770 = vmatpush.bf16.msra.mxu0 %v1751
    %1771 = vmatpush.bf16.msra.mxu0 %v1750
    %1772 = vmatpush.bf16.msra.mxu0 %v1749
    %1773 = vmatmul.bf16.gmra.mxu0 %v1693
    %v1774 = vpop.f32.mrf.mxu0
    %v1775 = vadd.f32 0.0, %v1774
    %v1776 = vpop.f32.mrf.mxu0
    %v1777 = vadd.f32 0.0, %v1776
    %1778 = vmatmul.bf16.gmra.mxu0 %v1694
    %v1779 = vpop.f32.mrf.mxu0
    %v1780 = vadd.f32 0.0, %v1779
    %v1781 = vpop.f32.mrf.mxu0
    %v1782 = vadd.f32 0.0, %v1781
    %1783 = vmatmul.bf16.gmra.mxu0 %v1695
    %v1784 = vpop.f32.mrf.mxu0
    %v1785 = vadd.f32 0.0, %v1784
    %v1786 = vpop.f32.mrf.mxu0
    %v1787 = vadd.f32 0.0, %v1786
    %1788 = vmatmul.bf16.gmra.mxu0 %v1696
    %v1789 = vpop.f32.mrf.mxu0
    %v1790 = vadd.f32 0.0, %v1789
    %v1791 = vpop.f32.mrf.mxu0
    %v1792 = vadd.f32 0.0, %v1791
    %1793 = vmatmul.bf16.gmra.mxu0 %v1697
    %v1794 = vpop.f32.mrf.mxu0
    %v1795 = vadd.f32 0.0, %v1794
    %v1796 = vpop.f32.mrf.mxu0
    %v1797 = vadd.f32 0.0, %v1796
    %1798 = vmatmul.bf16.gmra.mxu0 %v1698
    %v1799 = vpop.f32.mrf.mxu0
    %v1800 = vadd.f32 0.0, %v1799
    %v1801 = vpop.f32.mrf.mxu0
    %v1802 = vadd.f32 0.0, %v1801
    %1803 = vmatmul.bf16.gmra.mxu0 %v1699
    %v1804 = vpop.f32.mrf.mxu0
    %v1805 = vadd.f32 0.0, %v1804
    %v1806 = vpop.f32.mrf.mxu0
    %v1807 = vadd.f32 0.0, %v1806
    %1808 = vmatmul.bf16.gmra.mxu0 %v1700
    %v1809 = vpop.f32.mrf.mxu0
    %v1810 = vadd.f32 0.0, %v1809
    %v1811 = vpop.f32.mrf.mxu0
    %v1812 = vadd.f32 0.0, %v1811
    %1813 = vdwg.mxu0
    %v1814 = vadd.f32 %v170, %v1775
    %v1815 = vadd.f32 %v172, %v1777
    %v1816 = vadd.f32 %v175, %v1780
    %v1817 = vadd.f32 %v177, %v1782
    %v1818 = vadd.f32 %v180, %v1785
    %v1819 = vadd.f32 %v182, %v1787
    %v1820 = vadd.f32 %v185, %v1790
    %v1821 = vadd.f32 %v187, %v1792
    %v1822 = vadd.f32 %v190, %v1795
    %v1823 = vadd.f32 %v192, %v1797
    %v1824 = vadd.f32 %v195, %v1800
    %v1825 = vadd.f32 %v197, %v1802
    %v1826 = vadd.f32 %v200, %v1805
    %v1827 = vadd.f32 %v202, %v1807
    %v1828 = vadd.f32 %v205, %v1810
    %v1829 = vadd.f32 %v207, %v1812
    %v1830 = vld [vmem:[%s9] sm:$0x1]
    %v1831 = vld [vmem:[%s10] sm:$0x1]
    %1832 = vadd.xlane.f32.xlu0 %v1814
    %v1833 = vpop.xlane.xlu0 %1832
    %1834 = vadd.xlane.f32.xlu0 %v1815
    %v1835 = vpop.xlane.xlu0 %1834
    %1836 = vadd.xlane.f32.xlu0 %v1816
    %v1837 = vpop.xlane.xlu0 %1836
    %1838 = vadd.xlane.f32.xlu0 %v1817
    %v1839 = vpop.xlane.xlu0 %1838
    %1840 = vadd.xlane.f32.xlu0 %v1818
    %v1841 = vpop.xlane.xlu0 %1840
    %1842 = vadd.xlane.f32.xlu0 %v1819
    %v1843 = vpop.xlane.xlu0 %1842
    %1844 = vadd.xlane.f32.xlu0 %v1820
    %v1845 = vpop.xlane.xlu0 %1844
    %1846 = vadd.xlane.f32.xlu0 %v1821
    %v1847 = vpop.xlane.xlu0 %1846
    %1848 = vadd.xlane.f32.xlu0 %v1822
    %v1849 = vpop.xlane.xlu0 %1848
    %1850 = vadd.xlane.f32.xlu0 %v1823
    %v1851 = vpop.xlane.xlu0 %1850
    %1852 = vadd.xlane.f32.xlu0 %v1824
    %v1853 = vpop.xlane.xlu0 %1852
    %1854 = vadd.xlane.f32.xlu0 %v1825
    %v1855 = vpop.xlane.xlu0 %1854
    %1856 = vadd.xlane.f32.xlu0 %v1826
    %v1857 = vpop.xlane.xlu0 %1856
    %1858 = vadd.xlane.f32.xlu0 %v1827
    %v1859 = vpop.xlane.xlu0 %1858
    %1860 = vadd.xlane.f32.xlu0 %v1828
    %v1861 = vpop.xlane.xlu0 %1860
    %1862 = vadd.xlane.f32.xlu0 %v1829
    %v1863 = vpop.xlane.xlu0 %1862
    %v1864 = vmul.f32 %v1833, %v249
    %v1865 = vmul.f32 %v1835, %v249
    %v1866 = vmul.f32 %v1837, %v249
    %v1867 = vmul.f32 %v1839, %v249
    %v1868 = vmul.f32 %v1841, %v249
    %v1869 = vmul.f32 %v1843, %v249
    %v1870 = vmul.f32 %v1845, %v249
    %v1871 = vmul.f32 %v1847, %v249
    %v1872 = vmul.f32 %v1849, %v249
    %v1873 = vmul.f32 %v1851, %v249
    %v1874 = vmul.f32 %v1853, %v249
    %v1875 = vmul.f32 %v1855, %v249
    %v1876 = vmul.f32 %v1857, %v249
    %v1877 = vmul.f32 %v1859, %v249
    %v1878 = vmul.f32 %v1861, %v249
    %v1879 = vmul.f32 %v1863, %v249
    %v1880 = vsub.f32 %v1814, %v1864
    %v1881 = vsub.f32 %v1815, %v1865
    %v1882 = vsub.f32 %v1816, %v1866
    %v1883 = vsub.f32 %v1817, %v1867
    %v1884 = vsub.f32 %v1818, %v1868
    %v1885 = vsub.f32 %v1819, %v1869
    %v1886 = vsub.f32 %v1820, %v1870
    %v1887 = vsub.f32 %v1821, %v1871
    %v1888 = vsub.f32 %v1822, %v1872
    %v1889 = vsub.f32 %v1823, %v1873
    %v1890 = vsub.f32 %v1824, %v1874
    %v1891 = vsub.f32 %v1825, %v1875
    %v1892 = vsub.f32 %v1826, %v1876
    %v1893 = vsub.f32 %v1827, %v1877
    %v1894 = vsub.f32 %v1828, %v1878
    %v1895 = vsub.f32 %v1829, %v1879
    %v1896 = vmul.f32 %v1880, %v1880
    %v1897 = vmul.f32 %v1881, %v1881
    %v1898 = vmul.f32 %v1882, %v1882
    %v1899 = vmul.f32 %v1883, %v1883
    %v1900 = vmul.f32 %v1884, %v1884
    %v1901 = vmul.f32 %v1885, %v1885
    %v1902 = vmul.f32 %v1886, %v1886
    %v1903 = vmul.f32 %v1887, %v1887
    %v1904 = vmul.f32 %v1888, %v1888
    %v1905 = vmul.f32 %v1889, %v1889
    %v1906 = vmul.f32 %v1890, %v1890
    %v1907 = vmul.f32 %v1891, %v1891
    %v1908 = vmul.f32 %v1892, %v1892
    %v1909 = vmul.f32 %v1893, %v1893
    %v1910 = vmul.f32 %v1894, %v1894
    %v1911 = vmul.f32 %v1895, %v1895
    %1912 = vadd.xlane.f32.xlu0 %v1896
    %v1913 = vpop.xlane.xlu0 %1912
    %1914 = vadd.xlane.f32.xlu0 %v1897
    %v1915 = vpop.xlane.xlu0 %1914
    %1916 = vadd.xlane.f32.xlu0 %v1898
    %v1917 = vpop.xlane.xlu0 %1916
    %1918 = vadd.xlane.f32.xlu0 %v1899
    %v1919 = vpop.xlane.xlu0 %1918
    %1920 = vadd.xlane.f32.xlu0 %v1900
    %v1921 = vpop.xlane.xlu0 %1920
    %1922 = vadd.xlane.f32.xlu0 %v1901
    %v1923 = vpop.xlane.xlu0 %1922
    %1924 = vadd.xlane.f32.xlu0 %v1902
    %v1925 = vpop.xlane.xlu0 %1924
    %1926 = vadd.xlane.f32.xlu0 %v1903
    %v1927 = vpop.xlane.xlu0 %1926
    %1928 = vadd.xlane.f32.xlu0 %v1904
    %v1929 = vpop.xlane.xlu0 %1928
    %1930 = vadd.xlane.f32.xlu0 %v1905
    %v1931 = vpop.xlane.xlu0 %1930
    %1932 = vadd.xlane.f32.xlu0 %v1906
    %v1933 = vpop.xlane.xlu0 %1932
    %1934 = vadd.xlane.f32.xlu0 %v1907
    %v1935 = vpop.xlane.xlu0 %1934
    %1936 = vadd.xlane.f32.xlu0 %v1908
    %v1937 = vpop.xlane.xlu0 %1936
    %1938 = vadd.xlane.f32.xlu0 %v1909
    %v1939 = vpop.xlane.xlu0 %1938
    %1940 = vadd.xlane.f32.xlu0 %v1910
    %v1941 = vpop.xlane.xlu0 %1940
    %1942 = vadd.xlane.f32.xlu0 %v1911
    %v1943 = vpop.xlane.xlu0 %1942
    %v1944 = vmul.f32 %v1913, %v249
    %v1945 = vmul.f32 %v1915, %v249
    %v1946 = vmul.f32 %v1917, %v249
    %v1947 = vmul.f32 %v1919, %v249
    %v1948 = vmul.f32 %v1921, %v249
    %v1949 = vmul.f32 %v1923, %v249
    %v1950 = vmul.f32 %v1925, %v249
    %v1951 = vmul.f32 %v1927, %v249
    %v1952 = vmul.f32 %v1929, %v249
    %v1953 = vmul.f32 %v1931, %v249
    %v1954 = vmul.f32 %v1933, %v249
    %v1955 = vmul.f32 %v1935, %v249
    %v1956 = vmul.f32 %v1937, %v249
    %v1957 = vmul.f32 %v1939, %v249
    %v1958 = vmul.f32 %v1941, %v249
    %v1959 = vmul.f32 %v1943, %v249
    %v1960 = vadd.f32 %v1944, 1e-06
    %v1961 = vadd.f32 %v1945, 1e-06
    %v1962 = vadd.f32 %v1946, 1e-06
    %v1963 = vadd.f32 %v1947, 1e-06
    %v1964 = vadd.f32 %v1948, 1e-06
    %v1965 = vadd.f32 %v1949, 1e-06
    %v1966 = vadd.f32 %v1950, 1e-06
    %v1967 = vadd.f32 %v1951, 1e-06
    %v1968 = vadd.f32 %v1952, 1e-06
    %v1969 = vadd.f32 %v1953, 1e-06
    %v1970 = vadd.f32 %v1954, 1e-06
    %v1971 = vadd.f32 %v1955, 1e-06
    %v1972 = vadd.f32 %v1956, 1e-06
    %v1973 = vadd.f32 %v1957, 1e-06
    %v1974 = vadd.f32 %v1958, 1e-06
    %v1975 = vadd.f32 %v1959, 1e-06
    %v1976 = vrsqrt.pop %v1960
    %v1977 = vmul.f32 %v1976, %v1960
    %v1978 = vmul.f32 %v1977, %v1976
    %v1979 = vmul.f32 0.5, %v1978
    %v1980 = vsub.f32 1.5, %v1979
    %v1981 = vmul.f32 %v1976, %v1980
    %vm1982 = vweird.f32 %v1960
    %vm1983 = vweird.f32 %v1976
    %vm1984 = vmor %vm1982, %vm1983
    %v1985 = vsel %vm1984, %v1976, %v1981
    %v1986 = vrsqrt.pop %v1961
    %v1987 = vmul.f32 %v1986, %v1961
    %v1988 = vmul.f32 %v1987, %v1986
    %v1989 = vmul.f32 0.5, %v1988
    %v1990 = vsub.f32 1.5, %v1989
    %v1991 = vmul.f32 %v1986, %v1990
    %vm1992 = vweird.f32 %v1961
    %vm1993 = vweird.f32 %v1986
    %vm1994 = vmor %vm1992, %vm1993
    %v1995 = vsel %vm1994, %v1986, %v1991
    %v1996 = vrsqrt.pop %v1962
    %v1997 = vmul.f32 %v1996, %v1962
    %v1998 = vmul.f32 %v1997, %v1996
    %v1999 = vmul.f32 0.5, %v1998
    %v2000 = vsub.f32 1.5, %v1999
    %v2001 = vmul.f32 %v1996, %v2000
    %vm2002 = vweird.f32 %v1962
    %vm2003 = vweird.f32 %v1996
    %vm2004 = vmor %vm2002, %vm2003
    %v2005 = vsel %vm2004, %v1996, %v2001
    %v2006 = vrsqrt.pop %v1963
    %v2007 = vmul.f32 %v2006, %v1963
    %v2008 = vmul.f32 %v2007, %v2006
    %v2009 = vmul.f32 0.5, %v2008
    %v2010 = vsub.f32 1.5, %v2009
    %v2011 = vmul.f32 %v2006, %v2010
    %vm2012 = vweird.f32 %v1963
    %vm2013 = vweird.f32 %v2006
    %vm2014 = vmor %vm2012, %vm2013
    %v2015 = vsel %vm2014, %v2006, %v2011
    %v2016 = vrsqrt.pop %v1964
    %v2017 = vmul.f32 %v2016, %v1964
    %v2018 = vmul.f32 %v2017, %v2016
    %v2019 = vmul.f32 0.5, %v2018
    %v2020 = vsub.f32 1.5, %v2019
    %v2021 = vmul.f32 %v2016, %v2020
    %vm2022 = vweird.f32 %v1964
    %vm2023 = vweird.f32 %v2016
    %vm2024 = vmor %vm2022, %vm2023
    %v2025 = vsel %vm2024, %v2016, %v2021
    %v2026 = vrsqrt.pop %v1965
    %v2027 = vmul.f32 %v2026, %v1965
    %v2028 = vmul.f32 %v2027, %v2026
    %v2029 = vmul.f32 0.5, %v2028
    %v2030 = vsub.f32 1.5, %v2029
    %v2031 = vmul.f32 %v2026, %v2030
    %vm2032 = vweird.f32 %v1965
    %vm2033 = vweird.f32 %v2026
    %vm2034 = vmor %vm2032, %vm2033
    %v2035 = vsel %vm2034, %v2026, %v2031
    %v2036 = vrsqrt.pop %v1966
    %v2037 = vmul.f32 %v2036, %v1966
    %v2038 = vmul.f32 %v2037, %v2036
    %v2039 = vmul.f32 0.5, %v2038
    %v2040 = vsub.f32 1.5, %v2039
    %v2041 = vmul.f32 %v2036, %v2040
    %vm2042 = vweird.f32 %v1966
    %vm2043 = vweird.f32 %v2036
    %vm2044 = vmor %vm2042, %vm2043
    %v2045 = vsel %vm2044, %v2036, %v2041
    %v2046 = vrsqrt.pop %v1967
    %v2047 = vmul.f32 %v2046, %v1967
    %v2048 = vmul.f32 %v2047, %v2046
    %v2049 = vmul.f32 0.5, %v2048
    %v2050 = vsub.f32 1.5, %v2049
    %v2051 = vmul.f32 %v2046, %v2050
    %vm2052 = vweird.f32 %v1967
    %vm2053 = vweird.f32 %v2046
    %vm2054 = vmor %vm2052, %vm2053
    %v2055 = vsel %vm2054, %v2046, %v2051
    %v2056 = vrsqrt.pop %v1968
    %v2057 = vmul.f32 %v2056, %v1968
    %v2058 = vmul.f32 %v2057, %v2056
    %v2059 = vmul.f32 0.5, %v2058
    %v2060 = vsub.f32 1.5, %v2059
    %v2061 = vmul.f32 %v2056, %v2060
    %vm2062 = vweird.f32 %v1968
    %vm2063 = vweird.f32 %v2056
    %vm2064 = vmor %vm2062, %vm2063
    %v2065 = vsel %vm2064, %v2056, %v2061
    %v2066 = vrsqrt.pop %v1969
    %v2067 = vmul.f32 %v2066, %v1969
    %v2068 = vmul.f32 %v2067, %v2066
    %v2069 = vmul.f32 0.5, %v2068
    %v2070 = vsub.f32 1.5, %v2069
    %v2071 = vmul.f32 %v2066, %v2070
    %vm2072 = vweird.f32 %v1969
    %vm2073 = vweird.f32 %v2066
    %vm2074 = vmor %vm2072, %vm2073
    %v2075 = vsel %vm2074, %v2066, %v2071
    %v2076 = vrsqrt.pop %v1970
    %v2077 = vmul.f32 %v2076, %v1970
    %v2078 = vmul.f32 %v2077, %v2076
    %v2079 = vmul.f32 0.5, %v2078
    %v2080 = vsub.f32 1.5, %v2079
    %v2081 = vmul.f32 %v2076, %v2080
    %vm2082 = vweird.f32 %v1970
    %vm2083 = vweird.f32 %v2076
    %vm2084 = vmor %vm2082, %vm2083
    %v2085 = vsel %vm2084, %v2076, %v2081
    %v2086 = vrsqrt.pop %v1971
    %v2087 = vmul.f32 %v2086, %v1971
    %v2088 = vmul.f32 %v2087, %v2086
    %v2089 = vmul.f32 0.5, %v2088
    %v2090 = vsub.f32 1.5, %v2089
    %v2091 = vmul.f32 %v2086, %v2090
    %vm2092 = vweird.f32 %v1971
    %vm2093 = vweird.f32 %v2086
    %vm2094 = vmor %vm2092, %vm2093
    %v2095 = vsel %vm2094, %v2086, %v2091
    %v2096 = vrsqrt.pop %v1972
    %v2097 = vmul.f32 %v2096, %v1972
    %v2098 = vmul.f32 %v2097, %v2096
    %v2099 = vmul.f32 0.5, %v2098
    %v2100 = vsub.f32 1.5, %v2099
    %v2101 = vmul.f32 %v2096, %v2100
    %vm2102 = vweird.f32 %v1972
    %vm2103 = vweird.f32 %v2096
    %vm2104 = vmor %vm2102, %vm2103
    %v2105 = vsel %vm2104, %v2096, %v2101
    %v2106 = vrsqrt.pop %v1973
    %v2107 = vmul.f32 %v2106, %v1973
    %v2108 = vmul.f32 %v2107, %v2106
    %v2109 = vmul.f32 0.5, %v2108
    %v2110 = vsub.f32 1.5, %v2109
    %v2111 = vmul.f32 %v2106, %v2110
    %vm2112 = vweird.f32 %v1973
    %vm2113 = vweird.f32 %v2106
    %vm2114 = vmor %vm2112, %vm2113
    %v2115 = vsel %vm2114, %v2106, %v2111
    %v2116 = vrsqrt.pop %v1974
    %v2117 = vmul.f32 %v2116, %v1974
    %v2118 = vmul.f32 %v2117, %v2116
    %v2119 = vmul.f32 0.5, %v2118
    %v2120 = vsub.f32 1.5, %v2119
    %v2121 = vmul.f32 %v2116, %v2120
    %vm2122 = vweird.f32 %v1974
    %vm2123 = vweird.f32 %v2116
    %vm2124 = vmor %vm2122, %vm2123
    %v2125 = vsel %vm2124, %v2116, %v2121
    %v2126 = vrsqrt.pop %v1975
    %v2127 = vmul.f32 %v2126, %v1975
    %v2128 = vmul.f32 %v2127, %v2126
    %v2129 = vmul.f32 0.5, %v2128
    %v2130 = vsub.f32 1.5, %v2129
    %v2131 = vmul.f32 %v2126, %v2130
    %vm2132 = vweird.f32 %v1975
    %vm2133 = vweird.f32 %v2126
    %vm2134 = vmor %vm2132, %vm2133
    %v2135 = vsel %vm2134, %v2126, %v2131
    %v2136 = vmul.f32 %v1880, %v1985
    %v2137 = vmul.f32 %v1881, %v1995
    %v2138 = vmul.f32 %v1882, %v2005
    %v2139 = vmul.f32 %v1883, %v2015
    %v2140 = vmul.f32 %v1884, %v2025
    %v2141 = vmul.f32 %v1885, %v2035
    %v2142 = vmul.f32 %v1886, %v2045
    %v2143 = vmul.f32 %v1887, %v2055
    %v2144 = vmul.f32 %v1888, %v2065
    %v2145 = vmul.f32 %v1889, %v2075
    %v2146 = vmul.f32 %v1890, %v2085
    %v2147 = vmul.f32 %v1891, %v2095
    %v2148 = vmul.f32 %v1892, %v2105
    %v2149 = vmul.f32 %v1893, %v2115
    %v2150 = vmul.f32 %v1894, %v2125
    %v2151 = vmul.f32 %v1895, %v2135
    %v2153 = vperm.slane %v1830, 0
    %v2155 = vmul.f32 %v2136, %v2153
    %v2156 = vmul.f32 %v2137, %v2153
    %v2157 = vmul.f32 %v2138, %v2153
    %v2158 = vmul.f32 %v2139, %v2153
    %v2159 = vmul.f32 %v2140, %v2153
    %v2160 = vmul.f32 %v2141, %v2153
    %v2161 = vmul.f32 %v2142, %v2153
    %v2162 = vmul.f32 %v2143, %v2153
    %v2163 = vmul.f32 %v2144, %v2153
    %v2164 = vmul.f32 %v2145, %v2153
    %v2165 = vmul.f32 %v2146, %v2153
    %v2166 = vmul.f32 %v2147, %v2153
    %v2167 = vmul.f32 %v2148, %v2153
    %v2168 = vmul.f32 %v2149, %v2153
    %v2169 = vmul.f32 %v2150, %v2153
    %v2170 = vmul.f32 %v2151, %v2153
    %v2172 = vperm.slane %v1831, 0
    %v2174 = vadd.f32 %v2155, %v2172
    %v2175 = vadd.f32 %v2156, %v2172
    %v2176 = vadd.f32 %v2157, %v2172
    %v2177 = vadd.f32 %v2158, %v2172
    %v2178 = vadd.f32 %v2159, %v2172
    %v2179 = vadd.f32 %v2160, %v2172
    %v2180 = vadd.f32 %v2161, %v2172
    %v2181 = vadd.f32 %v2162, %v2172
    %v2182 = vadd.f32 %v2163, %v2172
    %v2183 = vadd.f32 %v2164, %v2172
    %v2184 = vadd.f32 %v2165, %v2172
    %v2185 = vadd.f32 %v2166, %v2172
    %v2186 = vadd.f32 %v2167, %v2172
    %v2187 = vadd.f32 %v2168, %v2172
    %v2188 = vadd.f32 %v2169, %v2172
    %v2189 = vadd.f32 %v2170, %v2172
    %v2190 = vpack.c.bf16 %v2175, %v2174
    %v2191 = vpack.c.bf16 %v2177, %v2176
    %v2192 = vpack.c.bf16 %v2179, %v2178
    %v2193 = vpack.c.bf16 %v2181, %v2180
    %v2194 = vpack.c.bf16 %v2183, %v2182
    %v2195 = vpack.c.bf16 %v2185, %v2184
    %v2196 = vpack.c.bf16 %v2187, %v2186
    %v2197 = vpack.c.bf16 %v2189, %v2188
    %v2198 = vld [vmem:[%s11] sm:$0xff]
    %v2199 = vld [vmem:[%s11 + $0x8] sm:$0xff]
    %v2200 = vld [vmem:[%s11 + $0x10] sm:$0xff]
    %v2201 = vld [vmem:[%s11 + $0x18] sm:$0xff]
    %v2202 = vld [vmem:[%s11 + $0x20] sm:$0xff]
    %v2203 = vld [vmem:[%s11 + $0x28] sm:$0xff]
    %v2204 = vld [vmem:[%s11 + $0x30] sm:$0xff]
    %v2205 = vld [vmem:[%s11 + $0x38] sm:$0xff]
    %v2206 = vld [vmem:[%s11 + $0x40] sm:$0xff]
    %v2207 = vld [vmem:[%s11 + $0x48] sm:$0xff]
    %v2208 = vld [vmem:[%s11 + $0x50] sm:$0xff]
    %v2209 = vld [vmem:[%s11 + $0x58] sm:$0xff]
    %v2210 = vld [vmem:[%s11 + $0x60] sm:$0xff]
    %v2211 = vld [vmem:[%s11 + $0x68] sm:$0xff]
    %v2212 = vld [vmem:[%s11 + $0x70] sm:$0xff]
    %v2213 = vld [vmem:[%s11 + $0x78] sm:$0xff]
    %v2214 = vld [vmem:[%s12] sm:$0x3]
    %v2216 = vperm.slane %v2214, 0
    %v2217 = vperm.slane %v2214, 1
    %v2236 = vunpack.c.l.b16 %v2198
    %v2237 = vunpack.c.h.b16 %v2198
    %v2238 = vunpack.c.l.b16 %v2199
    %v2239 = vunpack.c.h.b16 %v2199
    %v2240 = vunpack.c.l.b16 %v2200
    %v2241 = vunpack.c.h.b16 %v2200
    %v2242 = vunpack.c.l.b16 %v2201
    %v2243 = vunpack.c.h.b16 %v2201
    %v2244 = vunpack.c.l.b16 %v2202
    %v2245 = vunpack.c.h.b16 %v2202
    %v2246 = vunpack.c.l.b16 %v2203
    %v2247 = vunpack.c.h.b16 %v2203
    %v2248 = vunpack.c.l.b16 %v2204
    %v2249 = vunpack.c.h.b16 %v2204
    %v2250 = vunpack.c.l.b16 %v2205
    %v2251 = vunpack.c.h.b16 %v2205
    %v2252 = vunpack.c.l.b16 %v2206
    %v2253 = vunpack.c.h.b16 %v2206
    %v2254 = vunpack.c.l.b16 %v2207
    %v2255 = vunpack.c.h.b16 %v2207
    %v2256 = vunpack.c.l.b16 %v2208
    %v2257 = vunpack.c.h.b16 %v2208
    %v2258 = vunpack.c.l.b16 %v2209
    %v2259 = vunpack.c.h.b16 %v2209
    %v2260 = vunpack.c.l.b16 %v2210
    %v2261 = vunpack.c.h.b16 %v2210
    %v2262 = vunpack.c.l.b16 %v2211
    %v2263 = vunpack.c.h.b16 %v2211
    %v2264 = vunpack.c.l.b16 %v2212
    %v2265 = vunpack.c.h.b16 %v2212
    %v2266 = vunpack.c.l.b16 %v2213
    %v2267 = vunpack.c.h.b16 %v2213
    %v2268 = vpack.c.b16 %v2238, %v2236
    %v2269 = vpack.c.b16 %v2239, %v2237
    %v2270 = vpack.c.b16 %v2242, %v2240
    %v2271 = vpack.c.b16 %v2243, %v2241
    %v2272 = vpack.c.b16 %v2246, %v2244
    %v2273 = vpack.c.b16 %v2247, %v2245
    %v2274 = vpack.c.b16 %v2250, %v2248
    %v2275 = vpack.c.b16 %v2251, %v2249
    %v2276 = vpack.c.b16 %v2254, %v2252
    %v2277 = vpack.c.b16 %v2255, %v2253
    %v2278 = vpack.c.b16 %v2258, %v2256
    %v2279 = vpack.c.b16 %v2259, %v2257
    %v2280 = vpack.c.b16 %v2262, %v2260
    %v2281 = vpack.c.b16 %v2263, %v2261
    %v2282 = vpack.c.b16 %v2266, %v2264
    %v2283 = vpack.c.b16 %v2267, %v2265
    %2300 = vmatpush.bf16.msra.mxu0 %v2282
    %2301 = vmatpush.bf16.msra.mxu0 %v2280
    %2302 = vmatpush.bf16.msra.mxu0 %v2278
    %2303 = vmatpush.bf16.msra.mxu0 %v2276
    %2304 = vmatpush.bf16.msra.mxu0 %v2274
    %2305 = vmatpush.bf16.msra.mxu0 %v2272
    %2306 = vmatpush.bf16.msra.mxu0 %v2270
    %2307 = vmatpush.bf16.msra.mxu0 %v2268
    %2308 = vmatmul.bf16.gmra.mxu0 %v2190
    %v2309 = vpop.f32.mrf.mxu0
    %v2310 = vadd.f32 %v2216, %v2309
    %v2311 = vpop.f32.mrf.mxu0
    %v2312 = vadd.f32 %v2216, %v2311
    %2313 = vmatmul.bf16.gmra.mxu0 %v2191
    %v2314 = vpop.f32.mrf.mxu0
    %v2315 = vadd.f32 %v2216, %v2314
    %v2316 = vpop.f32.mrf.mxu0
    %v2317 = vadd.f32 %v2216, %v2316
    %2318 = vmatmul.bf16.gmra.mxu0 %v2192
    %v2319 = vpop.f32.mrf.mxu0
    %v2320 = vadd.f32 %v2216, %v2319
    %v2321 = vpop.f32.mrf.mxu0
    %v2322 = vadd.f32 %v2216, %v2321
    %2323 = vmatmul.bf16.gmra.mxu0 %v2193
    %v2324 = vpop.f32.mrf.mxu0
    %v2325 = vadd.f32 %v2216, %v2324
    %v2326 = vpop.f32.mrf.mxu0
    %v2327 = vadd.f32 %v2216, %v2326
    %2328 = vmatmul.bf16.gmra.mxu0 %v2194
    %v2329 = vpop.f32.mrf.mxu0
    %v2330 = vadd.f32 %v2216, %v2329
    %v2331 = vpop.f32.mrf.mxu0
    %v2332 = vadd.f32 %v2216, %v2331
    %2333 = vmatmul.bf16.gmra.mxu0 %v2195
    %v2334 = vpop.f32.mrf.mxu0
    %v2335 = vadd.f32 %v2216, %v2334
    %v2336 = vpop.f32.mrf.mxu0
    %v2337 = vadd.f32 %v2216, %v2336
    %2338 = vmatmul.bf16.gmra.mxu0 %v2196
    %v2339 = vpop.f32.mrf.mxu0
    %v2340 = vadd.f32 %v2216, %v2339
    %v2341 = vpop.f32.mrf.mxu0
    %v2342 = vadd.f32 %v2216, %v2341
    %2343 = vmatmul.bf16.gmra.mxu0 %v2197
    %v2344 = vpop.f32.mrf.mxu0
    %v2345 = vadd.f32 %v2216, %v2344
    %v2346 = vpop.f32.mrf.mxu0
    %v2347 = vadd.f32 %v2216, %v2346
    %2348 = vdwg.mxu0
    %2349 = vmatpush.bf16.msra.mxu0 %v2283
    %2350 = vmatpush.bf16.msra.mxu0 %v2281
    %2351 = vmatpush.bf16.msra.mxu0 %v2279
    %2352 = vmatpush.bf16.msra.mxu0 %v2277
    %2353 = vmatpush.bf16.msra.mxu0 %v2275
    %2354 = vmatpush.bf16.msra.mxu0 %v2273
    %2355 = vmatpush.bf16.msra.mxu0 %v2271
    %2356 = vmatpush.bf16.msra.mxu0 %v2269
    %2357 = vmatmul.bf16.gmra.mxu0 %v2190
    %v2358 = vpop.f32.mrf.mxu0
    %v2359 = vadd.f32 %v2217, %v2358
    %v2360 = vpop.f32.mrf.mxu0
    %v2361 = vadd.f32 %v2217, %v2360
    %2362 = vmatmul.bf16.gmra.mxu0 %v2191
    %v2363 = vpop.f32.mrf.mxu0
    %v2364 = vadd.f32 %v2217, %v2363
    %v2365 = vpop.f32.mrf.mxu0
    %v2366 = vadd.f32 %v2217, %v2365
    %2367 = vmatmul.bf16.gmra.mxu0 %v2192
    %v2368 = vpop.f32.mrf.mxu0
    %v2369 = vadd.f32 %v2217, %v2368
    %v2370 = vpop.f32.mrf.mxu0
    %v2371 = vadd.f32 %v2217, %v2370
    %2372 = vmatmul.bf16.gmra.mxu0 %v2193
    %v2373 = vpop.f32.mrf.mxu0
    %v2374 = vadd.f32 %v2217, %v2373
    %v2375 = vpop.f32.mrf.mxu0
    %v2376 = vadd.f32 %v2217, %v2375
    %2377 = vmatmul.bf16.gmra.mxu0 %v2194
    %v2378 = vpop.f32.mrf.mxu0
    %v2379 = vadd.f32 %v2217, %v2378
    %v2380 = vpop.f32.mrf.mxu0
    %v2381 = vadd.f32 %v2217, %v2380
    %2382 = vmatmul.bf16.gmra.mxu0 %v2195
    %v2383 = vpop.f32.mrf.mxu0
    %v2384 = vadd.f32 %v2217, %v2383
    %v2385 = vpop.f32.mrf.mxu0
    %v2386 = vadd.f32 %v2217, %v2385
    %2387 = vmatmul.bf16.gmra.mxu0 %v2196
    %v2388 = vpop.f32.mrf.mxu0
    %v2389 = vadd.f32 %v2217, %v2388
    %v2390 = vpop.f32.mrf.mxu0
    %v2391 = vadd.f32 %v2217, %v2390
    %2392 = vmatmul.bf16.gmra.mxu0 %v2197
    %v2393 = vpop.f32.mrf.mxu0
    %v2394 = vadd.f32 %v2217, %v2393
    %v2395 = vpop.f32.mrf.mxu0
    %v2396 = vadd.f32 %v2217, %v2395
    %2397 = vdwg.mxu0
    %v2398 = vmul.f32 %v2310, %v2310
    %v2399 = vmul.f32 %v2359, %v2359
    %v2400 = vmul.f32 %v2312, %v2312
    %v2401 = vmul.f32 %v2361, %v2361
    %v2402 = vmul.f32 %v2315, %v2315
    %v2403 = vmul.f32 %v2364, %v2364
    %v2404 = vmul.f32 %v2317, %v2317
    %v2405 = vmul.f32 %v2366, %v2366
    %v2406 = vmul.f32 %v2320, %v2320
    %v2407 = vmul.f32 %v2369, %v2369
    %v2408 = vmul.f32 %v2322, %v2322
    %v2409 = vmul.f32 %v2371, %v2371
    %v2410 = vmul.f32 %v2325, %v2325
    %v2411 = vmul.f32 %v2374, %v2374
    %v2412 = vmul.f32 %v2327, %v2327
    %v2413 = vmul.f32 %v2376, %v2376
    %v2414 = vmul.f32 %v2330, %v2330
    %v2415 = vmul.f32 %v2379, %v2379
    %v2416 = vmul.f32 %v2332, %v2332
    %v2417 = vmul.f32 %v2381, %v2381
    %v2418 = vmul.f32 %v2335, %v2335
    %v2419 = vmul.f32 %v2384, %v2384
    %v2420 = vmul.f32 %v2337, %v2337
    %v2421 = vmul.f32 %v2386, %v2386
    %v2422 = vmul.f32 %v2340, %v2340
    %v2423 = vmul.f32 %v2389, %v2389
    %v2424 = vmul.f32 %v2342, %v2342
    %v2425 = vmul.f32 %v2391, %v2391
    %v2426 = vmul.f32 %v2345, %v2345
    %v2427 = vmul.f32 %v2394, %v2394
    %v2428 = vmul.f32 %v2347, %v2347
    %v2429 = vmul.f32 %v2396, %v2396
    %v2430 = vmul.f32 %v2310, %v2398
    %v2431 = vmul.f32 %v2359, %v2399
    %v2432 = vmul.f32 %v2312, %v2400
    %v2433 = vmul.f32 %v2361, %v2401
    %v2434 = vmul.f32 %v2315, %v2402
    %v2435 = vmul.f32 %v2364, %v2403
    %v2436 = vmul.f32 %v2317, %v2404
    %v2437 = vmul.f32 %v2366, %v2405
    %v2438 = vmul.f32 %v2320, %v2406
    %v2439 = vmul.f32 %v2369, %v2407
    %v2440 = vmul.f32 %v2322, %v2408
    %v2441 = vmul.f32 %v2371, %v2409
    %v2442 = vmul.f32 %v2325, %v2410
    %v2443 = vmul.f32 %v2374, %v2411
    %v2444 = vmul.f32 %v2327, %v2412
    %v2445 = vmul.f32 %v2376, %v2413
    %v2446 = vmul.f32 %v2330, %v2414
    %v2447 = vmul.f32 %v2379, %v2415
    %v2448 = vmul.f32 %v2332, %v2416
    %v2449 = vmul.f32 %v2381, %v2417
    %v2450 = vmul.f32 %v2335, %v2418
    %v2451 = vmul.f32 %v2384, %v2419
    %v2452 = vmul.f32 %v2337, %v2420
    %v2453 = vmul.f32 %v2386, %v2421
    %v2454 = vmul.f32 %v2340, %v2422
    %v2455 = vmul.f32 %v2389, %v2423
    %v2456 = vmul.f32 %v2342, %v2424
    %v2457 = vmul.f32 %v2391, %v2425
    %v2458 = vmul.f32 %v2345, %v2426
    %v2459 = vmul.f32 %v2394, %v2427
    %v2460 = vmul.f32 %v2347, %v2428
    %v2461 = vmul.f32 %v2396, %v2429
    %v2462 = vmul.f32 %v2430, 0.044715
    %v2463 = vmul.f32 %v2431, 0.044715
    %v2464 = vmul.f32 %v2432, 0.044715
    %v2465 = vmul.f32 %v2433, 0.044715
    %v2466 = vmul.f32 %v2434, 0.044715
    %v2467 = vmul.f32 %v2435, 0.044715
    %v2468 = vmul.f32 %v2436, 0.044715
    %v2469 = vmul.f32 %v2437, 0.044715
    %v2470 = vmul.f32 %v2438, 0.044715
    %v2471 = vmul.f32 %v2439, 0.044715
    %v2472 = vmul.f32 %v2440, 0.044715
    %v2473 = vmul.f32 %v2441, 0.044715
    %v2474 = vmul.f32 %v2442, 0.044715
    %v2475 = vmul.f32 %v2443, 0.044715
    %v2476 = vmul.f32 %v2444, 0.044715
    %v2477 = vmul.f32 %v2445, 0.044715
    %v2478 = vmul.f32 %v2446, 0.044715
    %v2479 = vmul.f32 %v2447, 0.044715
    %v2480 = vmul.f32 %v2448, 0.044715
    %v2481 = vmul.f32 %v2449, 0.044715
    %v2482 = vmul.f32 %v2450, 0.044715
    %v2483 = vmul.f32 %v2451, 0.044715
    %v2484 = vmul.f32 %v2452, 0.044715
    %v2485 = vmul.f32 %v2453, 0.044715
    %v2486 = vmul.f32 %v2454, 0.044715
    %v2487 = vmul.f32 %v2455, 0.044715
    %v2488 = vmul.f32 %v2456, 0.044715
    %v2489 = vmul.f32 %v2457, 0.044715
    %v2490 = vmul.f32 %v2458, 0.044715
    %v2491 = vmul.f32 %v2459, 0.044715
    %v2492 = vmul.f32 %v2460, 0.044715
    %v2493 = vmul.f32 %v2461, 0.044715
    %v2494 = vadd.f32 %v2310, %v2462
    %v2495 = vadd.f32 %v2359, %v2463
    %v2496 = vadd.f32 %v2312, %v2464
    %v2497 = vadd.f32 %v2361, %v2465
    %v2498 = vadd.f32 %v2315, %v2466
    %v2499 = vadd.f32 %v2364, %v2467
    %v2500 = vadd.f32 %v2317, %v2468
    %v2501 = vadd.f32 %v2366, %v2469
    %v2502 = vadd.f32 %v2320, %v2470
    %v2503 = vadd.f32 %v2369, %v2471
    %v2504 = vadd.f32 %v2322, %v2472
    %v2505 = vadd.f32 %v2371, %v2473
    %v2506 = vadd.f32 %v2325, %v2474
    %v2507 = vadd.f32 %v2374, %v2475
    %v2508 = vadd.f32 %v2327, %v2476
    %v2509 = vadd.f32 %v2376, %v2477
    %v2510 = vadd.f32 %v2330, %v2478
    %v2511 = vadd.f32 %v2379, %v2479
    %v2512 = vadd.f32 %v2332, %v2480
    %v2513 = vadd.f32 %v2381, %v2481
    %v2514 = vadd.f32 %v2335, %v2482
    %v2515 = vadd.f32 %v2384, %v2483
    %v2516 = vadd.f32 %v2337, %v2484
    %v2517 = vadd.f32 %v2386, %v2485
    %v2518 = vadd.f32 %v2340, %v2486
    %v2519 = vadd.f32 %v2389, %v2487
    %v2520 = vadd.f32 %v2342, %v2488
    %v2521 = vadd.f32 %v2391, %v2489
    %v2522 = vadd.f32 %v2345, %v2490
    %v2523 = vadd.f32 %v2394, %v2491
    %v2524 = vadd.f32 %v2347, %v2492
    %v2525 = vadd.f32 %v2396, %v2493
    %v2526 = vmul.f32 %v2494, 0.7978846
    %v2527 = vmul.f32 %v2495, 0.7978846
    %v2528 = vmul.f32 %v2496, 0.7978846
    %v2529 = vmul.f32 %v2497, 0.7978846
    %v2530 = vmul.f32 %v2498, 0.7978846
    %v2531 = vmul.f32 %v2499, 0.7978846
    %v2532 = vmul.f32 %v2500, 0.7978846
    %v2533 = vmul.f32 %v2501, 0.7978846
    %v2534 = vmul.f32 %v2502, 0.7978846
    %v2535 = vmul.f32 %v2503, 0.7978846
    %v2536 = vmul.f32 %v2504, 0.7978846
    %v2537 = vmul.f32 %v2505, 0.7978846
    %v2538 = vmul.f32 %v2506, 0.7978846
    %v2539 = vmul.f32 %v2507, 0.7978846
    %v2540 = vmul.f32 %v2508, 0.7978846
    %v2541 = vmul.f32 %v2509, 0.7978846
    %v2542 = vmul.f32 %v2510, 0.7978846
    %v2543 = vmul.f32 %v2511, 0.7978846
    %v2544 = vmul.f32 %v2512, 0.7978846
    %v2545 = vmul.f32 %v2513, 0.7978846
    %v2546 = vmul.f32 %v2514, 0.7978846
    %v2547 = vmul.f32 %v2515, 0.7978846
    %v2548 = vmul.f32 %v2516, 0.7978846
    %v2549 = vmul.f32 %v2517, 0.7978846
    %v2550 = vmul.f32 %v2518, 0.7978846
    %v2551 = vmul.f32 %v2519, 0.7978846
    %v2552 = vmul.f32 %v2520, 0.7978846
    %v2553 = vmul.f32 %v2521, 0.7978846
    %v2554 = vmul.f32 %v2522, 0.7978846
    %v2555 = vmul.f32 %v2523, 0.7978846
    %v2556 = vmul.f32 %v2524, 0.7978846
    %v2557 = vmul.f32 %v2525, 0.7978846
    %v2558 = vtanh.pop %v2526
    %v2559 = vtanh.pop %v2527
    %v2560 = vtanh.pop %v2528
    %v2561 = vtanh.pop %v2529
    %v2562 = vtanh.pop %v2530
    %v2563 = vtanh.pop %v2531
    %v2564 = vtanh.pop %v2532
    %v2565 = vtanh.pop %v2533
    %v2566 = vtanh.pop %v2534
    %v2567 = vtanh.pop %v2535
    %v2568 = vtanh.pop %v2536
    %v2569 = vtanh.pop %v2537
    %v2570 = vtanh.pop %v2538
    %v2571 = vtanh.pop %v2539
    %v2572 = vtanh.pop %v2540
    %v2573 = vtanh.pop %v2541
    %v2574 = vtanh.pop %v2542
    %v2575 = vtanh.pop %v2543
    %v2576 = vtanh.pop %v2544
    %v2577 = vtanh.pop %v2545
    %v2578 = vtanh.pop %v2546
    %v2579 = vtanh.pop %v2547
    %v2580 = vtanh.pop %v2548
    %v2581 = vtanh.pop %v2549
    %v2582 = vtanh.pop %v2550
    %v2583 = vtanh.pop %v2551
    %v2584 = vtanh.pop %v2552
    %v2585 = vtanh.pop %v2553
    %v2586 = vtanh.pop %v2554
    %v2587 = vtanh.pop %v2555
    %v2588 = vtanh.pop %v2556
    %v2589 = vtanh.pop %v2557
    %v2590 = vadd.f32 %v2558, 1.0
    %v2591 = vadd.f32 %v2559, 1.0
    %v2592 = vadd.f32 %v2560, 1.0
    %v2593 = vadd.f32 %v2561, 1.0
    %v2594 = vadd.f32 %v2562, 1.0
    %v2595 = vadd.f32 %v2563, 1.0
    %v2596 = vadd.f32 %v2564, 1.0
    %v2597 = vadd.f32 %v2565, 1.0
    %v2598 = vadd.f32 %v2566, 1.0
    %v2599 = vadd.f32 %v2567, 1.0
    %v2600 = vadd.f32 %v2568, 1.0
    %v2601 = vadd.f32 %v2569, 1.0
    %v2602 = vadd.f32 %v2570, 1.0
    %v2603 = vadd.f32 %v2571, 1.0
    %v2604 = vadd.f32 %v2572, 1.0
    %v2605 = vadd.f32 %v2573, 1.0
    %v2606 = vadd.f32 %v2574, 1.0
    %v2607 = vadd.f32 %v2575, 1.0
    %v2608 = vadd.f32 %v2576, 1.0
    %v2609 = vadd.f32 %v2577, 1.0
    %v2610 = vadd.f32 %v2578, 1.0
    %v2611 = vadd.f32 %v2579, 1.0
    %v2612 = vadd.f32 %v2580, 1.0
    %v2613 = vadd.f32 %v2581, 1.0
    %v2614 = vadd.f32 %v2582, 1.0
    %v2615 = vadd.f32 %v2583, 1.0
    %v2616 = vadd.f32 %v2584, 1.0
    %v2617 = vadd.f32 %v2585, 1.0
    %v2618 = vadd.f32 %v2586, 1.0
    %v2619 = vadd.f32 %v2587, 1.0
    %v2620 = vadd.f32 %v2588, 1.0
    %v2621 = vadd.f32 %v2589, 1.0
    %v2622 = vmul.f32 %v2590, 0.5
    %v2623 = vmul.f32 %v2591, 0.5
    %v2624 = vmul.f32 %v2592, 0.5
    %v2625 = vmul.f32 %v2593, 0.5
    %v2626 = vmul.f32 %v2594, 0.5
    %v2627 = vmul.f32 %v2595, 0.5
    %v2628 = vmul.f32 %v2596, 0.5
    %v2629 = vmul.f32 %v2597, 0.5
    %v2630 = vmul.f32 %v2598, 0.5
    %v2631 = vmul.f32 %v2599, 0.5
    %v2632 = vmul.f32 %v2600, 0.5
    %v2633 = vmul.f32 %v2601, 0.5
    %v2634 = vmul.f32 %v2602, 0.5
    %v2635 = vmul.f32 %v2603, 0.5
    %v2636 = vmul.f32 %v2604, 0.5
    %v2637 = vmul.f32 %v2605, 0.5
    %v2638 = vmul.f32 %v2606, 0.5
    %v2639 = vmul.f32 %v2607, 0.5
    %v2640 = vmul.f32 %v2608, 0.5
    %v2641 = vmul.f32 %v2609, 0.5
    %v2642 = vmul.f32 %v2610, 0.5
    %v2643 = vmul.f32 %v2611, 0.5
    %v2644 = vmul.f32 %v2612, 0.5
    %v2645 = vmul.f32 %v2613, 0.5
    %v2646 = vmul.f32 %v2614, 0.5
    %v2647 = vmul.f32 %v2615, 0.5
    %v2648 = vmul.f32 %v2616, 0.5
    %v2649 = vmul.f32 %v2617, 0.5
    %v2650 = vmul.f32 %v2618, 0.5
    %v2651 = vmul.f32 %v2619, 0.5
    %v2652 = vmul.f32 %v2620, 0.5
    %v2653 = vmul.f32 %v2621, 0.5
    %v2654 = vmul.f32 %v2310, %v2622
    %v2655 = vmul.f32 %v2359, %v2623
    %v2656 = vmul.f32 %v2312, %v2624
    %v2657 = vmul.f32 %v2361, %v2625
    %v2658 = vmul.f32 %v2315, %v2626
    %v2659 = vmul.f32 %v2364, %v2627
    %v2660 = vmul.f32 %v2317, %v2628
    %v2661 = vmul.f32 %v2366, %v2629
    %v2662 = vmul.f32 %v2320, %v2630
    %v2663 = vmul.f32 %v2369, %v2631
    %v2664 = vmul.f32 %v2322, %v2632
    %v2665 = vmul.f32 %v2371, %v2633
    %v2666 = vmul.f32 %v2325, %v2634
    %v2667 = vmul.f32 %v2374, %v2635
    %v2668 = vmul.f32 %v2327, %v2636
    %v2669 = vmul.f32 %v2376, %v2637
    %v2670 = vmul.f32 %v2330, %v2638
    %v2671 = vmul.f32 %v2379, %v2639
    %v2672 = vmul.f32 %v2332, %v2640
    %v2673 = vmul.f32 %v2381, %v2641
    %v2674 = vmul.f32 %v2335, %v2642
    %v2675 = vmul.f32 %v2384, %v2643
    %v2676 = vmul.f32 %v2337, %v2644
    %v2677 = vmul.f32 %v2386, %v2645
    %v2678 = vmul.f32 %v2340, %v2646
    %v2679 = vmul.f32 %v2389, %v2647
    %v2680 = vmul.f32 %v2342, %v2648
    %v2681 = vmul.f32 %v2391, %v2649
    %v2682 = vmul.f32 %v2345, %v2650
    %v2683 = vmul.f32 %v2394, %v2651
    %v2684 = vmul.f32 %v2347, %v2652
    %v2685 = vmul.f32 %v2396, %v2653
    %v2686 = vpack.c.bf16 %v2656, %v2654
    %v2687 = vpack.c.bf16 %v2657, %v2655
    %v2688 = vpack.c.bf16 %v2660, %v2658
    %v2689 = vpack.c.bf16 %v2661, %v2659
    %v2690 = vpack.c.bf16 %v2664, %v2662
    %v2691 = vpack.c.bf16 %v2665, %v2663
    %v2692 = vpack.c.bf16 %v2668, %v2666
    %v2693 = vpack.c.bf16 %v2669, %v2667
    %v2694 = vpack.c.bf16 %v2672, %v2670
    %v2695 = vpack.c.bf16 %v2673, %v2671
    %v2696 = vpack.c.bf16 %v2676, %v2674
    %v2697 = vpack.c.bf16 %v2677, %v2675
    %v2698 = vpack.c.bf16 %v2680, %v2678
    %v2699 = vpack.c.bf16 %v2681, %v2679
    %v2700 = vpack.c.bf16 %v2684, %v2682
    %v2701 = vpack.c.bf16 %v2685, %v2683
    %v2702 = vld [vmem:[%s13] sm:$0xf]
    %v2703 = vld [vmem:[%s13 + $0x4] sm:$0xf]
    %v2704 = vld [vmem:[%s13 + $0x8] sm:$0xf]
    %v2705 = vld [vmem:[%s13 + $0xc] sm:$0xf]
    %v2706 = vld [vmem:[%s13 + $0x10] sm:$0xf]
    %v2707 = vld [vmem:[%s13 + $0x14] sm:$0xf]
    %v2708 = vld [vmem:[%s13 + $0x18] sm:$0xf]
    %v2709 = vld [vmem:[%s13 + $0x1c] sm:$0xf]
    %v2710 = vld [vmem:[%s13 + $0x20] sm:$0xf]
    %v2711 = vld [vmem:[%s13 + $0x24] sm:$0xf]
    %v2712 = vld [vmem:[%s13 + $0x28] sm:$0xf]
    %v2713 = vld [vmem:[%s13 + $0x2c] sm:$0xf]
    %v2714 = vld [vmem:[%s13 + $0x30] sm:$0xf]
    %v2715 = vld [vmem:[%s13 + $0x34] sm:$0xf]
    %v2716 = vld [vmem:[%s13 + $0x38] sm:$0xf]
    %v2717 = vld [vmem:[%s13 + $0x3c] sm:$0xf]
    %v2718 = vld [vmem:[%s13 + $0x40] sm:$0xf]
    %v2719 = vld [vmem:[%s13 + $0x44] sm:$0xf]
    %v2720 = vld [vmem:[%s13 + $0x48] sm:$0xf]
    %v2721 = vld [vmem:[%s13 + $0x4c] sm:$0xf]
    %v2722 = vld [vmem:[%s13 + $0x50] sm:$0xf]
    %v2723 = vld [vmem:[%s13 + $0x54] sm:$0xf]
    %v2724 = vld [vmem:[%s13 + $0x58] sm:$0xf]
    %v2725 = vld [vmem:[%s13 + $0x5c] sm:$0xf]
    %v2726 = vld [vmem:[%s13 + $0x60] sm:$0xf]
    %v2727 = vld [vmem:[%s13 + $0x64] sm:$0xf]
    %v2728 = vld [vmem:[%s13 + $0x68] sm:$0xf]
    %v2729 = vld [vmem:[%s13 + $0x6c] sm:$0xf]
    %v2730 = vld [vmem:[%s13 + $0x70] sm:$0xf]
    %v2731 = vld [vmem:[%s13 + $0x74] sm:$0xf]
    %v2732 = vld [vmem:[%s13 + $0x78] sm:$0xf]
    %v2733 = vld [vmem:[%s13 + $0x7c] sm:$0xf]
    %v2766 = vunpack.c.l.b16 %v2702
    %v2767 = vunpack.c.l.b16 %v2703
    %v2768 = vunpack.c.l.b16 %v2704
    %v2769 = vunpack.c.l.b16 %v2705
    %v2770 = vunpack.c.l.b16 %v2706
    %v2771 = vunpack.c.l.b16 %v2707
    %v2772 = vunpack.c.l.b16 %v2708
    %v2773 = vunpack.c.l.b16 %v2709
    %v2774 = vunpack.c.l.b16 %v2710
    %v2775 = vunpack.c.l.b16 %v2711
    %v2776 = vunpack.c.l.b16 %v2712
    %v2777 = vunpack.c.l.b16 %v2713
    %v2778 = vunpack.c.l.b16 %v2714
    %v2779 = vunpack.c.l.b16 %v2715
    %v2780 = vunpack.c.l.b16 %v2716
    %v2781 = vunpack.c.l.b16 %v2717
    %v2782 = vunpack.c.l.b16 %v2718
    %v2783 = vunpack.c.l.b16 %v2719
    %v2784 = vunpack.c.l.b16 %v2720
    %v2785 = vunpack.c.l.b16 %v2721
    %v2786 = vunpack.c.l.b16 %v2722
    %v2787 = vunpack.c.l.b16 %v2723
    %v2788 = vunpack.c.l.b16 %v2724
    %v2789 = vunpack.c.l.b16 %v2725
    %v2790 = vunpack.c.l.b16 %v2726
    %v2791 = vunpack.c.l.b16 %v2727
    %v2792 = vunpack.c.l.b16 %v2728
    %v2793 = vunpack.c.l.b16 %v2729
    %v2794 = vunpack.c.l.b16 %v2730
    %v2795 = vunpack.c.l.b16 %v2731
    %v2796 = vunpack.c.l.b16 %v2732
    %v2797 = vunpack.c.l.b16 %v2733
    %v2798 = vpack.c.b16 %v2767, %v2766
    %v2799 = vpack.c.b16 %v2769, %v2768
    %v2800 = vpack.c.b16 %v2771, %v2770
    %v2801 = vpack.c.b16 %v2773, %v2772
    %v2802 = vpack.c.b16 %v2775, %v2774
    %v2803 = vpack.c.b16 %v2777, %v2776
    %v2804 = vpack.c.b16 %v2779, %v2778
    %v2805 = vpack.c.b16 %v2781, %v2780
    %v2806 = vpack.c.b16 %v2783, %v2782
    %v2807 = vpack.c.b16 %v2785, %v2784
    %v2808 = vpack.c.b16 %v2787, %v2786
    %v2809 = vpack.c.b16 %v2789, %v2788
    %v2810 = vpack.c.b16 %v2791, %v2790
    %v2811 = vpack.c.b16 %v2793, %v2792
    %v2812 = vpack.c.b16 %v2795, %v2794
    %v2813 = vpack.c.b16 %v2797, %v2796
    %2830 = vmatpush.bf16.msra.mxu0 %v2805
    %2831 = vmatpush.bf16.msra.mxu0 %v2804
    %2832 = vmatpush.bf16.msra.mxu0 %v2803
    %2833 = vmatpush.bf16.msra.mxu0 %v2802
    %2834 = vmatpush.bf16.msra.mxu0 %v2801
    %2835 = vmatpush.bf16.msra.mxu0 %v2800
    %2836 = vmatpush.bf16.msra.mxu0 %v2799
    %2837 = vmatpush.bf16.msra.mxu0 %v2798
    %2838 = vmatmul.bf16.gmra.mxu0 %v2686
    %v2839 = vpop.f32.mrf.mxu0
    %v2840 = vadd.f32 0.0, %v2839
    %v2841 = vpop.f32.mrf.mxu0
    %v2842 = vadd.f32 0.0, %v2841
    %2843 = vmatmul.bf16.gmra.mxu0 %v2688
    %v2844 = vpop.f32.mrf.mxu0
    %v2845 = vadd.f32 0.0, %v2844
    %v2846 = vpop.f32.mrf.mxu0
    %v2847 = vadd.f32 0.0, %v2846
    %2848 = vmatmul.bf16.gmra.mxu0 %v2690
    %v2849 = vpop.f32.mrf.mxu0
    %v2850 = vadd.f32 0.0, %v2849
    %v2851 = vpop.f32.mrf.mxu0
    %v2852 = vadd.f32 0.0, %v2851
    %2853 = vmatmul.bf16.gmra.mxu0 %v2692
    %v2854 = vpop.f32.mrf.mxu0
    %v2855 = vadd.f32 0.0, %v2854
    %v2856 = vpop.f32.mrf.mxu0
    %v2857 = vadd.f32 0.0, %v2856
    %2858 = vmatmul.bf16.gmra.mxu0 %v2694
    %v2859 = vpop.f32.mrf.mxu0
    %v2860 = vadd.f32 0.0, %v2859
    %v2861 = vpop.f32.mrf.mxu0
    %v2862 = vadd.f32 0.0, %v2861
    %2863 = vmatmul.bf16.gmra.mxu0 %v2696
    %v2864 = vpop.f32.mrf.mxu0
    %v2865 = vadd.f32 0.0, %v2864
    %v2866 = vpop.f32.mrf.mxu0
    %v2867 = vadd.f32 0.0, %v2866
    %2868 = vmatmul.bf16.gmra.mxu0 %v2698
    %v2869 = vpop.f32.mrf.mxu0
    %v2870 = vadd.f32 0.0, %v2869
    %v2871 = vpop.f32.mrf.mxu0
    %v2872 = vadd.f32 0.0, %v2871
    %2873 = vmatmul.bf16.gmra.mxu0 %v2700
    %v2874 = vpop.f32.mrf.mxu0
    %v2875 = vadd.f32 0.0, %v2874
    %v2876 = vpop.f32.mrf.mxu0
    %v2877 = vadd.f32 0.0, %v2876
    %2878 = vdwg.mxu0
    %2879 = vmatpush.bf16.msra.mxu0 %v2813
    %2880 = vmatpush.bf16.msra.mxu0 %v2812
    %2881 = vmatpush.bf16.msra.mxu0 %v2811
    %2882 = vmatpush.bf16.msra.mxu0 %v2810
    %2883 = vmatpush.bf16.msra.mxu0 %v2809
    %2884 = vmatpush.bf16.msra.mxu0 %v2808
    %2885 = vmatpush.bf16.msra.mxu0 %v2807
    %2886 = vmatpush.bf16.msra.mxu0 %v2806
    %2887 = vmatmul.bf16.gmra.mxu0 %v2687
    %v2888 = vpop.f32.mrf.mxu0
    %v2889 = vadd.f32 %v2840, %v2888
    %v2890 = vpop.f32.mrf.mxu0
    %v2891 = vadd.f32 %v2842, %v2890
    %2892 = vmatmul.bf16.gmra.mxu0 %v2689
    %v2893 = vpop.f32.mrf.mxu0
    %v2894 = vadd.f32 %v2845, %v2893
    %v2895 = vpop.f32.mrf.mxu0
    %v2896 = vadd.f32 %v2847, %v2895
    %2897 = vmatmul.bf16.gmra.mxu0 %v2691
    %v2898 = vpop.f32.mrf.mxu0
    %v2899 = vadd.f32 %v2850, %v2898
    %v2900 = vpop.f32.mrf.mxu0
    %v2901 = vadd.f32 %v2852, %v2900
    %2902 = vmatmul.bf16.gmra.mxu0 %v2693
    %v2903 = vpop.f32.mrf.mxu0
    %v2904 = vadd.f32 %v2855, %v2903
    %v2905 = vpop.f32.mrf.mxu0
    %v2906 = vadd.f32 %v2857, %v2905
    %2907 = vmatmul.bf16.gmra.mxu0 %v2695
    %v2908 = vpop.f32.mrf.mxu0
    %v2909 = vadd.f32 %v2860, %v2908
    %v2910 = vpop.f32.mrf.mxu0
    %v2911 = vadd.f32 %v2862, %v2910
    %2912 = vmatmul.bf16.gmra.mxu0 %v2697
    %v2913 = vpop.f32.mrf.mxu0
    %v2914 = vadd.f32 %v2865, %v2913
    %v2915 = vpop.f32.mrf.mxu0
    %v2916 = vadd.f32 %v2867, %v2915
    %2917 = vmatmul.bf16.gmra.mxu0 %v2699
    %v2918 = vpop.f32.mrf.mxu0
    %v2919 = vadd.f32 %v2870, %v2918
    %v2920 = vpop.f32.mrf.mxu0
    %v2921 = vadd.f32 %v2872, %v2920
    %2922 = vmatmul.bf16.gmra.mxu0 %v2701
    %v2923 = vpop.f32.mrf.mxu0
    %v2924 = vadd.f32 %v2875, %v2923
    %v2925 = vpop.f32.mrf.mxu0
    %v2926 = vadd.f32 %v2877, %v2925
    %2927 = vdwg.mxu0
    %v2928 = vadd.f32 %v1814, %v2889
    %v2929 = vadd.f32 %v1815, %v2891
    %v2930 = vadd.f32 %v1816, %v2894
    %v2931 = vadd.f32 %v1817, %v2896
    %v2932 = vadd.f32 %v1818, %v2899
    %v2933 = vadd.f32 %v1819, %v2901
    %v2934 = vadd.f32 %v1820, %v2904
    %v2935 = vadd.f32 %v1821, %v2906
    %v2936 = vadd.f32 %v1822, %v2909
    %v2937 = vadd.f32 %v1823, %v2911
    %v2938 = vadd.f32 %v1824, %v2914
    %v2939 = vadd.f32 %v1825, %v2916
    %v2940 = vadd.f32 %v1826, %v2919
    %v2941 = vadd.f32 %v1827, %v2921
    %v2942 = vadd.f32 %v1828, %v2924
    %v2943 = vadd.f32 %v1829, %v2926
    %v2944 = vld [vmem:[%s14] sm:$0x1]
    %v2946 = vperm.slane %v2944, 0
    %v2948 = vadd.f32 %v2928, %v2946
    %v2949 = vadd.f32 %v2929, %v2946
    %v2950 = vadd.f32 %v2930, %v2946
    %v2951 = vadd.f32 %v2931, %v2946
    %v2952 = vadd.f32 %v2932, %v2946
    %v2953 = vadd.f32 %v2933, %v2946
    %v2954 = vadd.f32 %v2934, %v2946
    %v2955 = vadd.f32 %v2935, %v2946
    %v2956 = vadd.f32 %v2936, %v2946
    %v2957 = vadd.f32 %v2937, %v2946
    %v2958 = vadd.f32 %v2938, %v2946
    %v2959 = vadd.f32 %v2939, %v2946
    %v2960 = vadd.f32 %v2940, %v2946
    %v2961 = vadd.f32 %v2941, %v2946
    %v2962 = vadd.f32 %v2942, %v2946
    %v2963 = vadd.f32 %v2943, %v2946
    %v2964 = vpack.c.bf16 %v2948, %v2948
    %v2965 = vpack.c.bf16 %v2949, %v2949
    %v2966 = vpack.c.bf16 %v2950, %v2950
    %v2967 = vpack.c.bf16 %v2951, %v2951
    %v2968 = vpack.c.bf16 %v2952, %v2952
    %v2969 = vpack.c.bf16 %v2953, %v2953
    %v2970 = vpack.c.bf16 %v2954, %v2954
    %v2971 = vpack.c.bf16 %v2955, %v2955
    %v2972 = vpack.c.bf16 %v2956, %v2956
    %v2973 = vpack.c.bf16 %v2957, %v2957
    %v2974 = vpack.c.bf16 %v2958, %v2958
    %v2975 = vpack.c.bf16 %v2959, %v2959
    %v2976 = vpack.c.bf16 %v2960, %v2960
    %v2977 = vpack.c.bf16 %v2961, %v2961
    %v2978 = vpack.c.bf16 %v2962, %v2962
    %v2979 = vpack.c.bf16 %v2963, %v2963
    %2980 = vst [vmem:[#allocation2] sm:$0xf] %v2964
    %2981 = vst [vmem:[#allocation2 + $0x4] sm:$0xf] %v2965
    %2982 = vst [vmem:[#allocation2 + $0x8] sm:$0xf] %v2966
    %2983 = vst [vmem:[#allocation2 + $0xc] sm:$0xf] %v2967
    %2984 = vst [vmem:[#allocation2 + $0x10] sm:$0xf] %v2968
    %2985 = vst [vmem:[#allocation2 + $0x14] sm:$0xf] %v2969
    %2986 = vst [vmem:[#allocation2 + $0x18] sm:$0xf] %v2970
    %2987 = vst [vmem:[#allocation2 + $0x1c] sm:$0xf] %v2971
    %2988 = vst [vmem:[#allocation2 + $0x20] sm:$0xf] %v2972
    %2989 = vst [vmem:[#allocation2 + $0x24] sm:$0xf] %v2973
    %2990 = vst [vmem:[#allocation2 + $0x28] sm:$0xf] %v2974
    %2991 = vst [vmem:[#allocation2 + $0x2c] sm:$0xf] %v2975
    %2992 = vst [vmem:[#allocation2 + $0x30] sm:$0xf] %v2976
    %2993 = vst [vmem:[#allocation2 + $0x34] sm:$0xf] %v2977
    %2994 = vst [vmem:[#allocation2 + $0x38] sm:$0xf] %v2978
    %2995 = vst [vmem:[#allocation2 + $0x3c] sm:$0xf] %v2979
    %v2996 = vld [vmem:[%s15] sm:$0xf]
    %v2997 = vld [vmem:[%s15 + $0x4] sm:$0xf]
    %v2998 = vld [vmem:[%s15 + $0x8] sm:$0xf]
    %v2999 = vld [vmem:[%s15 + $0xc] sm:$0xf]
    %v3000 = vld [vmem:[%s15 + $0x10] sm:$0xf]
    %v3001 = vld [vmem:[%s15 + $0x14] sm:$0xf]
    %v3002 = vld [vmem:[%s15 + $0x18] sm:$0xf]
    %v3003 = vld [vmem:[%s15 + $0x1c] sm:$0xf]
    %v3004 = vld [vmem:[%s15 + $0x20] sm:$0xf]
    %v3005 = vld [vmem:[%s15 + $0x24] sm:$0xf]
    %v3006 = vld [vmem:[%s15 + $0x28] sm:$0xf]
    %v3007 = vld [vmem:[%s15 + $0x2c] sm:$0xf]
    %v3008 = vld [vmem:[%s15 + $0x30] sm:$0xf]
    %v3009 = vld [vmem:[%s15 + $0x34] sm:$0xf]
    %v3010 = vld [vmem:[%s15 + $0x38] sm:$0xf]
    %v3011 = vld [vmem:[%s15 + $0x3c] sm:$0xf]
    %v3012 = vld [vmem:[%s16] sm:$0x1]
    %v3014 = vperm.slane %v3012, 0
    %v3032 = vunpack.c.l.b16 %v2964
    %v3033 = vunpack.c.l.b16 %v2965
    %v3034 = vunpack.c.l.b16 %v2966
    %v3035 = vunpack.c.l.b16 %v2967
    %v3036 = vunpack.c.l.b16 %v2968
    %v3037 = vunpack.c.l.b16 %v2969
    %v3038 = vunpack.c.l.b16 %v2970
    %v3039 = vunpack.c.l.b16 %v2971
    %v3040 = vunpack.c.l.b16 %v2972
    %v3041 = vunpack.c.l.b16 %v2973
    %v3042 = vunpack.c.l.b16 %v2974
    %v3043 = vunpack.c.l.b16 %v2975
    %v3044 = vunpack.c.l.b16 %v2976
    %v3045 = vunpack.c.l.b16 %v2977
    %v3046 = vunpack.c.l.b16 %v2978
    %v3047 = vunpack.c.l.b16 %v2979
    %v3048 = vpack.c.b16 %v3033, %v3032
    %v3049 = vpack.c.b16 %v3035, %v3034
    %v3050 = vpack.c.b16 %v3037, %v3036
    %v3051 = vpack.c.b16 %v3039, %v3038
    %v3052 = vpack.c.b16 %v3041, %v3040
    %v3053 = vpack.c.b16 %v3043, %v3042
    %v3054 = vpack.c.b16 %v3045, %v3044
    %v3055 = vpack.c.b16 %v3047, %v3046
    %v3080 = vunpack.c.l.b16 %v2996
    %v3081 = vunpack.c.l.b16 %v2997
    %v3082 = vunpack.c.l.b16 %v2998
    %v3083 = vunpack.c.l.b16 %v2999
    %v3084 = vunpack.c.l.b16 %v3000
    %v3085 = vunpack.c.l.b16 %v3001
    %v3086 = vunpack.c.l.b16 %v3002
    %v3087 = vunpack.c.l.b16 %v3003
    %v3088 = vunpack.c.l.b16 %v3004
    %v3089 = vunpack.c.l.b16 %v3005
    %v3090 = vunpack.c.l.b16 %v3006
    %v3091 = vunpack.c.l.b16 %v3007
    %v3092 = vunpack.c.l.b16 %v3008
    %v3093 = vunpack.c.l.b16 %v3009
    %v3094 = vunpack.c.l.b16 %v3010
    %v3095 = vunpack.c.l.b16 %v3011
    %v3096 = vpack.c.b16 %v3081, %v3080
    %v3097 = vpack.c.b16 %v3083, %v3082
    %v3098 = vpack.c.b16 %v3085, %v3084
    %v3099 = vpack.c.b16 %v3087, %v3086
    %v3100 = vpack.c.b16 %v3089, %v3088
    %v3101 = vpack.c.b16 %v3091, %v3090
    %v3102 = vpack.c.b16 %v3093, %v3092
    %v3103 = vpack.c.b16 %v3095, %v3094
    %3112 = vmatpush.bf16.msra.mxu0 %v3103
    %3113 = vmatpush.bf16.msra.mxu0 %v3102
    %3114 = vmatpush.bf16.msra.mxu0 %v3101
    %3115 = vmatpush.bf16.msra.mxu0 %v3100
    %3116 = vmatpush.bf16.msra.mxu0 %v3099
    %3117 = vmatpush.bf16.msra.mxu0 %v3098
    %3118 = vmatpush.bf16.msra.mxu0 %v3097
    %3119 = vmatpush.bf16.msra.mxu0 %v3096
    %3120 = vmatmul.bf16.gmra.mxu0 %v3048
    %v3121 = vpop.f32.mrf.mxu0
    %v3122 = vadd.f32 %v3014, %v3121
    %v3123 = vpop.f32.mrf.mxu0
    %v3124 = vadd.f32 %v3014, %v3123
    %3125 = vmatmul.bf16.gmra.mxu0 %v3049
    %v3126 = vpop.f32.mrf.mxu0
    %v3127 = vadd.f32 %v3014, %v3126
    %v3128 = vpop.f32.mrf.mxu0
    %v3129 = vadd.f32 %v3014, %v3128
    %3130 = vmatmul.bf16.gmra.mxu0 %v3050
    %v3131 = vpop.f32.mrf.mxu0
    %v3132 = vadd.f32 %v3014, %v3131
    %v3133 = vpop.f32.mrf.mxu0
    %v3134 = vadd.f32 %v3014, %v3133
    %3135 = vmatmul.bf16.gmra.mxu0 %v3051
    %v3136 = vpop.f32.mrf.mxu0
    %v3137 = vadd.f32 %v3014, %v3136
    %v3138 = vpop.f32.mrf.mxu0
    %v3139 = vadd.f32 %v3014, %v3138
    %3140 = vmatmul.bf16.gmra.mxu0 %v3052
    %v3141 = vpop.f32.mrf.mxu0
    %v3142 = vadd.f32 %v3014, %v3141
    %v3143 = vpop.f32.mrf.mxu0
    %v3144 = vadd.f32 %v3014, %v3143
    %3145 = vmatmul.bf16.gmra.mxu0 %v3053
    %v3146 = vpop.f32.mrf.mxu0
    %v3147 = vadd.f32 %v3014, %v3146
    %v3148 = vpop.f32.mrf.mxu0
    %v3149 = vadd.f32 %v3014, %v3148
    %3150 = vmatmul.bf16.gmra.mxu0 %v3054
    %v3151 = vpop.f32.mrf.mxu0
    %v3152 = vadd.f32 %v3014, %v3151
    %v3153 = vpop.f32.mrf.mxu0
    %v3154 = vadd.f32 %v3014, %v3153
    %3155 = vmatmul.bf16.gmra.mxu0 %v3055
    %v3156 = vpop.f32.mrf.mxu0
    %v3157 = vadd.f32 %v3014, %v3156
    %v3158 = vpop.f32.mrf.mxu0
    %v3159 = vadd.f32 %v3014, %v3158
    %3160 = vdwg.mxu0
    %v3161 = vmul.f32 %v3122, %v3122
    %v3162 = vmul.f32 %v3124, %v3124
    %v3163 = vmul.f32 %v3127, %v3127
    %v3164 = vmul.f32 %v3129, %v3129
    %v3165 = vmul.f32 %v3132, %v3132
    %v3166 = vmul.f32 %v3134, %v3134
    %v3167 = vmul.f32 %v3137, %v3137
    %v3168 = vmul.f32 %v3139, %v3139
    %v3169 = vmul.f32 %v3142, %v3142
    %v3170 = vmul.f32 %v3144, %v3144
    %v3171 = vmul.f32 %v3147, %v3147
    %v3172 = vmul.f32 %v3149, %v3149
    %v3173 = vmul.f32 %v3152, %v3152
    %v3174 = vmul.f32 %v3154, %v3154
    %v3175 = vmul.f32 %v3157, %v3157
    %v3176 = vmul.f32 %v3159, %v3159
    %v3177 = vmul.f32 %v3122, %v3161
    %v3178 = vmul.f32 %v3124, %v3162
    %v3179 = vmul.f32 %v3127, %v3163
    %v3180 = vmul.f32 %v3129, %v3164
    %v3181 = vmul.f32 %v3132, %v3165
    %v3182 = vmul.f32 %v3134, %v3166
    %v3183 = vmul.f32 %v3137, %v3167
    %v3184 = vmul.f32 %v3139, %v3168
    %v3185 = vmul.f32 %v3142, %v3169
    %v3186 = vmul.f32 %v3144, %v3170
    %v3187 = vmul.f32 %v3147, %v3171
    %v3188 = vmul.f32 %v3149, %v3172
    %v3189 = vmul.f32 %v3152, %v3173
    %v3190 = vmul.f32 %v3154, %v3174
    %v3191 = vmul.f32 %v3157, %v3175
    %v3192 = vmul.f32 %v3159, %v3176
    %v3193 = vmul.f32 %v3177, 0.044715
    %v3194 = vmul.f32 %v3178, 0.044715
    %v3195 = vmul.f32 %v3179, 0.044715
    %v3196 = vmul.f32 %v3180, 0.044715
    %v3197 = vmul.f32 %v3181, 0.044715
    %v3198 = vmul.f32 %v3182, 0.044715
    %v3199 = vmul.f32 %v3183, 0.044715
    %v3200 = vmul.f32 %v3184, 0.044715
    %v3201 = vmul.f32 %v3185, 0.044715
    %v3202 = vmul.f32 %v3186, 0.044715
    %v3203 = vmul.f32 %v3187, 0.044715
    %v3204 = vmul.f32 %v3188, 0.044715
    %v3205 = vmul.f32 %v3189, 0.044715
    %v3206 = vmul.f32 %v3190, 0.044715
    %v3207 = vmul.f32 %v3191, 0.044715
    %v3208 = vmul.f32 %v3192, 0.044715
    %v3209 = vadd.f32 %v3122, %v3193
    %v3210 = vadd.f32 %v3124, %v3194
    %v3211 = vadd.f32 %v3127, %v3195
    %v3212 = vadd.f32 %v3129, %v3196
    %v3213 = vadd.f32 %v3132, %v3197
    %v3214 = vadd.f32 %v3134, %v3198
    %v3215 = vadd.f32 %v3137, %v3199
    %v3216 = vadd.f32 %v3139, %v3200
    %v3217 = vadd.f32 %v3142, %v3201
    %v3218 = vadd.f32 %v3144, %v3202
    %v3219 = vadd.f32 %v3147, %v3203
    %v3220 = vadd.f32 %v3149, %v3204
    %v3221 = vadd.f32 %v3152, %v3205
    %v3222 = vadd.f32 %v3154, %v3206
    %v3223 = vadd.f32 %v3157, %v3207
    %v3224 = vadd.f32 %v3159, %v3208
    %v3225 = vmul.f32 %v3209, 0.7978846
    %v3226 = vmul.f32 %v3210, 0.7978846
    %v3227 = vmul.f32 %v3211, 0.7978846
    %v3228 = vmul.f32 %v3212, 0.7978846
    %v3229 = vmul.f32 %v3213, 0.7978846
    %v3230 = vmul.f32 %v3214, 0.7978846
    %v3231 = vmul.f32 %v3215, 0.7978846
    %v3232 = vmul.f32 %v3216, 0.7978846
    %v3233 = vmul.f32 %v3217, 0.7978846
    %v3234 = vmul.f32 %v3218, 0.7978846
    %v3235 = vmul.f32 %v3219, 0.7978846
    %v3236 = vmul.f32 %v3220, 0.7978846
    %v3237 = vmul.f32 %v3221, 0.7978846
    %v3238 = vmul.f32 %v3222, 0.7978846
    %v3239 = vmul.f32 %v3223, 0.7978846
    %v3240 = vmul.f32 %v3224, 0.7978846
    %v3241 = vtanh.pop %v3225
    %v3242 = vtanh.pop %v3226
    %v3243 = vtanh.pop %v3227
    %v3244 = vtanh.pop %v3228
    %v3245 = vtanh.pop %v3229
    %v3246 = vtanh.pop %v3230
    %v3247 = vtanh.pop %v3231
    %v3248 = vtanh.pop %v3232
    %v3249 = vtanh.pop %v3233
    %v3250 = vtanh.pop %v3234
    %v3251 = vtanh.pop %v3235
    %v3252 = vtanh.pop %v3236
    %v3253 = vtanh.pop %v3237
    %v3254 = vtanh.pop %v3238
    %v3255 = vtanh.pop %v3239
    %v3256 = vtanh.pop %v3240
    %v3257 = vadd.f32 %v3241, 1.0
    %v3258 = vadd.f32 %v3242, 1.0
    %v3259 = vadd.f32 %v3243, 1.0
    %v3260 = vadd.f32 %v3244, 1.0
    %v3261 = vadd.f32 %v3245, 1.0
    %v3262 = vadd.f32 %v3246, 1.0
    %v3263 = vadd.f32 %v3247, 1.0
    %v3264 = vadd.f32 %v3248, 1.0
    %v3265 = vadd.f32 %v3249, 1.0
    %v3266 = vadd.f32 %v3250, 1.0
    %v3267 = vadd.f32 %v3251, 1.0
    %v3268 = vadd.f32 %v3252, 1.0
    %v3269 = vadd.f32 %v3253, 1.0
    %v3270 = vadd.f32 %v3254, 1.0
    %v3271 = vadd.f32 %v3255, 1.0
    %v3272 = vadd.f32 %v3256, 1.0
    %v3273 = vmul.f32 %v3257, 0.5
    %v3274 = vmul.f32 %v3258, 0.5
    %v3275 = vmul.f32 %v3259, 0.5
    %v3276 = vmul.f32 %v3260, 0.5
    %v3277 = vmul.f32 %v3261, 0.5
    %v3278 = vmul.f32 %v3262, 0.5
    %v3279 = vmul.f32 %v3263, 0.5
    %v3280 = vmul.f32 %v3264, 0.5
    %v3281 = vmul.f32 %v3265, 0.5
    %v3282 = vmul.f32 %v3266, 0.5
    %v3283 = vmul.f32 %v3267, 0.5
    %v3284 = vmul.f32 %v3268, 0.5
    %v3285 = vmul.f32 %v3269, 0.5
    %v3286 = vmul.f32 %v3270, 0.5
    %v3287 = vmul.f32 %v3271, 0.5
    %v3288 = vmul.f32 %v3272, 0.5
    %v3289 = vmul.f32 %v3122, %v3273
    %v3290 = vmul.f32 %v3124, %v3274
    %v3291 = vmul.f32 %v3127, %v3275
    %v3292 = vmul.f32 %v3129, %v3276
    %v3293 = vmul.f32 %v3132, %v3277
    %v3294 = vmul.f32 %v3134, %v3278
    %v3295 = vmul.f32 %v3137, %v3279
    %v3296 = vmul.f32 %v3139, %v3280
    %v3297 = vmul.f32 %v3142, %v3281
    %v3298 = vmul.f32 %v3144, %v3282
    %v3299 = vmul.f32 %v3147, %v3283
    %v3300 = vmul.f32 %v3149, %v3284
    %v3301 = vmul.f32 %v3152, %v3285
    %v3302 = vmul.f32 %v3154, %v3286
    %v3303 = vmul.f32 %v3157, %v3287
    %v3304 = vmul.f32 %v3159, %v3288
    %v3305 = vpack.c.bf16 %v3290, %v3289
    %v3306 = vpack.c.bf16 %v3292, %v3291
    %v3307 = vpack.c.bf16 %v3294, %v3293
    %v3308 = vpack.c.bf16 %v3296, %v3295
    %v3309 = vpack.c.bf16 %v3298, %v3297
    %v3310 = vpack.c.bf16 %v3300, %v3299
    %v3311 = vpack.c.bf16 %v3302, %v3301
    %v3312 = vpack.c.bf16 %v3304, %v3303
    %v3313 = vld [vmem:[%s17] sm:$0xf]
    %v3314 = vld [vmem:[%s17 + $0x4] sm:$0xf]
    %v3315 = vld [vmem:[%s17 + $0x8] sm:$0xf]
    %v3316 = vld [vmem:[%s17 + $0xc] sm:$0xf]
    %v3317 = vld [vmem:[%s17 + $0x10] sm:$0xf]
    %v3318 = vld [vmem:[%s17 + $0x14] sm:$0xf]
    %v3319 = vld [vmem:[%s17 + $0x18] sm:$0xf]
    %v3320 = vld [vmem:[%s17 + $0x1c] sm:$0xf]
    %v3321 = vld [vmem:[%s17 + $0x20] sm:$0xf]
    %v3322 = vld [vmem:[%s17 + $0x24] sm:$0xf]
    %v3323 = vld [vmem:[%s17 + $0x28] sm:$0xf]
    %v3324 = vld [vmem:[%s17 + $0x2c] sm:$0xf]
    %v3325 = vld [vmem:[%s17 + $0x30] sm:$0xf]
    %v3326 = vld [vmem:[%s17 + $0x34] sm:$0xf]
    %v3327 = vld [vmem:[%s17 + $0x38] sm:$0xf]
    %v3328 = vld [vmem:[%s17 + $0x3c] sm:$0xf]
    %v3329 = vld [vmem:[%s18] sm:$0x1]
    %v3331 = vperm.slane %v3329, 0
    %v3349 = vunpack.c.l.b16 %v3313
    %v3350 = vunpack.c.l.b16 %v3314
    %v3351 = vunpack.c.l.b16 %v3315
    %v3352 = vunpack.c.l.b16 %v3316
    %v3353 = vunpack.c.l.b16 %v3317
    %v3354 = vunpack.c.l.b16 %v3318
    %v3355 = vunpack.c.l.b16 %v3319
    %v3356 = vunpack.c.l.b16 %v3320
    %v3357 = vunpack.c.l.b16 %v3321
    %v3358 = vunpack.c.l.b16 %v3322
    %v3359 = vunpack.c.l.b16 %v3323
    %v3360 = vunpack.c.l.b16 %v3324
    %v3361 = vunpack.c.l.b16 %v3325
    %v3362 = vunpack.c.l.b16 %v3326
    %v3363 = vunpack.c.l.b16 %v3327
    %v3364 = vunpack.c.l.b16 %v3328
    %v3365 = vpack.c.b16 %v3350, %v3349
    %v3366 = vpack.c.b16 %v3352, %v3351
    %v3367 = vpack.c.b16 %v3354, %v3353
    %v3368 = vpack.c.b16 %v3356, %v3355
    %v3369 = vpack.c.b16 %v3358, %v3357
    %v3370 = vpack.c.b16 %v3360, %v3359
    %v3371 = vpack.c.b16 %v3362, %v3361
    %v3372 = vpack.c.b16 %v3364, %v3363
    %3381 = vmatpush.bf16.msra.mxu0 %v3372
    %3382 = vmatpush.bf16.msra.mxu0 %v3371
    %3383 = vmatpush.bf16.msra.mxu0 %v3370
    %3384 = vmatpush.bf16.msra.mxu0 %v3369
    %3385 = vmatpush.bf16.msra.mxu0 %v3368
    %3386 = vmatpush.bf16.msra.mxu0 %v3367
    %3387 = vmatpush.bf16.msra.mxu0 %v3366
    %3388 = vmatpush.bf16.msra.mxu0 %v3365
    %3389 = vmatmul.bf16.gmra.mxu0 %v3305
    %v3390 = vpop.f32.mrf.mxu0
    %v3391 = vadd.f32 %v3331, %v3390
    %v3392 = vpop.f32.mrf.mxu0
    %v3393 = vadd.f32 %v3331, %v3392
    %3394 = vmatmul.bf16.gmra.mxu0 %v3306
    %v3395 = vpop.f32.mrf.mxu0
    %v3396 = vadd.f32 %v3331, %v3395
    %v3397 = vpop.f32.mrf.mxu0
    %v3398 = vadd.f32 %v3331, %v3397
    %3399 = vmatmul.bf16.gmra.mxu0 %v3307
    %v3400 = vpop.f32.mrf.mxu0
    %v3401 = vadd.f32 %v3331, %v3400
    %v3402 = vpop.f32.mrf.mxu0
    %v3403 = vadd.f32 %v3331, %v3402
    %3404 = vmatmul.bf16.gmra.mxu0 %v3308
    %v3405 = vpop.f32.mrf.mxu0
    %v3406 = vadd.f32 %v3331, %v3405
    %v3407 = vpop.f32.mrf.mxu0
    %v3408 = vadd.f32 %v3331, %v3407
    %3409 = vmatmul.bf16.gmra.mxu0 %v3309
    %v3410 = vpop.f32.mrf.mxu0
    %v3411 = vadd.f32 %v3331, %v3410
    %v3412 = vpop.f32.mrf.mxu0
    %v3413 = vadd.f32 %v3331, %v3412
    %3414 = vmatmul.bf16.gmra.mxu0 %v3310
    %v3415 = vpop.f32.mrf.mxu0
    %v3416 = vadd.f32 %v3331, %v3415
    %v3417 = vpop.f32.mrf.mxu0
    %v3418 = vadd.f32 %v3331, %v3417
    %3419 = vmatmul.bf16.gmra.mxu0 %v3311
    %v3420 = vpop.f32.mrf.mxu0
    %v3421 = vadd.f32 %v3331, %v3420
    %v3422 = vpop.f32.mrf.mxu0
    %v3423 = vadd.f32 %v3331, %v3422
    %3424 = vmatmul.bf16.gmra.mxu0 %v3312
    %v3425 = vpop.f32.mrf.mxu0
    %v3426 = vadd.f32 %v3331, %v3425
    %v3427 = vpop.f32.mrf.mxu0
    %v3428 = vadd.f32 %v3331, %v3427
    %3429 = vdwg.mxu0
    %v3430 = vpack.c.bf16 %v3391, %v3391
    %v3431 = vpack.c.bf16 %v3393, %v3393
    %v3432 = vpack.c.bf16 %v3396, %v3396
    %v3433 = vpack.c.bf16 %v3398, %v3398
    %v3434 = vpack.c.bf16 %v3401, %v3401
    %v3435 = vpack.c.bf16 %v3403, %v3403
    %v3436 = vpack.c.bf16 %v3406, %v3406
    %v3437 = vpack.c.bf16 %v3408, %v3408
    %v3438 = vpack.c.bf16 %v3411, %v3411
    %v3439 = vpack.c.bf16 %v3413, %v3413
    %v3440 = vpack.c.bf16 %v3416, %v3416
    %v3441 = vpack.c.bf16 %v3418, %v3418
    %v3442 = vpack.c.bf16 %v3421, %v3421
    %v3443 = vpack.c.bf16 %v3423, %v3423
    %v3444 = vpack.c.bf16 %v3426, %v3426
    %v3445 = vpack.c.bf16 %v3428, %v3428
    %3446 = vst [vmem:[%s20] sm:$0xf] %v3430
    %3447 = vst [vmem:[%s20 + $0x4] sm:$0xf] %v3431
    %3448 = vst [vmem:[%s20 + $0x8] sm:$0xf] %v3432
    %3449 = vst [vmem:[%s20 + $0xc] sm:$0xf] %v3433
    %3450 = vst [vmem:[%s20 + $0x10] sm:$0xf] %v3434
    %3451 = vst [vmem:[%s20 + $0x14] sm:$0xf] %v3435
    %3452 = vst [vmem:[%s20 + $0x18] sm:$0xf] %v3436
    %3453 = vst [vmem:[%s20 + $0x1c] sm:$0xf] %v3437
    %3454 = vst [vmem:[%s20 + $0x20] sm:$0xf] %v3438
    %3455 = vst [vmem:[%s20 + $0x24] sm:$0xf] %v3439
    %3456 = vst [vmem:[%s20 + $0x28] sm:$0xf] %v3440
    %3457 = vst [vmem:[%s20 + $0x2c] sm:$0xf] %v3441
    %3458 = vst [vmem:[%s20 + $0x30] sm:$0xf] %v3442
    %3459 = vst [vmem:[%s20 + $0x34] sm:$0xf] %v3443
    %3460 = vst [vmem:[%s20 + $0x38] sm:$0xf] %v3444
    %3461 = vst [vmem:[%s20 + $0x3c] sm:$0xf] %v3445
    %v3462 = vld [vmem:[%s0] sm:$0xff]
    %v3463 = vld [vmem:[%s0 + $0x8] sm:$0xff]
    %v3464 = vld [vmem:[%s0 + $0x10] sm:$0xff]
    %v3465 = vld [vmem:[%s0 + $0x18] sm:$0xff]
    %v3466 = vld [vmem:[%s0 + $0x20] sm:$0xff]
    %v3467 = vld [vmem:[%s0 + $0x28] sm:$0xff]
    %v3468 = vld [vmem:[%s0 + $0x30] sm:$0xff]
    %v3469 = vld [vmem:[%s0 + $0x38] sm:$0xff]
    %v3470 = vld [vmem:[%s0 + $0x40] sm:$0xff]
    %v3471 = vld [vmem:[%s0 + $0x48] sm:$0xff]
    %v3472 = vld [vmem:[%s0 + $0x50] sm:$0xff]
    %v3473 = vld [vmem:[%s0 + $0x58] sm:$0xff]
    %v3474 = vld [vmem:[%s0 + $0x60] sm:$0xff]
    %v3475 = vld [vmem:[%s0 + $0x68] sm:$0xff]
    %v3476 = vld [vmem:[%s0 + $0x70] sm:$0xff]
    %v3477 = vld [vmem:[%s0 + $0x78] sm:$0xff]
    %v3478 = vsub.f32 %v3391, %v3462
    %v3479 = vsub.f32 %v3393, %v3463
    %v3480 = vsub.f32 %v3396, %v3464
    %v3481 = vsub.f32 %v3398, %v3465
    %v3482 = vsub.f32 %v3401, %v3466
    %v3483 = vsub.f32 %v3403, %v3467
    %v3484 = vsub.f32 %v3406, %v3468
    %v3485 = vsub.f32 %v3408, %v3469
    %v3486 = vsub.f32 %v3411, %v3470
    %v3487 = vsub.f32 %v3413, %v3471
    %v3488 = vsub.f32 %v3416, %v3472
    %v3489 = vsub.f32 %v3418, %v3473
    %v3490 = vsub.f32 %v3421, %v3474
    %v3491 = vsub.f32 %v3423, %v3475
    %v3492 = vsub.f32 %v3426, %v3476
    %v3493 = vsub.f32 %v3428, %v3477
    %v3494 = vmul.f32 %v3478, %v3478
    %v3495 = vmul.f32 %v3479, %v3479
    %v3496 = vmul.f32 %v3480, %v3480
    %v3497 = vmul.f32 %v3481, %v3481
    %v3498 = vmul.f32 %v3482, %v3482
    %v3499 = vmul.f32 %v3483, %v3483
    %v3500 = vmul.f32 %v3484, %v3484
    %v3501 = vmul.f32 %v3485, %v3485
    %v3502 = vmul.f32 %v3486, %v3486
    %v3503 = vmul.f32 %v3487, %v3487
    %v3504 = vmul.f32 %v3488, %v3488
    %v3505 = vmul.f32 %v3489, %v3489
    %v3506 = vmul.f32 %v3490, %v3490
    %v3507 = vmul.f32 %v3491, %v3491
    %v3508 = vmul.f32 %v3492, %v3492
    %v3509 = vmul.f32 %v3493, %v3493
    %v3510 = vadd.f32 %v3494, %v3495
    %v3511 = vadd.f32 %v3510, %v3496
    %v3512 = vadd.f32 %v3511, %v3497
    %v3513 = vadd.f32 %v3512, %v3498
    %v3514 = vadd.f32 %v3513, %v3499
    %v3515 = vadd.f32 %v3514, %v3500
    %v3516 = vadd.f32 %v3515, %v3501
    %v3517 = vadd.f32 %v3516, %v3502
    %v3518 = vadd.f32 %v3517, %v3503
    %v3519 = vadd.f32 %v3518, %v3504
    %v3520 = vadd.f32 %v3519, %v3505
    %v3521 = vadd.f32 %v3520, %v3506
    %v3522 = vadd.f32 %v3521, %v3507
    %v3523 = vadd.f32 %v3522, %v3508
    %v3524 = vadd.f32 %v3523, %v3509
    %3525 = vadd.xlane.f32.xlu0 %v3524
    %v3526 = vpop.xlane.xlu0 %3525
    %v3527 = vrot.slane %v3526, 4
    %v3528 = vadd.f32 %v3526, %v3527
    %v3529 = vrot.slane %v3528, 2
    %v3530 = vadd.f32 %v3528, %v3529
    %v3531 = vrot.slane %v3530, 1
    %v3532 = vadd.f32 %v3530, %v3531
    %s3533 = vtos %v3532
    %v3534 = vstv %s3533
    %vm3535 = vcmask 0
    %3536 = vst.msk [vmem:[#allocation4] sm:$0x1] %vm3535, %v3534
    // Predicated region
    $region78: #{fullpipeline_sit_forward.1} parent=1 // pred_check
      _
    $region79: #{fullpipeline_sit_forward.1} parent=1 // pred_check_branch
      %3538 = sbr.rel (0) target = $region81
    $region80: #{fullpipeline_sit_forward.1} parent=1 // pred_region
      %3540 = vsyncadd [#allocation3], 0
      %s3541 = sshll.u32 [#allocation2], 4
      %s3542 = int_to_ptr.vmem [resolvable:$true] %s3541
      %s3543 = sshll.u32 %s19, 4
      %s3544 = int_to_ptr.hbm [resolvable:$true] %s3543
      %3549 = dma.vmem_to_hbm [thread:$0]  %s3542, 1024, %s3544, [#allocation3], 64, 64, 4
    $region81: #{fullpipeline_sit_forward.1} parent=1 // pred_fallthru
      _
    // Predicated region
    $region82: #{fullpipeline_sit_forward.1} parent=1 // pred_check
      _
    $region83: #{fullpipeline_sit_forward.1} parent=1 // pred_check_branch
      %3551 = sbr.rel (0) target = $region85
    $region84: #{fullpipeline_sit_forward.1} parent=1 // pred_region
      _
    $region85: #{fullpipeline_sit_forward.1} parent=1 // pred_fallthru
      _
    // Predicated region
    $region86: #{fullpipeline_sit_forward.1} parent=1 // pred_check
      _
    $region87: #{fullpipeline_sit_forward.1} parent=1 // pred_check_branch
      %3553 = sbr.rel (0) target = $region89
    $region88: #{fullpipeline_sit_forward.1} parent=1 // pred_region
      %3555 = vsyncadd [#allocation5], 0
      %s3557 = sshll.u32 [#allocation4], 4
      %s3558 = int_to_ptr.vmem [resolvable:$true] %s3557
      %s3559 = sshll.u32 %s21, 4
      %s3560 = int_to_ptr.hbm [resolvable:$true] %s3559
      %3562 = dma.vmem_to_hbm [thread:$0]  %s3558, 16, %s3560, [#allocation5]
    $region89: #{fullpipeline_sit_forward.1} parent=1 // pred_fallthru
      _
    // Predicated region
    $region90: #{fullpipeline_sit_forward.1} parent=1 // pred_check
      _
    $region91: #{fullpipeline_sit_forward.1} parent=1 // pred_check_branch
      %3564 = sbr.rel (0) target = $region93
    $region92: #{fullpipeline_sit_forward.1} parent=1 // pred_region
      %3566 = dma.done [#allocation3], 1024
    $region93: #{fullpipeline_sit_forward.1} parent=1 // pred_fallthru
      _
    // Predicated region
    $region94: #{fullpipeline_sit_forward.1} parent=1 // pred_check
      _
    $region95: #{fullpipeline_sit_forward.1} parent=1 // pred_check_branch
      %3568 = sbr.rel (0) target = $region97
    $region96: #{fullpipeline_sit_forward.1} parent=1 // pred_region
      _
    $region97: #{fullpipeline_sit_forward.1} parent=1 // pred_fallthru
      _
    // Predicated region
    $region98: #{fullpipeline_sit_forward.1} parent=1 // pred_check
      _
    $region99: #{fullpipeline_sit_forward.1} parent=1 // pred_check_branch
      %3570 = sbr.rel (0) target = $region101
    $region100: #{fullpipeline_sit_forward.1} parent=1 // pred_region
      %3572 = dma.done [#allocation5], 16
    $region101: #{fullpipeline_sit_forward.1} parent=1 // pred_fallthru
      _
    %3573 = vsyncpa [#allocation3], 1
    %3574 = vsyncpa [#allocation5], 1

</llo_original>
